<compile_context>
chip_gen: v6e
topology: v6e:2x2x1
jax: 0.10.0
libtpu: 0.0.40
codegen_flags: <defaults>
</compile_context>

<pallas_src>
import math
import functools

import jax
import jax.numpy as jnp
from jax import lax
from jax.experimental import pallas as pl
from jax.experimental.pallas import tpu as pltpu
import numpy as np

IMG_DIM = (1, 28, 28)
PATCH_SIZE = 7
PATCH_PER_AXIS = IMG_DIM[1] // PATCH_SIZE
NUM_PATCHES = PATCH_PER_AXIS ** 2            # 16
NUM_TOKENS = NUM_PATCHES + 1                 # 17
TOKENS_PADDED = ((NUM_TOKENS + 7) // 8) * 8  # 24  (sublane-aligned per-element window)
PATCH_DIM = IMG_DIM[0] * PATCH_SIZE ** 2     # 49


# ----------------------------- shared math helpers -----------------------------

def _layernorm(x, gamma, beta, eps=1e-5):
    mean = jnp.mean(x, axis=-1, keepdims=True)
    var = jnp.mean((x - mean) ** 2, axis=-1, keepdims=True)
    return (x - mean) * lax.rsqrt(var + eps) * gamma + beta


def _erf_poly(x):
    # Abramowitz & Stegun 7.1.26, max abs error ~1.5e-7.
    # TODO(synk): lax.erf has no guaranteed Mosaic lowering; polynomial used in-kernel instead.
    p = 0.3275911
    a1, a2, a3, a4, a5 = 0.254829592, -0.284496736, 1.421413741, -1.453152027, 1.061405429
    ax = jnp.abs(x)
    t = 1.0 / (1.0 + p * ax)
    poly = ((((a5 * t + a4) * t + a3) * t + a2) * t + a1) * t
    y = 1.0 - poly * jnp.exp(-ax * ax)
    return jnp.where(x < 0, -y, y)


def _gelu_exact_kernel(x):
    # exact (erf-based) GELU, matching torch.nn.functional.gelu default
    return 0.5 * x * (1.0 + _erf_poly(x * (1.0 / math.sqrt(2.0))))


# ----------------------------- the Pallas kernel -----------------------------

def vit_disc_kernel(
    patches_ref, wp_ref, adj_ref,
    ln1g_ref, ln1b_ref,
    wqkv_ref, bqkv_ref, wo_ref, bo_ref,
    ln2g_ref, ln2b_ref,
    w1_ref, b1_ref, w2_ref, b2_ref,
    hw_ref, hb_ref,
    out_ref,
    x_scr,
    *, batch, num_heads, embed_dim, tokens_padded, tokens_real,
):
    E = embed_dim
    H = num_heads
    Dh = E // H
    Tp = tokens_padded
    T = tokens_real
    blk = pl.program_id(0)

    # --- patch embedding + CLS token + positional encoding (first grid step only) ---
    # patches_ref has a zero row at every CLS slot and at every padding slot; adj_ref carries
    # (cls_token + pos[0]) on CLS rows, (proj_bias + pos[t]) on patch rows, zeros on padding.
    @pl.when(blk == 0)
    def _():
        x_scr[...] = jnp.dot(patches_ref[...], wp_ref[...],
                             preferred_element_type=jnp.float32) + adj_ref[...]

    x = x_scr[...]                                                       # (B*Tp, E)

    # ---------------- attention ----------------
    h = _layernorm(x, ln1g_ref[0], ln1b_ref[0])                          # ln_1

    # fused QKV projection: single (B*Tp, E) x (E, 3E) matmul; kept as a VALUE
    # (no scratch round-trip, no masked partial stores).  1/sqrt(Dh) is already
    # folded into the Q columns at pack time.
    qkv = jnp.dot(h, wqkv_ref[0], preferred_element_type=jnp.float32) + bqkv_ref[0]

    # padded key positions (col >= T) must not receive attention mass
    key_mask = lax.broadcasted_iota(jnp.int32, (Tp, Tp), 1) < T          # (Tp, Tp) bool

    ctx_rows = []
    for b in range(batch):                                               # tiny static loops
        r0 = b * Tp                                                      # sublane-aligned
        head_ctx = []
        for hd in range(H):
            q = qkv[r0:r0 + Tp, hd * Dh:(hd + 1) * Dh]                   # (Tp, Dh)
            k = qkv[r0:r0 + Tp, E + hd * Dh:E + (hd + 1) * Dh]
            v = qkv[r0:r0 + Tp, 2 * E + hd * Dh:2 * E + (hd + 1) * Dh]
            s = lax.dot_general(q, k, (((1,), (1,)), ((), ())),
                                preferred_element_type=jnp.float32)      # (Tp, Tp)
            s = jnp.where(key_mask, s, -1e30)
            s = s - jnp.max(s, axis=-1, keepdims=True)
            p = jnp.exp(s)
            p = p * pl.reciprocal(jnp.sum(p, axis=-1, keepdims=True), approx=True)
            head_ctx.append(jnp.dot(p, v, preferred_element_type=jnp.float32))
        ctx_rows.append(jnp.concatenate(head_ctx, axis=-1))              # (Tp, E) lane-dense
    ctx = jnp.concatenate(ctx_rows, axis=0)                              # (B*Tp, E)

    # fused output projection: single (B*Tp, E) x (E, E) matmul + residual 1
    x = x + jnp.dot(ctx, wo_ref[0], preferred_element_type=jnp.float32) + bo_ref[0]

    # ---------------- MLP ----------------
    h2 = _layernorm(x, ln2g_ref[0], ln2b_ref[0])                         # ln_2
    m = jnp.dot(h2, w1_ref[0], preferred_element_type=jnp.float32) + b1_ref[0]
    m = _gelu_exact_kernel(m)
    m = jnp.dot(m, w2_ref[0], preferred_element_type=jnp.float32) + b2_ref[0]
    x = x + m                                                            # residual 2

    x_scr[...] = x                                                       # carry to next block

    # ------------- classification head on the CLS token (last grid step only) -------------
    @pl.when(blk == pl.num_programs(0) - 1)
    def _():
        cls = jnp.concatenate([x[b * Tp:b * Tp + 1, :] for b in range(batch)],
                              axis=0)                                    # (B, E)
        out_ref[...] = (jnp.dot(cls, hw_ref[...],
                                preferred_element_type=jnp.float32) + hb_ref[...])


# ----------------------------- parameter init / packing -----------------------------

def init_params(key, E, NB, H, WF):
    def nrm(k, shape, s=0.05):
        return jax.random.normal(k, shape, dtype=jnp.float32) * s

    keys = iter(jax.random.split(key, 8 * NB + 16))
    p = {}
    p["wp"] = nrm(next(keys), (E, PATCH_DIM))
    p["bp"] = nrm(next(keys), (E,))
    p["cls"] = jax.random.normal(next(keys), (1, 1, E), dtype=jnp.float32)
    p["pos"] = jax.random.normal(next(keys), (1, NUM_TOKENS, E), dtype=jnp.float32)
    blocks = []
    for _ in range(NB):
        blocks.append({
            "ln1_g": 1.0 + nrm(next(keys), (E,)),
            "ln1_b": nrm(next(keys), (E,)),
            "in_w": nrm(next(keys), (3 * E, E)),
            "in_b": nrm(next(keys), (3 * E,)),
            "out_w": nrm(next(keys), (E, E)),
            "out_b": nrm(next(keys), (E,)),
            "ln2_g": 1.0 + nrm(next(keys), (E,)),
            "ln2_b": nrm(next(keys), (E,)),
            "w1": nrm(next(keys), (WF * E, E)),
            "b1": nrm(next(keys), (WF * E,)),
            "w2": nrm(next(keys), (E, WF * E)),
            "b2": nrm(next(keys), (E,)),
        })
    p["blocks"] = blocks
    p["head_w"] = nrm(next(keys), (1, E))
    p["head_b"] = nrm(next(keys), (1,))
    return p


def pack_params(p, B, E, NB, H, WF, Tp):
    T = NUM_TOKENS
    Dh = E // H
    scale = 1.0 / math.sqrt(Dh)
    stk = lambda name: jnp.stack([blk[name] for blk in p["blocks"]], axis=0)

    # Per-token additive term folded at pack time:
    #   CLS row   -> cls_token + pos[0]   (matching the zero row in patches)
    #   patch t   -> proj_bias + pos[t]
    #   pad rows  -> 0
    adj = p["pos"].reshape(T, E) + jnp.concatenate(
        [p["cls"].reshape(1, E),
         jnp.broadcast_to(p["bp"][None, :], (NUM_PATCHES, E))], axis=0)   # (T, E)
    adj = jnp.concatenate([adj, jnp.zeros((Tp - T, E), jnp.float32)], axis=0)
    adj = jnp.tile(adj, (B, 1))                                           # (B*Tp, E)

    # fused QKV weights with 1/sqrt(Dh) folded into the Q columns
    wqkv = jnp.transpose(stk("in_w"), (0, 2, 1))                          # (NB, E, 3E)
    bqkv = stk("in_b")[:, None, :]                                        # (NB, 1, 3E)
    qscale = jnp.concatenate([jnp.full((E,), scale, jnp.float32),
                              jnp.ones((2 * E,), jnp.float32)])
    wqkv = wqkv * qscale[None, None, :]
    bqkv = bqkv * qscale[None, None, :]

    args = (
        jnp.transpose(p["wp"], (1, 0)),                       # (49, E)
        adj,                                                  # (B*Tp, E)
        stk("ln1_g")[:, None, :], stk("ln1_b")[:, None, :],   # (NB, 1, E)
        wqkv, bqkv,                                           # (NB, E, 3E), (NB, 1, 3E)
        jnp.transpose(stk("out_w"), (0, 2, 1)),               # (NB, E, E)
        stk("out_b")[:, None, :],                             # (NB, 1, E)
        stk("ln2_g")[:, None, :], stk("ln2_b")[:, None, :],   # (NB, 1, E)
        jnp.transpose(stk("w1"), (0, 2, 1)),                  # (NB, E, 4E)
        stk("b1")[:, None, :],                                # (NB, 1, 4E)
        jnp.transpose(stk("w2"), (0, 2, 1)),                  # (NB, 4E, E)
        stk("b2")[:, None, :],                                # (NB, 1, E)
        jnp.transpose(p["head_w"], (1, 0)),                   # (E, 1)
        p["head_b"][None, :],                                 # (1, 1)
    )
    return args


# ----------------------------- glue: patchify + pallas_call -----------------------------

def patchify(x):
    B, C, H, W = x.shape
    x = x.reshape(B, C, H // PATCH_SIZE, PATCH_SIZE, W // PATCH_SIZE, PATCH_SIZE)
    x = x.transpose(0, 2, 4, 1, 3, 5)
    return x.reshape(B, (H // PATCH_SIZE) * (W // PATCH_SIZE), C * PATCH_SIZE * PATCH_SIZE)


def vit_discriminator_forward(x, params, *, E, NB, H, WF):
    B = x.shape[0]
    T = NUM_TOKENS
    Tp = TOKENS_PADDED

    # Layout glue (pure reshape/pad): zero row at the CLS slot and at the padding slots of
    # every batch element so the kernel does one sublane/lane-dense matmul per forward.
    patches = patchify(x).astype(jnp.float32)                              # (B, 16, 49)
    patches_tok = jnp.concatenate(
        [jnp.zeros((B, 1, PATCH_DIM), jnp.float32),                        # CLS slot
         patches,
         jnp.zeros((B, Tp - T, PATCH_DIM), jnp.float32)], axis=1           # padding rows
    ).reshape(B * Tp, PATCH_DIM)                                           # (B*Tp, 49)

    args = (patches_tok,) + pack_params(params, B, E, NB, H, WF, Tp)

    kernel = functools.partial(
        vit_disc_kernel, batch=B, num_heads=H, embed_dim=E,
        tokens_padded=Tp, tokens_real=T)

    def const_spec(shape):                    # same block every grid step (loaded once)
        nd = len(shape)
        return pl.BlockSpec(shape, lambda k, _nd=nd: (0,) * _nd)

    def blk_spec(shape):                      # per-transformer-block slab, streamed over grid
        return pl.BlockSpec((1,) + shape[1:], lambda k: (k, 0, 0))

    const_idx = {0, 1, 2, len(args) - 2, len(args) - 1}   # patches, wp, adj, head_w, head_b
    in_specs = [const_spec(a.shape) if i in const_idx else blk_spec(a.shape)
                for i, a in enumerate(args)]

    return pl.pallas_call(
        kernel,
        out_shape=jax.ShapeDtypeStruct((B, 1), jnp.float32),
        grid=(NB,),
        in_specs=in_specs,
        out_specs=pl.BlockSpec((B, 1), lambda k: (0, 0)),
        scratch_shapes=[pltpu.VMEM((B * Tp, E), jnp.float32)],   # token matrix carried across blocks
        compiler_params=pltpu.CompilerParams(
            dimension_semantics=("arbitrary",),                  # sequential: x carries across blocks
            vmem_limit_bytes=32 * 1024 * 1024),
    )(*args)


# ----------------------------- pure-JAX reference (for validation) -----------------------------

def reference_forward(x, p, *, E, NB, H, WF):
    B = x.shape[0]
    Dh = E // H
    patches = patchify(x).astype(jnp.float32)
    tokens = jnp.einsum("bpd,ed->bpe", patches, p["wp"]) + p["bp"]
    cls = jnp.broadcast_to(p["cls"], (B, 1, E))
    tokens = jnp.concatenate([cls, tokens], axis=1) + p["pos"]
    for blk in p["blocks"]:
        h = _layernorm(tokens, blk["ln1_g"], blk["ln1_b"])
        qkv = jnp.einsum("bte,fe->btf", h, blk["in_w"]) + blk["in_b"]
        q, k, v = qkv[..., :E], qkv[..., E:2 * E], qkv[..., 2 * E:]
        heads = lambda t: t.reshape(B, -1, H, Dh).transpose(0, 2, 1, 3)
        qh, kh, vh = heads(q), heads(k), heads(v)
        s = jnp.einsum("bhqd,bhkd->bhqk", qh, kh) / math.sqrt(Dh)
        s = s - jnp.max(s, axis=-1, keepdims=True)
        a = jnp.exp(s)
        a = a / jnp.sum(a, axis=-1, keepdims=True)
        ctx = jnp.einsum("bhqk,bhkd->bhqd", a, vh)
        ctx = ctx.transpose(0, 2, 1, 3).reshape(B, -1, E)
        attn = jnp.einsum("bte,fe->btf", ctx, blk["out_w"]) + blk["out_b"]
        tokens = tokens + attn
        h2 = _layernorm(tokens, blk["ln2_g"], blk["ln2_b"])
        m = jnp.einsum("bte,fe->btf", h2, blk["w1"]) + blk["b1"]
        m = jax.nn.gelu(m, approximate=False)                 # true erf-based GELU
        m = jnp.einsum("btf,ef->bte", m, blk["w2"]) + blk["b2"]
        tokens = tokens + m
    cls_out = tokens[:, 0]
    return cls_out @ p["head_w"].T + p["head_b"]


# ----------------------------- main -----------------------------

if __name__ == "__main__":
    E, NB, H, WF, B = 32, 2, 4, 4, 2

    key = jax.random.PRNGKey(0)
    kx, kp = jax.random.split(key)
    x = jax.random.normal(kx, (B,) + IMG_DIM, dtype=jnp.float32)   # (2, 1, 28, 28) NCHW
    params = init_params(kp, E, NB, H, WF)

    out = vit_discriminator_forward(x, params, E=E, NB=NB, H=H, WF=WF)
    out = jax.block_until_ready(out)
    assert out.shape == (B, 1)

    ref = reference_forward(x, params, E=E, NB=NB, H=H, WF=WF)
    np.testing.assert_allclose(np.asarray(out), np.asarray(ref), rtol=2e-2, atol=2e-3)

    print("KERNEL_OK")
</pallas_src>

<mosaic_0001>
module attributes {stable_mosaic.version = 11 : i64} {
  func.func @vit_disc_kernel(%arg0: i32, %arg1: memref<48x49xf32, #tpu.memory_space<vmem>>, %arg2: memref<49x32xf32, #tpu.memory_space<vmem>>, %arg3: memref<48x32xf32, #tpu.memory_space<vmem>>, %arg4: memref<1x1x32xf32, #tpu.memory_space<vmem>>, %arg5: memref<1x1x32xf32, #tpu.memory_space<vmem>>, %arg6: memref<1x32x96xf32, #tpu.memory_space<vmem>>, %arg7: memref<1x1x96xf32, #tpu.memory_space<vmem>>, %arg8: memref<1x32x32xf32, #tpu.memory_space<vmem>>, %arg9: memref<1x1x32xf32, #tpu.memory_space<vmem>>, %arg10: memref<1x1x32xf32, #tpu.memory_space<vmem>>, %arg11: memref<1x1x32xf32, #tpu.memory_space<vmem>>, %arg12: memref<1x32x128xf32, #tpu.memory_space<vmem>>, %arg13: memref<1x1x128xf32, #tpu.memory_space<vmem>>, %arg14: memref<1x128x32xf32, #tpu.memory_space<vmem>>, %arg15: memref<1x1x32xf32, #tpu.memory_space<vmem>>, %arg16: memref<32x1xf32, #tpu.memory_space<vmem>>, %arg17: memref<1x1xf32, #tpu.memory_space<vmem>>, %arg18: memref<2x1xf32, #tpu.memory_space<vmem>>, %arg19: memref<48x32xf32, #tpu.memory_space<vmem>>) attributes {dimension_semantics = [#tpu.dimension_semantics<arbitrary>], iteration_bounds = array<i64: 2>, scalar_prefetch = 0 : i64, scratch_operands = 1 : i64, tpu.core_type = #tpu.core_type<tc>, window_params = [{pipeline_mode = #tpu.pipeline_mode<synchronous>, transform_indices = @transform_0, window_bounds = array<i64: 48, 49>}, {pipeline_mode = #tpu.pipeline_mode<synchronous>, transform_indices = @transform_1, window_bounds = array<i64: 49, 32>}, {pipeline_mode = #tpu.pipeline_mode<synchronous>, transform_indices = @transform_2, window_bounds = array<i64: 48, 32>}, {transform_indices = @transform_3, window_bounds = array<i64: 1, 1, 32>}, {transform_indices = @transform_4, window_bounds = array<i64: 1, 1, 32>}, {transform_indices = @transform_5, window_bounds = array<i64: 1, 32, 96>}, {transform_indices = @transform_6, window_bounds = array<i64: 1, 1, 96>}, {transform_indices = @transform_7, window_bounds = array<i64: 1, 32, 32>}, {transform_indices = @transform_8, window_bounds = array<i64: 1, 1, 32>}, {transform_indices = @transform_9, window_bounds = array<i64: 1, 1, 32>}, {transform_indices = @transform_10, window_bounds = array<i64: 1, 1, 32>}, {transform_indices = @transform_11, window_bounds = array<i64: 1, 32, 128>}, {transform_indices = @transform_12, window_bounds = array<i64: 1, 1, 128>}, {transform_indices = @transform_13, window_bounds = array<i64: 1, 128, 32>}, {transform_indices = @transform_14, window_bounds = array<i64: 1, 1, 32>}, {pipeline_mode = #tpu.pipeline_mode<synchronous>, transform_indices = @transform_15, window_bounds = array<i64: 32, 1>}, {pipeline_mode = #tpu.pipeline_mode<synchronous>, transform_indices = @transform_16, window_bounds = array<i64: 1, 1>}, {pipeline_mode = #tpu.pipeline_mode<synchronous>, transform_indices = @transform_17, window_bounds = array<i64: 2, 1>}]} {
    %c0_i32 = arith.constant 0 : i32
    %0 = arith.cmpi eq, %arg0, %c0_i32 : i32
    %1 = arith.extui %0 : i1 to i32
    %c0_i32_0 = arith.constant 0 : i32
    %2 = arith.cmpi ne, %1, %c0_i32_0 : i32
    scf.if %2 {
      %c0_109 = arith.constant 0 : index
      %c0_110 = arith.constant 0 : index
      %272 = vector.load %arg1[%c0_109, %c0_110] : memref<48x49xf32, #tpu.memory_space<vmem>>, vector<48x49xf32>
      %c0_111 = arith.constant 0 : index
      %c0_112 = arith.constant 0 : index
      %273 = vector.load %arg2[%c0_111, %c0_112] : memref<49x32xf32, #tpu.memory_space<vmem>>, vector<49x32xf32>
      %cst_113 = arith.constant dense<0.000000e+00> : vector<48x32xf32>
      %274 = tpu.matmul %272, %273, %cst_113 {dimension_numbers = #tpu.dot_dimension_numbers<[1], [0], [0], [1], [0, 0, 1, 1], [], []>} : vector<48x49xf32>, vector<49x32xf32>, vector<48x32xf32> -> vector<48x32xf32>
      %c0_114 = arith.constant 0 : index
      %c0_115 = arith.constant 0 : index
      %275 = vector.load %arg3[%c0_114, %c0_115] : memref<48x32xf32, #tpu.memory_space<vmem>>, vector<48x32xf32>
      %276 = arith.addf %274, %275 : vector<48x32xf32>
      %c0_116 = arith.constant 0 : index
      %c0_117 = arith.constant 0 : index
      %277 = vector.load %arg19[%c0_116, %c0_117] : memref<48x32xf32, #tpu.memory_space<vmem>>, vector<48x32xf32>
      tpu.vector_store %arg19[%c0_116, %c0_117], %276 {strides = array<i32>} : memref<48x32xf32, #tpu.memory_space<vmem>>, vector<48x32xf32>,
    } else {
    }
    %c0 = arith.constant 0 : index
    %c0_1 = arith.constant 0 : index
    %3 = vector.load %arg19[%c0, %c0_1] : memref<48x32xf32, #tpu.memory_space<vmem>>, vector<48x32xf32>
    %c0_2 = arith.constant 0 : index
    %c0_3 = arith.constant 0 : index
    %c0_4 = arith.constant 0 : index
    %4 = vector.load %arg4[%c0_2, %c0_3, %c0_4] : memref<1x1x32xf32, #tpu.memory_space<vmem>>, vector<1x1x32xf32>
    %5 = vector.shape_cast %4 : vector<1x1x32xf32> to vector<1x32xf32>
    %c0_5 = arith.constant 0 : index
    %c0_6 = arith.constant 0 : index
    %c0_7 = arith.constant 0 : index
    %6 = vector.load %arg5[%c0_5, %c0_6, %c0_7] : memref<1x1x32xf32, #tpu.memory_space<vmem>>, vector<1x1x32xf32>
    %7 = vector.shape_cast %6 : vector<1x1x32xf32> to vector<1x32xf32>
    %cst = arith.constant dense<0.000000e+00> : vector<48xf32>
    %8 = vector.multi_reduction <add>, %3, %cst [1] : vector<48x32xf32> to vector<48xf32>
    %9 = vector.shape_cast %8 : vector<48xf32> to vector<48x1xf32>
    %cst_8 = arith.constant 3.200000e+01 : f32
    %10 = vector.broadcast %cst_8 : f32 to vector<48x1xf32>
    %11 = arith.divf %9, %10 : vector<48x1xf32>
    %12 = vector.broadcast %11 : vector<48x1xf32> to vector<48x32xf32>
    %13 = arith.subf %3, %12 : vector<48x32xf32>
    %14 = arith.mulf %13, %13 : vector<48x32xf32>
    %cst_9 = arith.constant dense<0.000000e+00> : vector<48xf32>
    %15 = vector.multi_reduction <add>, %14, %cst_9 [1] : vector<48x32xf32> to vector<48xf32>
    %16 = vector.shape_cast %15 : vector<48xf32> to vector<48x1xf32>
    %cst_10 = arith.constant 3.200000e+01 : f32
    %17 = vector.broadcast %cst_10 : f32 to vector<48x1xf32>
    %18 = arith.divf %16, %17 : vector<48x1xf32>
    %19 = vector.broadcast %11 : vector<48x1xf32> to vector<48x32xf32>
    %20 = arith.subf %3, %19 : vector<48x32xf32>
    %cst_11 = arith.constant 9.99999974E-6 : f32
    %21 = vector.broadcast %cst_11 : f32 to vector<48x1xf32>
    %22 = arith.addf %18, %21 : vector<48x1xf32>
    %23 = math.rsqrt %22 : vector<48x1xf32>
    %24 = vector.broadcast %23 : vector<48x1xf32> to vector<48x32xf32>
    %25 = arith.mulf %20, %24 : vector<48x32xf32>
    %26 = vector.broadcast %5 : vector<1x32xf32> to vector<48x32xf32>
    %27 = arith.mulf %25, %26 : vector<48x32xf32>
    %28 = vector.broadcast %7 : vector<1x32xf32> to vector<48x32xf32>
    %29 = arith.addf %27, %28 : vector<48x32xf32>
    %c0_12 = arith.constant 0 : index
    %c0_13 = arith.constant 0 : index
    %c0_14 = arith.constant 0 : index
    %30 = vector.load %arg6[%c0_12, %c0_13, %c0_14] : memref<1x32x96xf32, #tpu.memory_space<vmem>>, vector<1x32x96xf32>
    %31 = vector.shape_cast %30 : vector<1x32x96xf32> to vector<32x96xf32>
    %cst_15 = arith.constant dense<0.000000e+00> : vector<48x96xf32>
    %32 = tpu.matmul %29, %31, %cst_15 {dimension_numbers = #tpu.dot_dimension_numbers<[1], [0], [0], [1], [0, 0, 1, 1], [], []>} : vector<48x32xf32>, vector<32x96xf32>, vector<48x96xf32> -> vector<48x96xf32>
    %c0_16 = arith.constant 0 : index
    %c0_17 = arith.constant 0 : index
    %c0_18 = arith.constant 0 : index
    %33 = vector.load %arg7[%c0_16, %c0_17, %c0_18] : memref<1x1x96xf32, #tpu.memory_space<vmem>>, vector<1x1x96xf32>
    %34 = vector.shape_cast %33 : vector<1x1x96xf32> to vector<1x96xf32>
    %35 = vector.broadcast %34 : vector<1x96xf32> to vector<48x96xf32>
    %36 = arith.addf %32, %35 : vector<48x96xf32>
    %37 = tpu.iota {dimensions = array<i32: 1>} : vector<24x24xi32>
    %c17_i32 = arith.constant 17 : i32
    %38 = vector.broadcast %c17_i32 : i32 to vector<24x24xi32>
    %39 = arith.cmpi slt, %37, %38 : vector<24x24xi32>
    %40 = vector.extract_strided_slice %36 {offsets = [0, 0], sizes = [24, 8], strides = [1, 1]} : vector<48x96xf32> to vector<24x8xf32>
    %41 = vector.extract_strided_slice %36 {offsets = [0, 32], sizes = [24, 8], strides = [1, 1]} : vector<48x96xf32> to vector<24x8xf32>
    %42 = vector.extract_strided_slice %36 {offsets = [0, 64], sizes = [24, 8], strides = [1, 1]} : vector<48x96xf32> to vector<24x8xf32>
    %cst_19 = arith.constant dense<0.000000e+00> : vector<24x24xf32>
    %43 = tpu.matmul %40, %41, %cst_19 {dimension_numbers = #tpu.dot_dimension_numbers<[1], [1], [0], [0], [0, 0, 1, 0], [], []>} : vector<24x8xf32>, vector<24x8xf32>, vector<24x24xf32> -> vector<24x24xf32>
    %cst_20 = arith.constant -1.000000e+30 : f32
    %44 = vector.broadcast %cst_20 : f32 to vector<24x24xf32>
    %45 = arith.select %39, %43, %44 : vector<24x24xi1>, vector<24x24xf32>
    %cst_21 = arith.constant dense<0xFF800000> : vector<24xf32>
    %46 = vector.multi_reduction <maximumf>, %45, %cst_21 [1] : vector<24x24xf32> to vector<24xf32>
    %47 = vector.shape_cast %46 : vector<24xf32> to vector<24x1xf32>
    %48 = vector.broadcast %47 : vector<24x1xf32> to vector<24x24xf32>
    %49 = arith.subf %45, %48 : vector<24x24xf32>
    %50 = math.exp %49 : vector<24x24xf32>
    %cst_22 = arith.constant dense<0.000000e+00> : vector<24xf32>
    %51 = vector.multi_reduction <add>, %50, %cst_22 [1] : vector<24x24xf32> to vector<24xf32>
    %52 = vector.shape_cast %51 : vector<24xf32> to vector<24x1xf32>
    %53 = tpu.reciprocal %52 {approx = true} : vector<24x1xf32> -> vector<24x1xf32>
    %54 = vector.broadcast %53 : vector<24x1xf32> to vector<24x24xf32>
    %55 = arith.mulf %50, %54 : vector<24x24xf32>
    %cst_23 = arith.constant dense<0.000000e+00> : vector<24x8xf32>
    %56 = tpu.matmul %55, %42, %cst_23 {dimension_numbers = #tpu.dot_dimension_numbers<[1], [0], [0], [1], [0, 0, 1, 1], [], []>} : vector<24x24xf32>, vector<24x8xf32>, vector<24x8xf32> -> vector<24x8xf32>
    %57 = vector.extract_strided_slice %36 {offsets = [0, 8], sizes = [24, 8], strides = [1, 1]} : vector<48x96xf32> to vector<24x8xf32>
    %58 = vector.extract_strided_slice %36 {offsets = [0, 40], sizes = [24, 8], strides = [1, 1]} : vector<48x96xf32> to vector<24x8xf32>
    %59 = vector.extract_strided_slice %36 {offsets = [0, 72], sizes = [24, 8], strides = [1, 1]} : vector<48x96xf32> to vector<24x8xf32>
    %cst_24 = arith.constant dense<0.000000e+00> : vector<24x24xf32>
    %60 = tpu.matmul %57, %58, %cst_24 {dimension_numbers = #tpu.dot_dimension_numbers<[1], [1], [0], [0], [0, 0, 1, 0], [], []>} : vector<24x8xf32>, vector<24x8xf32>, vector<24x24xf32> -> vector<24x24xf32>
    %cst_25 = arith.constant -1.000000e+30 : f32
    %61 = vector.broadcast %cst_25 : f32 to vector<24x24xf32>
    %62 = arith.select %39, %60, %61 : vector<24x24xi1>, vector<24x24xf32>
    %cst_26 = arith.constant dense<0xFF800000> : vector<24xf32>
    %63 = vector.multi_reduction <maximumf>, %62, %cst_26 [1] : vector<24x24xf32> to vector<24xf32>
    %64 = vector.shape_cast %63 : vector<24xf32> to vector<24x1xf32>
    %65 = vector.broadcast %64 : vector<24x1xf32> to vector<24x24xf32>
    %66 = arith.subf %62, %65 : vector<24x24xf32>
    %67 = math.exp %66 : vector<24x24xf32>
    %cst_27 = arith.constant dense<0.000000e+00> : vector<24xf32>
    %68 = vector.multi_reduction <add>, %67, %cst_27 [1] : vector<24x24xf32> to vector<24xf32>
    %69 = vector.shape_cast %68 : vector<24xf32> to vector<24x1xf32>
    %70 = tpu.reciprocal %69 {approx = true} : vector<24x1xf32> -> vector<24x1xf32>
    %71 = vector.broadcast %70 : vector<24x1xf32> to vector<24x24xf32>
    %72 = arith.mulf %67, %71 : vector<24x24xf32>
    %cst_28 = arith.constant dense<0.000000e+00> : vector<24x8xf32>
    %73 = tpu.matmul %72, %59, %cst_28 {dimension_numbers = #tpu.dot_dimension_numbers<[1], [0], [0], [1], [0, 0, 1, 1], [], []>} : vector<24x24xf32>, vector<24x8xf32>, vector<24x8xf32> -> vector<24x8xf32>
    %74 = vector.extract_strided_slice %36 {offsets = [0, 16], sizes = [24, 8], strides = [1, 1]} : vector<48x96xf32> to vector<24x8xf32>
    %75 = vector.extract_strided_slice %36 {offsets = [0, 48], sizes = [24, 8], strides = [1, 1]} : vector<48x96xf32> to vector<24x8xf32>
    %76 = vector.extract_strided_slice %36 {offsets = [0, 80], sizes = [24, 8], strides = [1, 1]} : vector<48x96xf32> to vector<24x8xf32>
    %cst_29 = arith.constant dense<0.000000e+00> : vector<24x24xf32>
    %77 = tpu.matmul %74, %75, %cst_29 {dimension_numbers = #tpu.dot_dimension_numbers<[1], [1], [0], [0], [0, 0, 1, 0], [], []>} : vector<24x8xf32>, vector<24x8xf32>, vector<24x24xf32> -> vector<24x24xf32>
    %cst_30 = arith.constant -1.000000e+30 : f32
    %78 = vector.broadcast %cst_30 : f32 to vector<24x24xf32>
    %79 = arith.select %39, %77, %78 : vector<24x24xi1>, vector<24x24xf32>
    %cst_31 = arith.constant dense<0xFF800000> : vector<24xf32>
    %80 = vector.multi_reduction <maximumf>, %79, %cst_31 [1] : vector<24x24xf32> to vector<24xf32>
    %81 = vector.shape_cast %80 : vector<24xf32> to vector<24x1xf32>
    %82 = vector.broadcast %81 : vector<24x1xf32> to vector<24x24xf32>
    %83 = arith.subf %79, %82 : vector<24x24xf32>
    %84 = math.exp %83 : vector<24x24xf32>
    %cst_32 = arith.constant dense<0.000000e+00> : vector<24xf32>
    %85 = vector.multi_reduction <add>, %84, %cst_32 [1] : vector<24x24xf32> to vector<24xf32>
    %86 = vector.shape_cast %85 : vector<24xf32> to vector<24x1xf32>
    %87 = tpu.reciprocal %86 {approx = true} : vector<24x1xf32> -> vector<24x1xf32>
    %88 = vector.broadcast %87 : vector<24x1xf32> to vector<24x24xf32>
    %89 = arith.mulf %84, %88 : vector<24x24xf32>
    %cst_33 = arith.constant dense<0.000000e+00> : vector<24x8xf32>
    %90 = tpu.matmul %89, %76, %cst_33 {dimension_numbers = #tpu.dot_dimension_numbers<[1], [0], [0], [1], [0, 0, 1, 1], [], []>} : vector<24x24xf32>, vector<24x8xf32>, vector<24x8xf32> -> vector<24x8xf32>
    %91 = vector.extract_strided_slice %36 {offsets = [0, 24], sizes = [24, 8], strides = [1, 1]} : vector<48x96xf32> to vector<24x8xf32>
    %92 = vector.extract_strided_slice %36 {offsets = [0, 56], sizes = [24, 8], strides = [1, 1]} : vector<48x96xf32> to vector<24x8xf32>
    %93 = vector.extract_strided_slice %36 {offsets = [0, 88], sizes = [24, 8], strides = [1, 1]} : vector<48x96xf32> to vector<24x8xf32>
    %cst_34 = arith.constant dense<0.000000e+00> : vector<24x24xf32>
    %94 = tpu.matmul %91, %92, %cst_34 {dimension_numbers = #tpu.dot_dimension_numbers<[1], [1], [0], [0], [0, 0, 1, 0], [], []>} : vector<24x8xf32>, vector<24x8xf32>, vector<24x24xf32> -> vector<24x24xf32>
    %cst_35 = arith.constant -1.000000e+30 : f32
    %95 = vector.broadcast %cst_35 : f32 to vector<24x24xf32>
    %96 = arith.select %39, %94, %95 : vector<24x24xi1>, vector<24x24xf32>
    %cst_36 = arith.constant dense<0xFF800000> : vector<24xf32>
    %97 = vector.multi_reduction <maximumf>, %96, %cst_36 [1] : vector<24x24xf32> to vector<24xf32>
    %98 = vector.shape_cast %97 : vector<24xf32> to vector<24x1xf32>
    %99 = vector.broadcast %98 : vector<24x1xf32> to vector<24x24xf32>
    %100 = arith.subf %96, %99 : vector<24x24xf32>
    %101 = math.exp %100 : vector<24x24xf32>
    %cst_37 = arith.constant dense<0.000000e+00> : vector<24xf32>
    %102 = vector.multi_reduction <add>, %101, %cst_37 [1] : vector<24x24xf32> to vector<24xf32>
    %103 = vector.shape_cast %102 : vector<24xf32> to vector<24x1xf32>
    %104 = tpu.reciprocal %103 {approx = true} : vector<24x1xf32> -> vector<24x1xf32>
    %105 = vector.broadcast %104 : vector<24x1xf32> to vector<24x24xf32>
    %106 = arith.mulf %101, %105 : vector<24x24xf32>
    %cst_38 = arith.constant dense<0.000000e+00> : vector<24x8xf32>
    %107 = tpu.matmul %106, %93, %cst_38 {dimension_numbers = #tpu.dot_dimension_numbers<[1], [0], [0], [1], [0, 0, 1, 1], [], []>} : vector<24x24xf32>, vector<24x8xf32>, vector<24x8xf32> -> vector<24x8xf32>
    %108 = tpu.concatenate %56, %73, %90, %107 in 1 : vector<24x8xf32>, vector<24x8xf32>, vector<24x8xf32>, vector<24x8xf32> -> vector<24x32xf32>
    %109 = vector.extract_strided_slice %36 {offsets = [24, 0], sizes = [24, 8], strides = [1, 1]} : vector<48x96xf32> to vector<24x8xf32>
    %110 = vector.extract_strided_slice %36 {offsets = [24, 32], sizes = [24, 8], strides = [1, 1]} : vector<48x96xf32> to vector<24x8xf32>
    %111 = vector.extract_strided_slice %36 {offsets = [24, 64], sizes = [24, 8], strides = [1, 1]} : vector<48x96xf32> to vector<24x8xf32>
    %cst_39 = arith.constant dense<0.000000e+00> : vector<24x24xf32>
    %112 = tpu.matmul %109, %110, %cst_39 {dimension_numbers = #tpu.dot_dimension_numbers<[1], [1], [0], [0], [0, 0, 1, 0], [], []>} : vector<24x8xf32>, vector<24x8xf32>, vector<24x24xf32> -> vector<24x24xf32>
    %cst_40 = arith.constant -1.000000e+30 : f32
    %113 = vector.broadcast %cst_40 : f32 to vector<24x24xf32>
    %114 = arith.select %39, %112, %113 : vector<24x24xi1>, vector<24x24xf32>
    %cst_41 = arith.constant dense<0xFF800000> : vector<24xf32>
    %115 = vector.multi_reduction <maximumf>, %114, %cst_41 [1] : vector<24x24xf32> to vector<24xf32>
    %116 = vector.shape_cast %115 : vector<24xf32> to vector<24x1xf32>
    %117 = vector.broadcast %116 : vector<24x1xf32> to vector<24x24xf32>
    %118 = arith.subf %114, %117 : vector<24x24xf32>
    %119 = math.exp %118 : vector<24x24xf32>
    %cst_42 = arith.constant dense<0.000000e+00> : vector<24xf32>
    %120 = vector.multi_reduction <add>, %119, %cst_42 [1] : vector<24x24xf32> to vector<24xf32>
    %121 = vector.shape_cast %120 : vector<24xf32> to vector<24x1xf32>
    %122 = tpu.reciprocal %121 {approx = true} : vector<24x1xf32> -> vector<24x1xf32>
    %123 = vector.broadcast %122 : vector<24x1xf32> to vector<24x24xf32>
    %124 = arith.mulf %119, %123 : vector<24x24xf32>
    %cst_43 = arith.constant dense<0.000000e+00> : vector<24x8xf32>
    %125 = tpu.matmul %124, %111, %cst_43 {dimension_numbers = #tpu.dot_dimension_numbers<[1], [0], [0], [1], [0, 0, 1, 1], [], []>} : vector<24x24xf32>, vector<24x8xf32>, vector<24x8xf32> -> vector<24x8xf32>
    %126 = vector.extract_strided_slice %36 {offsets = [24, 8], sizes = [24, 8], strides = [1, 1]} : vector<48x96xf32> to vector<24x8xf32>
    %127 = vector.extract_strided_slice %36 {offsets = [24, 40], sizes = [24, 8], strides = [1, 1]} : vector<48x96xf32> to vector<24x8xf32>
    %128 = vector.extract_strided_slice %36 {offsets = [24, 72], sizes = [24, 8], strides = [1, 1]} : vector<48x96xf32> to vector<24x8xf32>
    %cst_44 = arith.constant dense<0.000000e+00> : vector<24x24xf32>
    %129 = tpu.matmul %126, %127, %cst_44 {dimension_numbers = #tpu.dot_dimension_numbers<[1], [1], [0], [0], [0, 0, 1, 0], [], []>} : vector<24x8xf32>, vector<24x8xf32>, vector<24x24xf32> -> vector<24x24xf32>
    %cst_45 = arith.constant -1.000000e+30 : f32
    %130 = vector.broadcast %cst_45 : f32 to vector<24x24xf32>
    %131 = arith.select %39, %129, %130 : vector<24x24xi1>, vector<24x24xf32>
    %cst_46 = arith.constant dense<0xFF800000> : vector<24xf32>
    %132 = vector.multi_reduction <maximumf>, %131, %cst_46 [1] : vector<24x24xf32> to vector<24xf32>
    %133 = vector.shape_cast %132 : vector<24xf32> to vector<24x1xf32>
    %134 = vector.broadcast %133 : vector<24x1xf32> to vector<24x24xf32>
    %135 = arith.subf %131, %134 : vector<24x24xf32>
    %136 = math.exp %135 : vector<24x24xf32>
    %cst_47 = arith.constant dense<0.000000e+00> : vector<24xf32>
    %137 = vector.multi_reduction <add>, %136, %cst_47 [1] : vector<24x24xf32> to vector<24xf32>
    %138 = vector.shape_cast %137 : vector<24xf32> to vector<24x1xf32>
    %139 = tpu.reciprocal %138 {approx = true} : vector<24x1xf32> -> vector<24x1xf32>
    %140 = vector.broadcast %139 : vector<24x1xf32> to vector<24x24xf32>
    %141 = arith.mulf %136, %140 : vector<24x24xf32>
    %cst_48 = arith.constant dense<0.000000e+00> : vector<24x8xf32>
    %142 = tpu.matmul %141, %128, %cst_48 {dimension_numbers = #tpu.dot_dimension_numbers<[1], [0], [0], [1], [0, 0, 1, 1], [], []>} : vector<24x24xf32>, vector<24x8xf32>, vector<24x8xf32> -> vector<24x8xf32>
    %143 = vector.extract_strided_slice %36 {offsets = [24, 16], sizes = [24, 8], strides = [1, 1]} : vector<48x96xf32> to vector<24x8xf32>
    %144 = vector.extract_strided_slice %36 {offsets = [24, 48], sizes = [24, 8], strides = [1, 1]} : vector<48x96xf32> to vector<24x8xf32>
    %145 = vector.extract_strided_slice %36 {offsets = [24, 80], sizes = [24, 8], strides = [1, 1]} : vector<48x96xf32> to vector<24x8xf32>
    %cst_49 = arith.constant dense<0.000000e+00> : vector<24x24xf32>
    %146 = tpu.matmul %143, %144, %cst_49 {dimension_numbers = #tpu.dot_dimension_numbers<[1], [1], [0], [0], [0, 0, 1, 0], [], []>} : vector<24x8xf32>, vector<24x8xf32>, vector<24x24xf32> -> vector<24x24xf32>
    %cst_50 = arith.constant -1.000000e+30 : f32
    %147 = vector.broadcast %cst_50 : f32 to vector<24x24xf32>
    %148 = arith.select %39, %146, %147 : vector<24x24xi1>, vector<24x24xf32>
    %cst_51 = arith.constant dense<0xFF800000> : vector<24xf32>
    %149 = vector.multi_reduction <maximumf>, %148, %cst_51 [1] : vector<24x24xf32> to vector<24xf32>
    %150 = vector.shape_cast %149 : vector<24xf32> to vector<24x1xf32>
    %151 = vector.broadcast %150 : vector<24x1xf32> to vector<24x24xf32>
    %152 = arith.subf %148, %151 : vector<24x24xf32>
    %153 = math.exp %152 : vector<24x24xf32>
    %cst_52 = arith.constant dense<0.000000e+00> : vector<24xf32>
    %154 = vector.multi_reduction <add>, %153, %cst_52 [1] : vector<24x24xf32> to vector<24xf32>
    %155 = vector.shape_cast %154 : vector<24xf32> to vector<24x1xf32>
    %156 = tpu.reciprocal %155 {approx = true} : vector<24x1xf32> -> vector<24x1xf32>
    %157 = vector.broadcast %156 : vector<24x1xf32> to vector<24x24xf32>
    %158 = arith.mulf %153, %157 : vector<24x24xf32>
    %cst_53 = arith.constant dense<0.000000e+00> : vector<24x8xf32>
    %159 = tpu.matmul %158, %145, %cst_53 {dimension_numbers = #tpu.dot_dimension_numbers<[1], [0], [0], [1], [0, 0, 1, 1], [], []>} : vector<24x24xf32>, vector<24x8xf32>, vector<24x8xf32> -> vector<24x8xf32>
    %160 = vector.extract_strided_slice %36 {offsets = [24, 24], sizes = [24, 8], strides = [1, 1]} : vector<48x96xf32> to vector<24x8xf32>
    %161 = vector.extract_strided_slice %36 {offsets = [24, 56], sizes = [24, 8], strides = [1, 1]} : vector<48x96xf32> to vector<24x8xf32>
    %162 = vector.extract_strided_slice %36 {offsets = [24, 88], sizes = [24, 8], strides = [1, 1]} : vector<48x96xf32> to vector<24x8xf32>
    %cst_54 = arith.constant dense<0.000000e+00> : vector<24x24xf32>
    %163 = tpu.matmul %160, %161, %cst_54 {dimension_numbers = #tpu.dot_dimension_numbers<[1], [1], [0], [0], [0, 0, 1, 0], [], []>} : vector<24x8xf32>, vector<24x8xf32>, vector<24x24xf32> -> vector<24x24xf32>
    %cst_55 = arith.constant -1.000000e+30 : f32
    %164 = vector.broadcast %cst_55 : f32 to vector<24x24xf32>
    %165 = arith.select %39, %163, %164 : vector<24x24xi1>, vector<24x24xf32>
    %cst_56 = arith.constant dense<0xFF800000> : vector<24xf32>
    %166 = vector.multi_reduction <maximumf>, %165, %cst_56 [1] : vector<24x24xf32> to vector<24xf32>
    %167 = vector.shape_cast %166 : vector<24xf32> to vector<24x1xf32>
    %168 = vector.broadcast %167 : vector<24x1xf32> to vector<24x24xf32>
    %169 = arith.subf %165, %168 : vector<24x24xf32>
    %170 = math.exp %169 : vector<24x24xf32>
    %cst_57 = arith.constant dense<0.000000e+00> : vector<24xf32>
    %171 = vector.multi_reduction <add>, %170, %cst_57 [1] : vector<24x24xf32> to vector<24xf32>
    %172 = vector.shape_cast %171 : vector<24xf32> to vector<24x1xf32>
    %173 = tpu.reciprocal %172 {approx = true} : vector<24x1xf32> -> vector<24x1xf32>
    %174 = vector.broadcast %173 : vector<24x1xf32> to vector<24x24xf32>
    %175 = arith.mulf %170, %174 : vector<24x24xf32>
    %cst_58 = arith.constant dense<0.000000e+00> : vector<24x8xf32>
    %176 = tpu.matmul %175, %162, %cst_58 {dimension_numbers = #tpu.dot_dimension_numbers<[1], [0], [0], [1], [0, 0, 1, 1], [], []>} : vector<24x24xf32>, vector<24x8xf32>, vector<24x8xf32> -> vector<24x8xf32>
    %177 = tpu.concatenate %125, %142, %159, %176 in 1 : vector<24x8xf32>, vector<24x8xf32>, vector<24x8xf32>, vector<24x8xf32> -> vector<24x32xf32>
    %178 = tpu.concatenate %108, %177 in 0 : vector<24x32xf32>, vector<24x32xf32> -> vector<48x32xf32>
    %c0_59 = arith.constant 0 : index
    %c0_60 = arith.constant 0 : index
    %c0_61 = arith.constant 0 : index
    %179 = vector.load %arg8[%c0_59, %c0_60, %c0_61] : memref<1x32x32xf32, #tpu.memory_space<vmem>>, vector<1x32x32xf32>
    %180 = vector.shape_cast %179 : vector<1x32x32xf32> to vector<32x32xf32>
    %cst_62 = arith.constant dense<0.000000e+00> : vector<48x32xf32>
    %181 = tpu.matmul %178, %180, %cst_62 {dimension_numbers = #tpu.dot_dimension_numbers<[1], [0], [0], [1], [0, 0, 1, 1], [], []>} : vector<48x32xf32>, vector<32x32xf32>, vector<48x32xf32> -> vector<48x32xf32>
    %182 = arith.addf %3, %181 : vector<48x32xf32>
    %c0_63 = arith.constant 0 : index
    %c0_64 = arith.constant 0 : index
    %c0_65 = arith.constant 0 : index
    %183 = vector.load %arg9[%c0_63, %c0_64, %c0_65] : memref<1x1x32xf32, #tpu.memory_space<vmem>>, vector<1x1x32xf32>
    %184 = vector.shape_cast %183 : vector<1x1x32xf32> to vector<1x32xf32>
    %185 = vector.broadcast %184 : vector<1x32xf32> to vector<48x32xf32>
    %186 = arith.addf %182, %185 : vector<48x32xf32>
    %c0_66 = arith.constant 0 : index
    %c0_67 = arith.constant 0 : index
    %c0_68 = arith.constant 0 : index
    %187 = vector.load %arg10[%c0_66, %c0_67, %c0_68] : memref<1x1x32xf32, #tpu.memory_space<vmem>>, vector<1x1x32xf32>
    %188 = vector.shape_cast %187 : vector<1x1x32xf32> to vector<1x32xf32>
    %c0_69 = arith.constant 0 : index
    %c0_70 = arith.constant 0 : index
    %c0_71 = arith.constant 0 : index
    %189 = vector.load %arg11[%c0_69, %c0_70, %c0_71] : memref<1x1x32xf32, #tpu.memory_space<vmem>>, vector<1x1x32xf32>
    %190 = vector.shape_cast %189 : vector<1x1x32xf32> to vector<1x32xf32>
    %cst_72 = arith.constant dense<0.000000e+00> : vector<48xf32>
    %191 = vector.multi_reduction <add>, %186, %cst_72 [1] : vector<48x32xf32> to vector<48xf32>
    %192 = vector.shape_cast %191 : vector<48xf32> to vector<48x1xf32>
    %cst_73 = arith.constant 3.200000e+01 : f32
    %193 = vector.broadcast %cst_73 : f32 to vector<48x1xf32>
    %194 = arith.divf %192, %193 : vector<48x1xf32>
    %195 = vector.broadcast %194 : vector<48x1xf32> to vector<48x32xf32>
    %196 = arith.subf %186, %195 : vector<48x32xf32>
    %197 = arith.mulf %196, %196 : vector<48x32xf32>
    %cst_74 = arith.constant dense<0.000000e+00> : vector<48xf32>
    %198 = vector.multi_reduction <add>, %197, %cst_74 [1] : vector<48x32xf32> to vector<48xf32>
    %199 = vector.shape_cast %198 : vector<48xf32> to vector<48x1xf32>
    %cst_75 = arith.constant 3.200000e+01 : f32
    %200 = vector.broadcast %cst_75 : f32 to vector<48x1xf32>
    %201 = arith.divf %199, %200 : vector<48x1xf32>
    %202 = vector.broadcast %194 : vector<48x1xf32> to vector<48x32xf32>
    %203 = arith.subf %186, %202 : vector<48x32xf32>
    %cst_76 = arith.constant 9.99999974E-6 : f32
    %204 = vector.broadcast %cst_76 : f32 to vector<48x1xf32>
    %205 = arith.addf %201, %204 : vector<48x1xf32>
    %206 = math.rsqrt %205 : vector<48x1xf32>
    %207 = vector.broadcast %206 : vector<48x1xf32> to vector<48x32xf32>
    %208 = arith.mulf %203, %207 : vector<48x32xf32>
    %209 = vector.broadcast %188 : vector<1x32xf32> to vector<48x32xf32>
    %210 = arith.mulf %208, %209 : vector<48x32xf32>
    %211 = vector.broadcast %190 : vector<1x32xf32> to vector<48x32xf32>
    %212 = arith.addf %210, %211 : vector<48x32xf32>
    %c0_77 = arith.constant 0 : index
    %c0_78 = arith.constant 0 : index
    %c0_79 = arith.constant 0 : index
    %213 = vector.load %arg12[%c0_77, %c0_78, %c0_79] : memref<1x32x128xf32, #tpu.memory_space<vmem>>, vector<1x32x128xf32>
    %214 = vector.shape_cast %213 : vector<1x32x128xf32> to vector<32x128xf32>
    %cst_80 = arith.constant dense<0.000000e+00> : vector<48x128xf32>
    %215 = tpu.matmul %212, %214, %cst_80 {dimension_numbers = #tpu.dot_dimension_numbers<[1], [0], [0], [1], [0, 0, 1, 1], [], []>} : vector<48x32xf32>, vector<32x128xf32>, vector<48x128xf32> -> vector<48x128xf32>
    %c0_81 = arith.constant 0 : index
    %c0_82 = arith.constant 0 : index
    %c0_83 = arith.constant 0 : index
    %216 = vector.load %arg13[%c0_81, %c0_82, %c0_83] : memref<1x1x128xf32, #tpu.memory_space<vmem>>, vector<1x1x128xf32>
    %217 = vector.shape_cast %216 : vector<1x1x128xf32> to vector<1x128xf32>
    %218 = vector.broadcast %217 : vector<1x128xf32> to vector<48x128xf32>
    %219 = arith.addf %215, %218 : vector<48x128xf32>
    %cst_84 = arith.constant 5.000000e-01 : f32
    %220 = vector.broadcast %cst_84 : f32 to vector<48x128xf32>
    %221 = arith.mulf %220, %219 : vector<48x128xf32>
    %cst_85 = arith.constant 0.707106769 : f32
    %222 = vector.broadcast %cst_85 : f32 to vector<48x128xf32>
    %223 = arith.mulf %219, %222 : vector<48x128xf32>
    %224 = math.absf %223 : vector<48x128xf32>
    %cst_86 = arith.constant 0.327591091 : f32
    %225 = vector.broadcast %cst_86 : f32 to vector<48x128xf32>
    %226 = arith.mulf %225, %224 : vector<48x128xf32>
    %cst_87 = arith.constant 1.000000e+00 : f32
    %227 = vector.broadcast %cst_87 : f32 to vector<48x128xf32>
    %228 = arith.addf %227, %226 : vector<48x128xf32>
    %cst_88 = arith.constant 1.000000e+00 : f32
    %229 = vector.broadcast %cst_88 : f32 to vector<48x128xf32>
    %230 = arith.divf %229, %228 : vector<48x128xf32>
    %cst_89 = arith.constant 1.06140542 : f32
    %231 = vector.broadcast %cst_89 : f32 to vector<48x128xf32>
    %232 = arith.mulf %231, %230 : vector<48x128xf32>
    %cst_90 = arith.constant -1.45315206 : f32
    %233 = vector.broadcast %cst_90 : f32 to vector<48x128xf32>
    %234 = arith.addf %232, %233 : vector<48x128xf32>
    %235 = arith.mulf %234, %230 : vector<48x128xf32>
    %cst_91 = arith.constant 1.42141378 : f32
    %236 = vector.broadcast %cst_91 : f32 to vector<48x128xf32>
    %237 = arith.addf %235, %236 : vector<48x128xf32>
    %238 = arith.mulf %237, %230 : vector<48x128xf32>
    %cst_92 = arith.constant -0.284496725 : f32
    %239 = vector.broadcast %cst_92 : f32 to vector<48x128xf32>
    %240 = arith.addf %238, %239 : vector<48x128xf32>
    %241 = arith.mulf %240, %230 : vector<48x128xf32>
    %cst_93 = arith.constant 0.254829586 : f32
    %242 = vector.broadcast %cst_93 : f32 to vector<48x128xf32>
    %243 = arith.addf %241, %242 : vector<48x128xf32>
    %244 = arith.mulf %243, %230 : vector<48x128xf32>
    %cst_94 = arith.constant 0.000000e+00 : f32
    %245 = vector.broadcast %cst_94 : f32 to vector<48x128xf32>
    %246 = arith.subf %245, %224 : vector<48x128xf32>
    %247 = arith.mulf %246, %224 : vector<48x128xf32>
    %248 = math.exp %247 : vector<48x128xf32>
    %249 = arith.mulf %244, %248 : vector<48x128xf32>
    %cst_95 = arith.constant 1.000000e+00 : f32
    %250 = vector.broadcast %cst_95 : f32 to vector<48x128xf32>
    %251 = arith.subf %250, %249 : vector<48x128xf32>
    %cst_96 = arith.constant 0.000000e+00 : f32
    %252 = vector.broadcast %cst_96 : f32 to vector<48x128xf32>
    %253 = arith.cmpf olt, %223, %252 : vector<48x128xf32>
    %cst_97 = arith.constant 0.000000e+00 : f32
    %254 = vector.broadcast %cst_97 : f32 to vector<48x128xf32>
    %255 = arith.subf %254, %251 : vector<48x128xf32>
    %256 = arith.select %253, %255, %251 : vector<48x128xi1>, vector<48x128xf32>
    %cst_98 = arith.constant 1.000000e+00 : f32
    %257 = vector.broadcast %cst_98 : f32 to vector<48x128xf32>
    %258 = arith.addf %257, %256 : vector<48x128xf32>
    %259 = arith.mulf %221, %258 : vector<48x128xf32>
    %c0_99 = arith.constant 0 : index
    %c0_100 = arith.constant 0 : index
    %c0_101 = arith.constant 0 : index
    %260 = vector.load %arg14[%c0_99, %c0_100, %c0_101] : memref<1x128x32xf32, #tpu.memory_space<vmem>>, vector<1x128x32xf32>
    %261 = vector.shape_cast %260 : vector<1x128x32xf32> to vector<128x32xf32>
    %cst_102 = arith.constant dense<0.000000e+00> : vector<48x32xf32>
    %262 = tpu.matmul %259, %261, %cst_102 {dimension_numbers = #tpu.dot_dimension_numbers<[1], [0], [0], [1], [0, 0, 1, 1], [], []>} : vector<48x128xf32>, vector<128x32xf32>, vector<48x32xf32> -> vector<48x32xf32>
    %c0_103 = arith.constant 0 : index
    %c0_104 = arith.constant 0 : index
    %c0_105 = arith.constant 0 : index
    %263 = vector.load %arg15[%c0_103, %c0_104, %c0_105] : memref<1x1x32xf32, #tpu.memory_space<vmem>>, vector<1x1x32xf32>
    %264 = vector.shape_cast %263 : vector<1x1x32xf32> to vector<1x32xf32>
    %265 = vector.broadcast %264 : vector<1x32xf32> to vector<48x32xf32>
    %266 = arith.addf %262, %265 : vector<48x32xf32>
    %267 = arith.addf %186, %266 : vector<48x32xf32>
    %c0_106 = arith.constant 0 : index
    %c0_107 = arith.constant 0 : index
    %268 = vector.load %arg19[%c0_106, %c0_107] : memref<48x32xf32, #tpu.memory_space<vmem>>, vector<48x32xf32>
    tpu.vector_store %arg19[%c0_106, %c0_107], %267 {strides = array<i32>} : memref<48x32xf32, #tpu.memory_space<vmem>>, vector<48x32xf32>,
    %c1_i32 = arith.constant 1 : i32
    %269 = arith.cmpi eq, %arg0, %c1_i32 : i32
    %270 = arith.extui %269 : i1 to i32
    %c0_i32_108 = arith.constant 0 : i32
    %271 = arith.cmpi ne, %270, %c0_i32_108 : i32
    scf.if %271 {
      %272 = vector.extract_strided_slice %267 {offsets = [0, 0], sizes = [1, 32], strides = [1, 1]} : vector<48x32xf32> to vector<1x32xf32>
      %273 = vector.extract_strided_slice %267 {offsets = [24, 0], sizes = [1, 32], strides = [1, 1]} : vector<48x32xf32> to vector<1x32xf32>
      %274 = tpu.concatenate %272, %273 in 0 : vector<1x32xf32>, vector<1x32xf32> -> vector<2x32xf32>
      %c0_109 = arith.constant 0 : index
      %c0_110 = arith.constant 0 : index
      %275 = vector.load %arg16[%c0_109, %c0_110] : memref<32x1xf32, #tpu.memory_space<vmem>>, vector<32x1xf32>
      %cst_111 = arith.constant dense<0.000000e+00> : vector<2x1xf32>
      %276 = tpu.matmul %274, %275, %cst_111 {dimension_numbers = #tpu.dot_dimension_numbers<[1], [0], [0], [1], [0, 0, 1, 1], [], []>} : vector<2x32xf32>, vector<32x1xf32>, vector<2x1xf32> -> vector<2x1xf32>
      %c0_112 = arith.constant 0 : index
      %c0_113 = arith.constant 0 : index
      %277 = vector.load %arg17[%c0_112, %c0_113] : memref<1x1xf32, #tpu.memory_space<vmem>>, vector<1x1xf32>
      %278 = vector.broadcast %277 : vector<1x1xf32> to vector<2x1xf32>
      %279 = arith.addf %276, %278 : vector<2x1xf32>
      %c0_114 = arith.constant 0 : index
      %c0_115 = arith.constant 0 : index
      %280 = vector.load %arg18[%c0_114, %c0_115] : memref<2x1xf32, #tpu.memory_space<vmem>>, vector<2x1xf32>
      tpu.vector_store %arg18[%c0_114, %c0_115], %279 {strides = array<i32>} : memref<2x1xf32, #tpu.memory_space<vmem>>, vector<2x1xf32>,
    } else {
    }
    return
  }
  func.func @transform_0(%arg0: i32) -> (i32, i32) {
    %c0_i32 = arith.constant 0 : i32
    %c0_i32_0 = arith.constant 0 : i32
    %c0_i32_1 = arith.constant 0 : i32
    return %c0_i32, %c0_i32_0 : i32, i32
  }
  func.func @transform_1(%arg0: i32) -> (i32, i32) {
    %c0_i32 = arith.constant 0 : i32
    %c0_i32_0 = arith.constant 0 : i32
    %c0_i32_1 = arith.constant 0 : i32
    return %c0_i32, %c0_i32_0 : i32, i32
  }
  func.func @transform_2(%arg0: i32) -> (i32, i32) {
    %c0_i32 = arith.constant 0 : i32
    %c0_i32_0 = arith.constant 0 : i32
    %c0_i32_1 = arith.constant 0 : i32
    return %c0_i32, %c0_i32_0 : i32, i32
  }
  func.func @transform_3(%arg0: i32) -> (i32, i32, i32) {
    %c0_i32 = arith.constant 0 : i32
    %c0_i32_0 = arith.constant 0 : i32
    %c0_i32_1 = arith.constant 0 : i32
    return %arg0, %c0_i32, %c0_i32_0 : i32, i32, i32
  }
  func.func @transform_4(%arg0: i32) -> (i32, i32, i32) {
    %c0_i32 = arith.constant 0 : i32
    %c0_i32_0 = arith.constant 0 : i32
    %c0_i32_1 = arith.constant 0 : i32
    return %arg0, %c0_i32, %c0_i32_0 : i32, i32, i32
  }
  func.func @transform_5(%arg0: i32) -> (i32, i32, i32) {
    %c0_i32 = arith.constant 0 : i32
    %c0_i32_0 = arith.constant 0 : i32
    %c0_i32_1 = arith.constant 0 : i32
    return %arg0, %c0_i32, %c0_i32_0 : i32, i32, i32
  }
  func.func @transform_6(%arg0: i32) -> (i32, i32, i32) {
    %c0_i32 = arith.constant 0 : i32
    %c0_i32_0 = arith.constant 0 : i32
    %c0_i32_1 = arith.constant 0 : i32
    return %arg0, %c0_i32, %c0_i32_0 : i32, i32, i32
  }
  func.func @transform_7(%arg0: i32) -> (i32, i32, i32) {
    %c0_i32 = arith.constant 0 : i32
    %c0_i32_0 = arith.constant 0 : i32
    %c0_i32_1 = arith.constant 0 : i32
    return %arg0, %c0_i32, %c0_i32_0 : i32, i32, i32
  }
  func.func @transform_8(%arg0: i32) -> (i32, i32, i32) {
    %c0_i32 = arith.constant 0 : i32
    %c0_i32_0 = arith.constant 0 : i32
    %c0_i32_1 = arith.constant 0 : i32
    return %arg0, %c0_i32, %c0_i32_0 : i32, i32, i32
  }
  func.func @transform_9(%arg0: i32) -> (i32, i32, i32) {
    %c0_i32 = arith.constant 0 : i32
    %c0_i32_0 = arith.constant 0 : i32
    %c0_i32_1 = arith.constant 0 : i32
    return %arg0, %c0_i32, %c0_i32_0 : i32, i32, i32
  }
  func.func @transform_10(%arg0: i32) -> (i32, i32, i32) {
    %c0_i32 = arith.constant 0 : i32
    %c0_i32_0 = arith.constant 0 : i32
    %c0_i32_1 = arith.constant 0 : i32
    return %arg0, %c0_i32, %c0_i32_0 : i32, i32, i32
  }
  func.func @transform_11(%arg0: i32) -> (i32, i32, i32) {
    %c0_i32 = arith.constant 0 : i32
    %c0_i32_0 = arith.constant 0 : i32
    %c0_i32_1 = arith.constant 0 : i32
    return %arg0, %c0_i32, %c0_i32_0 : i32, i32, i32
  }
  func.func @transform_12(%arg0: i32) -> (i32, i32, i32) {
    %c0_i32 = arith.constant 0 : i32
    %c0_i32_0 = arith.constant 0 : i32
    %c0_i32_1 = arith.constant 0 : i32
    return %arg0, %c0_i32, %c0_i32_0 : i32, i32, i32
  }
  func.func @transform_13(%arg0: i32) -> (i32, i32, i32) {
    %c0_i32 = arith.constant 0 : i32
    %c0_i32_0 = arith.constant 0 : i32
    %c0_i32_1 = arith.constant 0 : i32
    return %arg0, %c0_i32, %c0_i32_0 : i32, i32, i32
  }
  func.func @transform_14(%arg0: i32) -> (i32, i32, i32) {
    %c0_i32 = arith.constant 0 : i32
    %c0_i32_0 = arith.constant 0 : i32
    %c0_i32_1 = arith.constant 0 : i32
    return %arg0, %c0_i32, %c0_i32_0 : i32, i32, i32
  }
  func.func @transform_15(%arg0: i32) -> (i32, i32) {
    %c0_i32 = arith.constant 0 : i32
    %c0_i32_0 = arith.constant 0 : i32
    %c0_i32_1 = arith.constant 0 : i32
    return %c0_i32, %c0_i32_0 : i32, i32
  }
  func.func @transform_16(%arg0: i32) -> (i32, i32) {
    %c0_i32 = arith.constant 0 : i32
    %c0_i32_0 = arith.constant 0 : i32
    %c0_i32_1 = arith.constant 0 : i32
    return %c0_i32, %c0_i32_0 : i32, i32
  }
  func.func @transform_17(%arg0: i32) -> (i32, i32) {
    %c0_i32 = arith.constant 0 : i32
    %c0_i32_0 = arith.constant 0 : i32
    %c0_i32_1 = arith.constant 0 : i32
    return %c0_i32, %c0_i32_0 : i32, i32
  }
}

</mosaic_0001>

<llo_original>
// kernel: tpu_custom_call.1
$region0: #{tpu_custom_call.1}
  #allocation0 [shape = 'u32[]', space=smem, size = 0x4, offset = 0x4, fixed_abs, tag = 'smem constant byte address 0x4 - core index']
  #allocation1 [shape = 'u32[144,128]{1,0:T(1,128)}', space=vmem, size = 0x12000, scoped, tag = 'internal scratch']
  #allocation2 [shape = 'f32[48,32]{1,0:T(8,128)}', space=vmem, size = 0x6000, scoped, tag = 'scratch operand']
  #allocation3 [shape = 'f32[1,1]{1,0:T(1,128)S(1)}', space=vmem, size = 0x200, scoped, tag = 'scoped memory for tpu_custom_call.1']
  %s0 = inlined_call_operand.vmem [shape: f32[48,49], index: 0, kind: input, shape index: {}]
  %s1 = inlined_call_operand.vmem [shape: f32[49,32], index: 1, kind: input, shape index: {}]
  %s2 = inlined_call_operand.vmem [shape: f32[48,32], index: 2, kind: input, shape index: {}]
  %s3 = inlined_call_operand.vmem [shape: f32[2,1,32], index: 3, kind: input, shape index: {}]
  %s4 = inlined_call_operand.vmem [shape: f32[2,1,32], index: 4, kind: input, shape index: {}]
  %s5 = inlined_call_operand.vmem [shape: f32[2,32,96], index: 5, kind: input, shape index: {}]
  %s6 = inlined_call_operand.vmem [shape: f32[2,1,96], index: 6, kind: input, shape index: {}]
  %s7 = inlined_call_operand.vmem [shape: f32[2,32,32], index: 7, kind: input, shape index: {}]
  %s8 = inlined_call_operand.vmem [shape: f32[2,1,32], index: 8, kind: input, shape index: {}]
  %s9 = inlined_call_operand.vmem [shape: f32[2,1,32], index: 9, kind: input, shape index: {}]
  %s10 = inlined_call_operand.vmem [shape: f32[2,1,32], index: 10, kind: input, shape index: {}]
  %s11 = inlined_call_operand.vmem [shape: f32[2,32,128], index: 11, kind: input, shape index: {}]
  %s12 = inlined_call_operand.vmem [shape: f32[2,1,128], index: 12, kind: input, shape index: {}]
  %s13 = inlined_call_operand.vmem [shape: f32[2,128,32], index: 13, kind: input, shape index: {}]
  %s14 = inlined_call_operand.vmem [shape: f32[2,1,32], index: 14, kind: input, shape index: {}]
  %s15 = inlined_call_operand.vmem [shape: f32[32,1], index: 15, kind: input, shape index: {}]
  %s16 = inlined_call_operand.<no memory space> [shape: f32[1,1], index: 16, kind: input, shape index: {}]
  %s17 = inlined_call_operand.vmem [shape: f32[2,1], index: 17, kind: output, shape index: {}]
  %s18 = sld [smem:[#allocation0]]
  $region109: #{tpu_custom_call.1} parent=0
    _
  %s20 = ssub.s32 1, %s18
  %s21 = scalar_select 0, %s20, %s18
  %v22 = vstv %s16
  %23 = vst [vmem:[#allocation3] sm:$0x1] %v22
  loop: start=0, step=1, limit=4
  $region2: #{tpu_custom_call.1} parent=0 // loop_pre_header
    _
  $region3: #{tpu_custom_call.1} parent=0 // loop_header
    %s25 = sphi 0, %s29
    %p26 = scmp.ge.s32.totalorder %s25, 4
    %s33 = sphi 0, %s33
    %s35 = sphi 0, %s33
    %s36 = sphi 0, %s35
    %s50 = sphi 0, %s36
    %s54 = sphi 0, %s54
    %s56 = sphi 0, %s54
    %s57 = sphi 0, %s56
    %s71 = sphi 0, %s57
    %s75 = sphi 0, %s75
    %s77 = sphi 0, %s75
    %s78 = sphi 0, %s77
    %s92 = sphi 0, %s78
    %s98 = sphi 0, %s100
    %s101 = sphi 0, %s98
    %s102 = sphi 0, %s101
    %s118 = sphi 0, %s102
    %s124 = sphi 0, %s126
    %s127 = sphi 0, %s124
    %s128 = sphi 0, %s127
    %s144 = sphi 0, %s128
    %s150 = sphi 0, %s152
    %s153 = sphi 0, %s150
    %s154 = sphi 0, %s153
    %s170 = sphi 0, %s154
    %s176 = sphi 0, %s178
    %s179 = sphi 0, %s176
    %s180 = sphi 0, %s179
    %s196 = sphi 0, %s180
    %s202 = sphi 0, %s204
    %s205 = sphi 0, %s202
    %s206 = sphi 0, %s205
    %s222 = sphi 0, %s206
    %s228 = sphi 0, %s230
    %s231 = sphi 0, %s228
    %s232 = sphi 0, %s231
    %s248 = sphi 0, %s232
    %s254 = sphi 0, %s256
    %s257 = sphi 0, %s254
    %s258 = sphi 0, %s257
    %s274 = sphi 0, %s258
    %s280 = sphi 0, %s282
    %s283 = sphi 0, %s280
    %s284 = sphi 0, %s283
    %s300 = sphi 0, %s284
    %s306 = sphi 0, %s308
    %s309 = sphi 0, %s306
    %s310 = sphi 0, %s309
    %s326 = sphi 0, %s310
    %s332 = sphi 0, %s334
    %s335 = sphi 0, %s332
    %s336 = sphi 0, %s335
    %s352 = sphi 0, %s336
    %s358 = sphi 0, %s360
    %s361 = sphi 0, %s358
    %s362 = sphi 0, %s361
    %s378 = sphi 0, %s362
    %s384 = sphi 0, %s386
    %s387 = sphi 0, %s384
    %s388 = sphi 0, %s387
    %s404 = sphi 0, %s388
    %s408 = sphi 0, %s408
    %s410 = sphi 0, %s408
    %s411 = sphi 0, %s410
    %s425 = sphi 0, %s411
    %s429 = sphi 0, %s429
    %s431 = sphi 0, %s429
    %s432 = sphi 0, %s431
    %s446 = sphi 0, %s432
    %s450 = sphi 0, %s450
    %s452 = sphi 0, %s450
    %s453 = sphi 0, %s452
    %s467 = sphi 0, %s453
  $region4: #{tpu_custom_call.1} parent=0 // loop_header_branch
    %28 = sbr.rel (%p26) target = $region8
  $region5: #{tpu_custom_call.1} parent=0 // loop_body
    %s30 = ssub.s32 %s25, 1
    %s31 = ssub.s32 %s25, 2
    %s32 = sadd.s32 %s25, 1
    %s34 = sadd.s32 %s33, 1
    %p37 = scmp.eq.s32.totalorder %s25, 1
    %p38 = scmp.ne.s32.totalorder %s33, %s35
    %p39 = scmp.eq.s32.totalorder %s25, 0
    %p40 = por %p38, %p39
    %p41 = scmp.ne.s32.totalorder %s33, %s35
    %p42 = scmp.eq.s32.totalorder %s30, 1
    %p43 = por %p41, %p42
    %p44 = scmp.ne.s32.totalorder %s35, %s36
    %p45 = scmp.eq.s32.totalorder %s30, 0
    %p46 = por %p44, %p45
    %p47 = scmp.ne.s32.totalorder %s35, %s36
    %p48 = scmp.eq.s32.totalorder %s31, 1
    %p49 = por %p47, %p48
    %p51 = scmp.ne.s32.totalorder %s36, %s50
    %p52 = scmp.eq.s32.totalorder %s31, 0
    %p53 = por %p51, %p52
    %s55 = sadd.s32 %s54, 1
    %p58 = scmp.eq.s32.totalorder %s25, 1
    %p59 = scmp.ne.s32.totalorder %s54, %s56
    %p60 = scmp.eq.s32.totalorder %s25, 0
    %p61 = por %p59, %p60
    %p62 = scmp.ne.s32.totalorder %s54, %s56
    %p63 = scmp.eq.s32.totalorder %s30, 1
    %p64 = por %p62, %p63
    %p65 = scmp.ne.s32.totalorder %s56, %s57
    %p66 = scmp.eq.s32.totalorder %s30, 0
    %p67 = por %p65, %p66
    %p68 = scmp.ne.s32.totalorder %s56, %s57
    %p69 = scmp.eq.s32.totalorder %s31, 1
    %p70 = por %p68, %p69
    %p72 = scmp.ne.s32.totalorder %s57, %s71
    %p73 = scmp.eq.s32.totalorder %s31, 0
    %p74 = por %p72, %p73
    %s76 = sadd.s32 %s75, 1
    %p79 = scmp.eq.s32.totalorder %s25, 1
    %p80 = scmp.ne.s32.totalorder %s75, %s77
    %p81 = scmp.eq.s32.totalorder %s25, 0
    %p82 = por %p80, %p81
    %p83 = scmp.ne.s32.totalorder %s75, %s77
    %p84 = scmp.eq.s32.totalorder %s30, 1
    %p85 = por %p83, %p84
    %p86 = scmp.ne.s32.totalorder %s77, %s78
    %p87 = scmp.eq.s32.totalorder %s30, 0
    %p88 = por %p86, %p87
    %p89 = scmp.ne.s32.totalorder %s77, %s78
    %p90 = scmp.eq.s32.totalorder %s31, 1
    %p91 = por %p89, %p90
    %p93 = scmp.ne.s32.totalorder %s78, %s92
    %p94 = scmp.eq.s32.totalorder %s31, 0
    %p95 = por %p93, %p94
    %s96 = ssub.s32 %s25, %s32
    %p97 = scmp.eq.s32.totalorder %s96, 0
    %s99 = sadd.s32 %s98, 1
    %s100 = scalar_select %p97, %s98, %s99
    %p103 = pneg %p97
    %p104 = scmp.eq.s32.totalorder %s25, 1
    %p105 = por %p103, %p104
    %p106 = scmp.ne.s32.totalorder %s98, %s101
    %p107 = scmp.eq.s32.totalorder %s25, 0
    %p108 = por %p106, %p107
    %p109 = scmp.ne.s32.totalorder %s98, %s101
    %p110 = scmp.eq.s32.totalorder %s30, 1
    %p111 = por %p109, %p110
    %p112 = scmp.ne.s32.totalorder %s101, %s102
    %p113 = scmp.eq.s32.totalorder %s30, 0
    %p114 = por %p112, %p113
    %p115 = scmp.ne.s32.totalorder %s101, %s102
    %p116 = scmp.eq.s32.totalorder %s31, 1
    %p117 = por %p115, %p116
    %p119 = scmp.ne.s32.totalorder %s102, %s118
    %p120 = scmp.eq.s32.totalorder %s31, 0
    %p121 = por %p119, %p120
    %s122 = ssub.s32 %s25, %s32
    %p123 = scmp.eq.s32.totalorder %s122, 0
    %s125 = sadd.s32 %s124, 1
    %s126 = scalar_select %p123, %s124, %s125
    %p129 = pneg %p123
    %p130 = scmp.eq.s32.totalorder %s25, 1
    %p131 = por %p129, %p130
    %p132 = scmp.ne.s32.totalorder %s124, %s127
    %p133 = scmp.eq.s32.totalorder %s25, 0
    %p134 = por %p132, %p133
    %p135 = scmp.ne.s32.totalorder %s124, %s127
    %p136 = scmp.eq.s32.totalorder %s30, 1
    %p137 = por %p135, %p136
    %p138 = scmp.ne.s32.totalorder %s127, %s128
    %p139 = scmp.eq.s32.totalorder %s30, 0
    %p140 = por %p138, %p139
    %p141 = scmp.ne.s32.totalorder %s127, %s128
    %p142 = scmp.eq.s32.totalorder %s31, 1
    %p143 = por %p141, %p142
    %p145 = scmp.ne.s32.totalorder %s128, %s144
    %p146 = scmp.eq.s32.totalorder %s31, 0
    %p147 = por %p145, %p146
    %s148 = ssub.s32 %s25, %s32
    %p149 = scmp.eq.s32.totalorder %s148, 0
    %s151 = sadd.s32 %s150, 1
    %s152 = scalar_select %p149, %s150, %s151
    %p155 = pneg %p149
    %p156 = scmp.eq.s32.totalorder %s25, 1
    %p157 = por %p155, %p156
    %p158 = scmp.ne.s32.totalorder %s150, %s153
    %p159 = scmp.eq.s32.totalorder %s25, 0
    %p160 = por %p158, %p159
    %p161 = scmp.ne.s32.totalorder %s150, %s153
    %p162 = scmp.eq.s32.totalorder %s30, 1
    %p163 = por %p161, %p162
    %p164 = scmp.ne.s32.totalorder %s153, %s154
    %p165 = scmp.eq.s32.totalorder %s30, 0
    %p166 = por %p164, %p165
    %p167 = scmp.ne.s32.totalorder %s153, %s154
    %p168 = scmp.eq.s32.totalorder %s31, 1
    %p169 = por %p167, %p168
    %p171 = scmp.ne.s32.totalorder %s154, %s170
    %p172 = scmp.eq.s32.totalorder %s31, 0
    %p173 = por %p171, %p172
    %s174 = ssub.s32 %s25, %s32
    %p175 = scmp.eq.s32.totalorder %s174, 0
    %s177 = sadd.s32 %s176, 1
    %s178 = scalar_select %p175, %s176, %s177
    %p181 = pneg %p175
    %p182 = scmp.eq.s32.totalorder %s25, 1
    %p183 = por %p181, %p182
    %p184 = scmp.ne.s32.totalorder %s176, %s179
    %p185 = scmp.eq.s32.totalorder %s25, 0
    %p186 = por %p184, %p185
    %p187 = scmp.ne.s32.totalorder %s176, %s179
    %p188 = scmp.eq.s32.totalorder %s30, 1
    %p189 = por %p187, %p188
    %p190 = scmp.ne.s32.totalorder %s179, %s180
    %p191 = scmp.eq.s32.totalorder %s30, 0
    %p192 = por %p190, %p191
    %p193 = scmp.ne.s32.totalorder %s179, %s180
    %p194 = scmp.eq.s32.totalorder %s31, 1
    %p195 = por %p193, %p194
    %p197 = scmp.ne.s32.totalorder %s180, %s196
    %p198 = scmp.eq.s32.totalorder %s31, 0
    %p199 = por %p197, %p198
    %s200 = ssub.s32 %s25, %s32
    %p201 = scmp.eq.s32.totalorder %s200, 0
    %s203 = sadd.s32 %s202, 1
    %s204 = scalar_select %p201, %s202, %s203
    %p207 = pneg %p201
    %p208 = scmp.eq.s32.totalorder %s25, 1
    %p209 = por %p207, %p208
    %p210 = scmp.ne.s32.totalorder %s202, %s205
    %p211 = scmp.eq.s32.totalorder %s25, 0
    %p212 = por %p210, %p211
    %p213 = scmp.ne.s32.totalorder %s202, %s205
    %p214 = scmp.eq.s32.totalorder %s30, 1
    %p215 = por %p213, %p214
    %p216 = scmp.ne.s32.totalorder %s205, %s206
    %p217 = scmp.eq.s32.totalorder %s30, 0
    %p218 = por %p216, %p217
    %p219 = scmp.ne.s32.totalorder %s205, %s206
    %p220 = scmp.eq.s32.totalorder %s31, 1
    %p221 = por %p219, %p220
    %p223 = scmp.ne.s32.totalorder %s206, %s222
    %p224 = scmp.eq.s32.totalorder %s31, 0
    %p225 = por %p223, %p224
    %s226 = ssub.s32 %s25, %s32
    %p227 = scmp.eq.s32.totalorder %s226, 0
    %s229 = sadd.s32 %s228, 1
    %s230 = scalar_select %p227, %s228, %s229
    %p233 = pneg %p227
    %p234 = scmp.eq.s32.totalorder %s25, 1
    %p235 = por %p233, %p234
    %p236 = scmp.ne.s32.totalorder %s228, %s231
    %p237 = scmp.eq.s32.totalorder %s25, 0
    %p238 = por %p236, %p237
    %p239 = scmp.ne.s32.totalorder %s228, %s231
    %p240 = scmp.eq.s32.totalorder %s30, 1
    %p241 = por %p239, %p240
    %p242 = scmp.ne.s32.totalorder %s231, %s232
    %p243 = scmp.eq.s32.totalorder %s30, 0
    %p244 = por %p242, %p243
    %p245 = scmp.ne.s32.totalorder %s231, %s232
    %p246 = scmp.eq.s32.totalorder %s31, 1
    %p247 = por %p245, %p246
    %p249 = scmp.ne.s32.totalorder %s232, %s248
    %p250 = scmp.eq.s32.totalorder %s31, 0
    %p251 = por %p249, %p250
    %s252 = ssub.s32 %s25, %s32
    %p253 = scmp.eq.s32.totalorder %s252, 0
    %s255 = sadd.s32 %s254, 1
    %s256 = scalar_select %p253, %s254, %s255
    %p259 = pneg %p253
    %p260 = scmp.eq.s32.totalorder %s25, 1
    %p261 = por %p259, %p260
    %p262 = scmp.ne.s32.totalorder %s254, %s257
    %p263 = scmp.eq.s32.totalorder %s25, 0
    %p264 = por %p262, %p263
    %p265 = scmp.ne.s32.totalorder %s254, %s257
    %p266 = scmp.eq.s32.totalorder %s30, 1
    %p267 = por %p265, %p266
    %p268 = scmp.ne.s32.totalorder %s257, %s258
    %p269 = scmp.eq.s32.totalorder %s30, 0
    %p270 = por %p268, %p269
    %p271 = scmp.ne.s32.totalorder %s257, %s258
    %p272 = scmp.eq.s32.totalorder %s31, 1
    %p273 = por %p271, %p272
    %p275 = scmp.ne.s32.totalorder %s258, %s274
    %p276 = scmp.eq.s32.totalorder %s31, 0
    %p277 = por %p275, %p276
    %s278 = ssub.s32 %s25, %s32
    %p279 = scmp.eq.s32.totalorder %s278, 0
    %s281 = sadd.s32 %s280, 1
    %s282 = scalar_select %p279, %s280, %s281
    %p285 = pneg %p279
    %p286 = scmp.eq.s32.totalorder %s25, 1
    %p287 = por %p285, %p286
    %p288 = scmp.ne.s32.totalorder %s280, %s283
    %p289 = scmp.eq.s32.totalorder %s25, 0
    %p290 = por %p288, %p289
    %p291 = scmp.ne.s32.totalorder %s280, %s283
    %p292 = scmp.eq.s32.totalorder %s30, 1
    %p293 = por %p291, %p292
    %p294 = scmp.ne.s32.totalorder %s283, %s284
    %p295 = scmp.eq.s32.totalorder %s30, 0
    %p296 = por %p294, %p295
    %p297 = scmp.ne.s32.totalorder %s283, %s284
    %p298 = scmp.eq.s32.totalorder %s31, 1
    %p299 = por %p297, %p298
    %p301 = scmp.ne.s32.totalorder %s284, %s300
    %p302 = scmp.eq.s32.totalorder %s31, 0
    %p303 = por %p301, %p302
    %s304 = ssub.s32 %s25, %s32
    %p305 = scmp.eq.s32.totalorder %s304, 0
    %s307 = sadd.s32 %s306, 1
    %s308 = scalar_select %p305, %s306, %s307
    %p311 = pneg %p305
    %p312 = scmp.eq.s32.totalorder %s25, 1
    %p313 = por %p311, %p312
    %p314 = scmp.ne.s32.totalorder %s306, %s309
    %p315 = scmp.eq.s32.totalorder %s25, 0
    %p316 = por %p314, %p315
    %p317 = scmp.ne.s32.totalorder %s306, %s309
    %p318 = scmp.eq.s32.totalorder %s30, 1
    %p319 = por %p317, %p318
    %p320 = scmp.ne.s32.totalorder %s309, %s310
    %p321 = scmp.eq.s32.totalorder %s30, 0
    %p322 = por %p320, %p321
    %p323 = scmp.ne.s32.totalorder %s309, %s310
    %p324 = scmp.eq.s32.totalorder %s31, 1
    %p325 = por %p323, %p324
    %p327 = scmp.ne.s32.totalorder %s310, %s326
    %p328 = scmp.eq.s32.totalorder %s31, 0
    %p329 = por %p327, %p328
    %s330 = ssub.s32 %s25, %s32
    %p331 = scmp.eq.s32.totalorder %s330, 0
    %s333 = sadd.s32 %s332, 1
    %s334 = scalar_select %p331, %s332, %s333
    %p337 = pneg %p331
    %p338 = scmp.eq.s32.totalorder %s25, 1
    %p339 = por %p337, %p338
    %p340 = scmp.ne.s32.totalorder %s332, %s335
    %p341 = scmp.eq.s32.totalorder %s25, 0
    %p342 = por %p340, %p341
    %p343 = scmp.ne.s32.totalorder %s332, %s335
    %p344 = scmp.eq.s32.totalorder %s30, 1
    %p345 = por %p343, %p344
    %p346 = scmp.ne.s32.totalorder %s335, %s336
    %p347 = scmp.eq.s32.totalorder %s30, 0
    %p348 = por %p346, %p347
    %p349 = scmp.ne.s32.totalorder %s335, %s336
    %p350 = scmp.eq.s32.totalorder %s31, 1
    %p351 = por %p349, %p350
    %p353 = scmp.ne.s32.totalorder %s336, %s352
    %p354 = scmp.eq.s32.totalorder %s31, 0
    %p355 = por %p353, %p354
    %s356 = ssub.s32 %s25, %s32
    %p357 = scmp.eq.s32.totalorder %s356, 0
    %s359 = sadd.s32 %s358, 1
    %s360 = scalar_select %p357, %s358, %s359
    %p363 = pneg %p357
    %p364 = scmp.eq.s32.totalorder %s25, 1
    %p365 = por %p363, %p364
    %p366 = scmp.ne.s32.totalorder %s358, %s361
    %p367 = scmp.eq.s32.totalorder %s25, 0
    %p368 = por %p366, %p367
    %p369 = scmp.ne.s32.totalorder %s358, %s361
    %p370 = scmp.eq.s32.totalorder %s30, 1
    %p371 = por %p369, %p370
    %p372 = scmp.ne.s32.totalorder %s361, %s362
    %p373 = scmp.eq.s32.totalorder %s30, 0
    %p374 = por %p372, %p373
    %p375 = scmp.ne.s32.totalorder %s361, %s362
    %p376 = scmp.eq.s32.totalorder %s31, 1
    %p377 = por %p375, %p376
    %p379 = scmp.ne.s32.totalorder %s362, %s378
    %p380 = scmp.eq.s32.totalorder %s31, 0
    %p381 = por %p379, %p380
    %s382 = ssub.s32 %s25, %s32
    %p383 = scmp.eq.s32.totalorder %s382, 0
    %s385 = sadd.s32 %s384, 1
    %s386 = scalar_select %p383, %s384, %s385
    %p389 = pneg %p383
    %p390 = scmp.eq.s32.totalorder %s25, 1
    %p391 = por %p389, %p390
    %p392 = scmp.ne.s32.totalorder %s384, %s387
    %p393 = scmp.eq.s32.totalorder %s25, 0
    %p394 = por %p392, %p393
    %p395 = scmp.ne.s32.totalorder %s384, %s387
    %p396 = scmp.eq.s32.totalorder %s30, 1
    %p397 = por %p395, %p396
    %p398 = scmp.ne.s32.totalorder %s387, %s388
    %p399 = scmp.eq.s32.totalorder %s30, 0
    %p400 = por %p398, %p399
    %p401 = scmp.ne.s32.totalorder %s387, %s388
    %p402 = scmp.eq.s32.totalorder %s31, 1
    %p403 = por %p401, %p402
    %p405 = scmp.ne.s32.totalorder %s388, %s404
    %p406 = scmp.eq.s32.totalorder %s31, 0
    %p407 = por %p405, %p406
    %s409 = sadd.s32 %s408, 1
    %p412 = scmp.eq.s32.totalorder %s25, 1
    %p413 = scmp.ne.s32.totalorder %s408, %s410
    %p414 = scmp.eq.s32.totalorder %s25, 0
    %p415 = por %p413, %p414
    %p416 = scmp.ne.s32.totalorder %s408, %s410
    %p417 = scmp.eq.s32.totalorder %s30, 1
    %p418 = por %p416, %p417
    %p419 = scmp.ne.s32.totalorder %s410, %s411
    %p420 = scmp.eq.s32.totalorder %s30, 0
    %p421 = por %p419, %p420
    %p422 = scmp.ne.s32.totalorder %s410, %s411
    %p423 = scmp.eq.s32.totalorder %s31, 1
    %p424 = por %p422, %p423
    %p426 = scmp.ne.s32.totalorder %s411, %s425
    %p427 = scmp.eq.s32.totalorder %s31, 0
    %p428 = por %p426, %p427
    %s430 = sadd.s32 %s429, 1
    %p433 = scmp.eq.s32.totalorder %s25, 1
    %p434 = scmp.ne.s32.totalorder %s429, %s431
    %p435 = scmp.eq.s32.totalorder %s25, 0
    %p436 = por %p434, %p435
    %p437 = scmp.ne.s32.totalorder %s429, %s431
    %p438 = scmp.eq.s32.totalorder %s30, 1
    %p439 = por %p437, %p438
    %p440 = scmp.ne.s32.totalorder %s431, %s432
    %p441 = scmp.eq.s32.totalorder %s30, 0
    %p442 = por %p440, %p441
    %p443 = scmp.ne.s32.totalorder %s431, %s432
    %p444 = scmp.eq.s32.totalorder %s31, 1
    %p445 = por %p443, %p444
    %p447 = scmp.ne.s32.totalorder %s432, %s446
    %p448 = scmp.eq.s32.totalorder %s31, 0
    %p449 = por %p447, %p448
    %s451 = sadd.s32 %s450, 1
    %p454 = scmp.eq.s32.totalorder %s25, 1
    %p455 = scmp.ne.s32.totalorder %s450, %s452
    %p456 = scmp.eq.s32.totalorder %s25, 0
    %p457 = por %p455, %p456
    %p458 = scmp.ne.s32.totalorder %s450, %s452
    %p459 = scmp.eq.s32.totalorder %s30, 1
    %p460 = por %p458, %p459
    %p461 = scmp.ne.s32.totalorder %s452, %s453
    %p462 = scmp.eq.s32.totalorder %s30, 0
    %p463 = por %p461, %p462
    %p464 = scmp.ne.s32.totalorder %s452, %s453
    %p465 = scmp.eq.s32.totalorder %s31, 1
    %p466 = por %p464, %p465
    %p468 = scmp.ne.s32.totalorder %s453, %s467
    %p469 = scmp.eq.s32.totalorder %s31, 0
    %p470 = por %p468, %p469
    %p471 = scmp.le.s32.totalorder 1, %s25
    %p472 = scmp.lt.s32.totalorder %s25, 3
    %p473 = pnand %p471, %p472
    %p474 = pneg %p473
    // Predicated region
    $region9: #{tpu_custom_call.1} parent=5 // pred_check
      _
    $region10: #{tpu_custom_call.1} parent=5 // pred_check_branch
      %476 = sbr.rel (%p473) target = $region12
    $region11: #{tpu_custom_call.1} parent=5 // pred_region
      %s477 = ssub.s32 %s25, 1
      // Predicated region
      $region13: #{tpu_custom_call.1} parent=11 // pred_check
        %p478 = pneg %p46
      $region14: #{tpu_custom_call.1} parent=11 // pred_check_branch
        %480 = sbr.rel (%p478) target = $region16
      $region15: #{tpu_custom_call.1} parent=11 // pred_region
        _
      $region16: #{tpu_custom_call.1} parent=11 // pred_fallthru
        _
      // Predicated region
      $region17: #{tpu_custom_call.1} parent=11 // pred_check
        %p481 = pneg %p67
      $region18: #{tpu_custom_call.1} parent=11 // pred_check_branch
        %483 = sbr.rel (%p481) target = $region20
      $region19: #{tpu_custom_call.1} parent=11 // pred_region
        _
      $region20: #{tpu_custom_call.1} parent=11 // pred_fallthru
        _
      // Predicated region
      $region21: #{tpu_custom_call.1} parent=11 // pred_check
        %p484 = pneg %p88
      $region22: #{tpu_custom_call.1} parent=11 // pred_check_branch
        %486 = sbr.rel (%p484) target = $region24
      $region23: #{tpu_custom_call.1} parent=11 // pred_region
        _
      $region24: #{tpu_custom_call.1} parent=11 // pred_fallthru
        _
      // Predicated region
      $region25: #{tpu_custom_call.1} parent=11 // pred_check
        %p487 = pneg %p421
      $region26: #{tpu_custom_call.1} parent=11 // pred_check_branch
        %489 = sbr.rel (%p487) target = $region28
      $region27: #{tpu_custom_call.1} parent=11 // pred_region
        _
      $region28: #{tpu_custom_call.1} parent=11 // pred_fallthru
        _
      // Predicated region
      $region29: #{tpu_custom_call.1} parent=11 // pred_check
        %p490 = pneg %p442
      $region30: #{tpu_custom_call.1} parent=11 // pred_check_branch
        %492 = sbr.rel (%p490) target = $region32
      $region31: #{tpu_custom_call.1} parent=11 // pred_region
        _
      $region32: #{tpu_custom_call.1} parent=11 // pred_fallthru
        _
    $region12: #{tpu_custom_call.1} parent=5 // pred_fallthru
      _
    %p493 = scmp.lt.s32.totalorder %s25, 2
    // Predicated region
    $region33: #{tpu_custom_call.1} parent=5 // pred_check
      %p494 = pneg %p493
    $region34: #{tpu_custom_call.1} parent=5 // pred_check_branch
      %496 = sbr.rel (%p494) target = $region36
    $region35: #{tpu_custom_call.1} parent=5 // pred_region
      // Predicated region
      $region37: #{tpu_custom_call.1} parent=35 // pred_check
        %p497 = pneg %p108
      $region38: #{tpu_custom_call.1} parent=35 // pred_check_branch
        %499 = sbr.rel (%p497) target = $region40
      $region39: #{tpu_custom_call.1} parent=35 // pred_region
        %p500 = scmp.lt.s32.totalorder %s25, 1
        %s501 = scalar_select %p500, %s25, 1
        %s502 = scalar_lea.vmem %s3, %s501
      $region40: #{tpu_custom_call.1} parent=35 // pred_fallthru
        _
      // Predicated region
      $region41: #{tpu_custom_call.1} parent=35 // pred_check
        %p503 = pneg %p134
      $region42: #{tpu_custom_call.1} parent=35 // pred_check_branch
        %505 = sbr.rel (%p503) target = $region44
      $region43: #{tpu_custom_call.1} parent=35 // pred_region
        %p506 = scmp.lt.s32.totalorder %s25, 1
        %s507 = scalar_select %p506, %s25, 1
        %s508 = scalar_lea.vmem %s4, %s507
      $region44: #{tpu_custom_call.1} parent=35 // pred_fallthru
        _
      // Predicated region
      $region45: #{tpu_custom_call.1} parent=35 // pred_check
        %p509 = pneg %p160
      $region46: #{tpu_custom_call.1} parent=35 // pred_check_branch
        %511 = sbr.rel (%p509) target = $region48
      $region47: #{tpu_custom_call.1} parent=35 // pred_region
        %p512 = scmp.lt.s32.totalorder %s25, 1
        %s513 = scalar_select %p512, %s25, 1
        %s514 = smul.addr %s513, 4
        %s515 = smul.addr %s514, 8
        %s516 = scalar_lea.vmem %s5, %s515
      $region48: #{tpu_custom_call.1} parent=35 // pred_fallthru
        _
      // Predicated region
      $region49: #{tpu_custom_call.1} parent=35 // pred_check
        %p517 = pneg %p186
      $region50: #{tpu_custom_call.1} parent=35 // pred_check_branch
        %519 = sbr.rel (%p517) target = $region52
      $region51: #{tpu_custom_call.1} parent=35 // pred_region
        %p520 = scmp.lt.s32.totalorder %s25, 1
        %s521 = scalar_select %p520, %s25, 1
        %s522 = scalar_lea.vmem %s6, %s521
      $region52: #{tpu_custom_call.1} parent=35 // pred_fallthru
        _
      // Predicated region
      $region53: #{tpu_custom_call.1} parent=35 // pred_check
        %p523 = pneg %p212
      $region54: #{tpu_custom_call.1} parent=35 // pred_check_branch
        %525 = sbr.rel (%p523) target = $region56
      $region55: #{tpu_custom_call.1} parent=35 // pred_region
        %p526 = scmp.lt.s32.totalorder %s25, 1
        %s527 = scalar_select %p526, %s25, 1
        %s528 = smul.addr %s527, 4
        %s529 = smul.addr %s528, 8
        %s530 = scalar_lea.vmem %s7, %s529
      $region56: #{tpu_custom_call.1} parent=35 // pred_fallthru
        _
      // Predicated region
      $region57: #{tpu_custom_call.1} parent=35 // pred_check
        %p531 = pneg %p238
      $region58: #{tpu_custom_call.1} parent=35 // pred_check_branch
        %533 = sbr.rel (%p531) target = $region60
      $region59: #{tpu_custom_call.1} parent=35 // pred_region
        %p534 = scmp.lt.s32.totalorder %s25, 1
        %s535 = scalar_select %p534, %s25, 1
        %s536 = scalar_lea.vmem %s8, %s535
      $region60: #{tpu_custom_call.1} parent=35 // pred_fallthru
        _
      // Predicated region
      $region61: #{tpu_custom_call.1} parent=35 // pred_check
        %p537 = pneg %p264
      $region62: #{tpu_custom_call.1} parent=35 // pred_check_branch
        %539 = sbr.rel (%p537) target = $region64
      $region63: #{tpu_custom_call.1} parent=35 // pred_region
        %p540 = scmp.lt.s32.totalorder %s25, 1
        %s541 = scalar_select %p540, %s25, 1
        %s542 = scalar_lea.vmem %s9, %s541
      $region64: #{tpu_custom_call.1} parent=35 // pred_fallthru
        _
      // Predicated region
      $region65: #{tpu_custom_call.1} parent=35 // pred_check
        %p543 = pneg %p290
      $region66: #{tpu_custom_call.1} parent=35 // pred_check_branch
        %545 = sbr.rel (%p543) target = $region68
      $region67: #{tpu_custom_call.1} parent=35 // pred_region
        %p546 = scmp.lt.s32.totalorder %s25, 1
        %s547 = scalar_select %p546, %s25, 1
        %s548 = scalar_lea.vmem %s10, %s547
      $region68: #{tpu_custom_call.1} parent=35 // pred_fallthru
        _
      // Predicated region
      $region69: #{tpu_custom_call.1} parent=35 // pred_check
        %p549 = pneg %p316
      $region70: #{tpu_custom_call.1} parent=35 // pred_check_branch
        %551 = sbr.rel (%p549) target = $region72
      $region71: #{tpu_custom_call.1} parent=35 // pred_region
        %p552 = scmp.lt.s32.totalorder %s25, 1
        %s553 = scalar_select %p552, %s25, 1
        %s554 = smul.addr %s553, 4
        %s555 = smul.addr %s554, 8
        %s556 = scalar_lea.vmem %s11, %s555
      $region72: #{tpu_custom_call.1} parent=35 // pred_fallthru
        _
      // Predicated region
      $region73: #{tpu_custom_call.1} parent=35 // pred_check
        %p557 = pneg %p342
      $region74: #{tpu_custom_call.1} parent=35 // pred_check_branch
        %559 = sbr.rel (%p557) target = $region76
      $region75: #{tpu_custom_call.1} parent=35 // pred_region
        %p560 = scmp.lt.s32.totalorder %s25, 1
        %s561 = scalar_select %p560, %s25, 1
        %s562 = scalar_lea.vmem %s12, %s561
      $region76: #{tpu_custom_call.1} parent=35 // pred_fallthru
        _
      // Predicated region
      $region77: #{tpu_custom_call.1} parent=35 // pred_check
        %p563 = pneg %p368
      $region78: #{tpu_custom_call.1} parent=35 // pred_check_branch
        %565 = sbr.rel (%p563) target = $region80
      $region79: #{tpu_custom_call.1} parent=35 // pred_region
        %p566 = scmp.lt.s32.totalorder %s25, 1
        %s567 = scalar_select %p566, %s25, 1
        %s568 = smul.addr %s567, 16
        %s569 = smul.addr %s568, 8
        %s570 = scalar_lea.vmem %s13, %s569
      $region80: #{tpu_custom_call.1} parent=35 // pred_fallthru
        _
      // Predicated region
      $region81: #{tpu_custom_call.1} parent=35 // pred_check
        %p571 = pneg %p394
      $region82: #{tpu_custom_call.1} parent=35 // pred_check_branch
        %573 = sbr.rel (%p571) target = $region84
      $region83: #{tpu_custom_call.1} parent=35 // pred_region
        %p574 = scmp.lt.s32.totalorder %s25, 1
        %s575 = scalar_select %p574, %s25, 1
        %s576 = scalar_lea.vmem %s14, %s575
      $region84: #{tpu_custom_call.1} parent=35 // pred_fallthru
        _
    $region36: #{tpu_custom_call.1} parent=5 // pred_fallthru
      _
    %p577 = scmp.le.s32.totalorder 1, %s25
    %p578 = scmp.lt.s32.totalorder %s25, 3
    %p579 = pnand %p577, %p578
    %p580 = pneg %p579
    // Predicated region
    $region85: #{tpu_custom_call.1} parent=5 // pred_check
      _
    $region86: #{tpu_custom_call.1} parent=5 // pred_check_branch
      %582 = sbr.rel (%p579) target = $region88
    $region87: #{tpu_custom_call.1} parent=5 // pred_region
      %s583 = ssub.s32 %s25, 1
      %p584 = pneg %p46
      %p585 = pneg %p43
      %p586 = pneg %p67
      %p587 = pneg %p64
      %p588 = pneg %p88
      %p589 = pneg %p85
      %p590 = scmp.lt.s32.totalorder %s30, 1
      %s591 = scalar_select %p590, %s30, 1
      %s592 = scalar_lea.vmem %s3, %s591
      %p593 = pneg %p114
      %p594 = pneg %p111
      %p595 = scmp.lt.s32.totalorder %s30, 1
      %s596 = scalar_select %p595, %s30, 1
      %s597 = scalar_lea.vmem %s4, %s596
      %p598 = pneg %p140
      %p599 = pneg %p137
      %p600 = scmp.lt.s32.totalorder %s30, 1
      %s601 = scalar_select %p600, %s30, 1
      %s602 = smul.addr %s601, 4
      %s603 = smul.addr %s602, 8
      %s604 = scalar_lea.vmem %s5, %s603
      %p605 = pneg %p166
      %p606 = pneg %p163
      %p607 = scmp.lt.s32.totalorder %s30, 1
      %s608 = scalar_select %p607, %s30, 1
      %s609 = scalar_lea.vmem %s6, %s608
      %p610 = pneg %p192
      %p611 = pneg %p189
      %p612 = scmp.lt.s32.totalorder %s30, 1
      %s613 = scalar_select %p612, %s30, 1
      %s614 = smul.addr %s613, 4
      %s615 = smul.addr %s614, 8
      %s616 = scalar_lea.vmem %s7, %s615
      %p617 = pneg %p218
      %p618 = pneg %p215
      %p619 = scmp.lt.s32.totalorder %s30, 1
      %s620 = scalar_select %p619, %s30, 1
      %s621 = scalar_lea.vmem %s8, %s620
      %p622 = pneg %p244
      %p623 = pneg %p241
      %p624 = scmp.lt.s32.totalorder %s30, 1
      %s625 = scalar_select %p624, %s30, 1
      %s626 = scalar_lea.vmem %s9, %s625
      %p627 = pneg %p270
      %p628 = pneg %p267
      %p629 = scmp.lt.s32.totalorder %s30, 1
      %s630 = scalar_select %p629, %s30, 1
      %s631 = scalar_lea.vmem %s10, %s630
      %p632 = pneg %p296
      %p633 = pneg %p293
      %p634 = scmp.lt.s32.totalorder %s30, 1
      %s635 = scalar_select %p634, %s30, 1
      %s636 = smul.addr %s635, 4
      %s637 = smul.addr %s636, 8
      %s638 = scalar_lea.vmem %s11, %s637
      %p639 = pneg %p322
      %p640 = pneg %p319
      %p641 = scmp.lt.s32.totalorder %s30, 1
      %s642 = scalar_select %p641, %s30, 1
      %s643 = scalar_lea.vmem %s12, %s642
      %p644 = pneg %p348
      %p645 = pneg %p345
      %p646 = scmp.lt.s32.totalorder %s30, 1
      %s647 = scalar_select %p646, %s30, 1
      %s648 = smul.addr %s647, 16
      %s649 = smul.addr %s648, 8
      %s650 = scalar_lea.vmem %s13, %s649
      %p651 = pneg %p374
      %p652 = pneg %p371
      %p653 = scmp.lt.s32.totalorder %s30, 1
      %s654 = scalar_select %p653, %s30, 1
      %s655 = scalar_lea.vmem %s14, %s654
      %p656 = pneg %p400
      %p657 = pneg %p397
      %p658 = pneg %p421
      %p659 = pneg %p418
      %p660 = pneg %p442
      %p661 = pneg %p439
      %p662 = pneg %p463
      %p663 = pneg %p460
      %p664 = scmp.lt.s32.totalorder %s30, 1
      %s665 = scalar_select %p664, %s30, 1
      %s666 = scalar_lea.vmem %s3, %s665
      %p667 = scmp.lt.s32.totalorder %s30, 1
      %s668 = scalar_select %p667, %s30, 1
      %s669 = scalar_lea.vmem %s4, %s668
      %p670 = scmp.lt.s32.totalorder %s30, 1
      %s671 = scalar_select %p670, %s30, 1
      %s672 = smul.addr %s671, 4
      %s673 = smul.addr %s672, 8
      %s674 = scalar_lea.vmem %s5, %s673
      %p675 = scmp.lt.s32.totalorder %s30, 1
      %s676 = scalar_select %p675, %s30, 1
      %s677 = scalar_lea.vmem %s6, %s676
      %p678 = scmp.lt.s32.totalorder %s30, 1
      %s679 = scalar_select %p678, %s30, 1
      %s680 = smul.addr %s679, 4
      %s681 = smul.addr %s680, 8
      %s682 = scalar_lea.vmem %s7, %s681
      %p683 = scmp.lt.s32.totalorder %s30, 1
      %s684 = scalar_select %p683, %s30, 1
      %s685 = scalar_lea.vmem %s8, %s684
      %p686 = scmp.lt.s32.totalorder %s30, 1
      %s687 = scalar_select %p686, %s30, 1
      %s688 = scalar_lea.vmem %s9, %s687
      %p689 = scmp.lt.s32.totalorder %s30, 1
      %s690 = scalar_select %p689, %s30, 1
      %s691 = scalar_lea.vmem %s10, %s690
      %p692 = scmp.lt.s32.totalorder %s30, 1
      %s693 = scalar_select %p692, %s30, 1
      %s694 = smul.addr %s693, 4
      %s695 = smul.addr %s694, 8
      %s696 = scalar_lea.vmem %s11, %s695
      %p697 = scmp.lt.s32.totalorder %s30, 1
      %s698 = scalar_select %p697, %s30, 1
      %s699 = scalar_lea.vmem %s12, %s698
      %p700 = scmp.lt.s32.totalorder %s30, 1
      %s701 = scalar_select %p700, %s30, 1
      %s702 = smul.addr %s701, 16
      %s703 = smul.addr %s702, 8
      %s704 = scalar_lea.vmem %s13, %s703
      %p705 = scmp.lt.s32.totalorder %s30, 1
      %s706 = scalar_select %p705, %s30, 1
      %s707 = scalar_lea.vmem %s14, %s706
      %p708 = scmp.eq.s32.totalorder %s30, 0
      // Predicated region
      $region89: #{tpu_custom_call.1} parent=87 // pred_check
        %p709 = pneg %p708
      $region90: #{tpu_custom_call.1} parent=87 // pred_check_branch
        %711 = sbr.rel (%p709) target = $region92
      $region91: #{tpu_custom_call.1} parent=87 // pred_region
        %v712 = vld [vmem:[%s0] sm:$0xff]
        %v713 = vld [vmem:[%s0 + $0x8] sm:$0xff]
        %v714 = vld [vmem:[%s0 + $0x10] sm:$0xff]
        %v715 = vld [vmem:[%s0 + $0x18] sm:$0xff]
        %v716 = vld [vmem:[%s0 + $0x20] sm:$0xff]
        %v717 = vld [vmem:[%s0 + $0x28] sm:$0xff]
        %v718 = vld [vmem:[%s1] sm:$0xff]
        %v719 = vld [vmem:[%s1 + $0x8] sm:$0xff]
        %v720 = vld [vmem:[%s1 + $0x10] sm:$0xff]
        %v721 = vld [vmem:[%s1 + $0x18] sm:$0xff]
        %v722 = vld [vmem:[%s1 + $0x20] sm:$0xff]
        %v723 = vld [vmem:[%s1 + $0x28] sm:$0xff]
        %v724 = vld [vmem:[%s1 + $0x30] sm:$0x1]
        %v725 = vld [vmem:[%s2] sm:$0xff]
        %v726 = vld [vmem:[%s2 + $0x8] sm:$0xff]
        %v727 = vld [vmem:[%s2 + $0x10] sm:$0xff]
        %v728 = vld [vmem:[%s2 + $0x18] sm:$0xff]
        %v729 = vld [vmem:[%s2 + $0x20] sm:$0xff]
        %v730 = vld [vmem:[%s2 + $0x28] sm:$0xff]
        %vm731 = vcmask 400384
        %v733 = vsel %vm731, %v712, 0
        %v736 = vsel %vm731, %v713, 0
        %v739 = vsel %vm731, %v714, 0
        %v742 = vsel %vm731, %v715, 0
        %v745 = vsel %vm731, %v716, 0
        %v748 = vsel %vm731, %v717, 0
        %vm750 = vcmask 1040384
        %v752 = vsel %vm750, %v724, 0
        %754 = vmatprep.subr.mxu0 0.0
        %755 = vmatpush1.msra.mxu0 0.0
        %756 = vmatprep.subr.mxu0 0.0
        %757 = vmatpush1.msra.mxu0 0.0
        %758 = vmatprep.subr.mxu0 0.0
        %759 = vmatpush1.msra.mxu0 0.0
        %760 = vmatprep.subr.mxu0 0.0
        %761 = vmatpush1.msra.mxu0 0.0
        %762 = vmatprep.subr.mxu0 0.0
        %763 = vmatpush1.msra.mxu0 0.0
        %764 = vmatprep.subr.mxu0 0.0
        %765 = vmatpush1.msra.mxu0 0.0
        %766 = vmatprep.subr.mxu0 0.0
        %767 = vmatpush1.msra.mxu0 0.0
        %768 = vmatprep.subr.mxu0 0.0
        %769 = vmatpush1.msra.mxu0 0.0
        %770 = vmatprep.subr.mxu0 0.0
        %771 = vmatpush1.msra.mxu0 0.0
        %772 = vmatprep.subr.mxu0 0.0
        %773 = vmatpush1.msra.mxu0 %v752
        %774 = vmatprep.subr.mxu0 0.0
        %775 = vmatpush1.msra.mxu0 %v723
        %776 = vmatprep.subr.mxu0 0.0
        %777 = vmatpush1.msra.mxu0 %v722
        %778 = vmatprep.subr.mxu0 0.0
        %779 = vmatpush1.msra.mxu0 %v721
        %780 = vmatprep.subr.mxu0 0.0
        %781 = vmatpush1.msra.mxu0 %v720
        %782 = vmatprep.subr.mxu0 0.0
        %783 = vmatpush1.msra.mxu0 %v719
        %784 = vmatprep.subr.mxu0 0.0
        %785 = vmatpush1.msra.mxu0 %v718
        %786 = vmatprep.subr.mxu0 0.0
        %787 = vmatpush2.msra.mxu0 0.0
        %788 = vmatprep.subr.mxu0 0.0
        %789 = vmatpush2.msra.mxu0 0.0
        %790 = vmatprep.subr.mxu0 0.0
        %791 = vmatpush2.msra.mxu0 0.0
        %792 = vmatprep.subr.mxu0 0.0
        %793 = vmatpush2.msra.mxu0 0.0
        %794 = vmatprep.subr.mxu0 0.0
        %795 = vmatpush2.msra.mxu0 0.0
        %796 = vmatprep.subr.mxu0 0.0
        %797 = vmatpush2.msra.mxu0 0.0
        %798 = vmatprep.subr.mxu0 0.0
        %799 = vmatpush2.msra.mxu0 0.0
        %800 = vmatprep.subr.mxu0 0.0
        %801 = vmatpush2.msra.mxu0 0.0
        %802 = vmatprep.subr.mxu0 0.0
        %803 = vmatpush2.msra.mxu0 0.0
        %804 = vmatprep.subr.mxu0 0.0
        %805 = vmatpush2.msra.mxu0 0.0
        %806 = vmatprep.subr.mxu0 0.0
        %807 = vmatpush2.msra.mxu0 0.0
        %808 = vmatprep.subr.mxu0 0.0
        %809 = vmatpush2.msra.mxu0 0.0
        %810 = vmatprep.subr.mxu0 0.0
        %811 = vmatpush2.msra.mxu0 0.0
        %812 = vmatprep.subr.mxu0 0.0
        %813 = vmatpush2.msra.mxu0 0.0
        %814 = vmatprep.subr.mxu0 0.0
        %815 = vmatpush2.msra.mxu0 0.0
        %816 = vmatprep.subr.mxu0 0.0
        %817 = vmatpush2.msra.mxu0 0.0
        %818 = vmatprep.mubr.f32.mxu0 0.0
        %819 = vmatmul.mubr.f32.gmra.mxu0 %v733
        %v820 = vpop.f32.mrf.mxu0
        %v821 = vadd.f32 %v725, %v820
        %v822 = vpop.f32.mrf.mxu0
        %823 = vmatprep.mubr.f32.mxu0 0.0
        %824 = vmatmul.mubr.f32.gmra.mxu0 %v736
        %v825 = vpop.f32.mrf.mxu0
        %v826 = vadd.f32 %v726, %v825
        %v827 = vpop.f32.mrf.mxu0
        %828 = vmatprep.mubr.f32.mxu0 0.0
        %829 = vmatmul.mubr.f32.gmra.mxu0 %v739
        %v830 = vpop.f32.mrf.mxu0
        %v831 = vadd.f32 %v727, %v830
        %v832 = vpop.f32.mrf.mxu0
        %833 = vmatprep.mubr.f32.mxu0 0.0
        %834 = vmatmul.mubr.f32.gmra.mxu0 %v742
        %v835 = vpop.f32.mrf.mxu0
        %v836 = vadd.f32 %v728, %v835
        %v837 = vpop.f32.mrf.mxu0
        %838 = vmatprep.mubr.f32.mxu0 0.0
        %839 = vmatmul.mubr.f32.gmra.mxu0 %v745
        %v840 = vpop.f32.mrf.mxu0
        %v841 = vadd.f32 %v729, %v840
        %v842 = vpop.f32.mrf.mxu0
        %843 = vmatprep.mubr.f32.mxu0 0.0
        %844 = vmatmul.mubr.f32.gmra.mxu0 %v748
        %v845 = vpop.f32.mrf.mxu0
        %v846 = vadd.f32 %v730, %v845
        %v847 = vpop.f32.mrf.mxu0
        %848 = vdwg.mxu0
        %vm849 = vcmask 261120
        %850 = vst.msk [vmem:[#allocation2] sm:$0xff] %vm849, %v821
        %851 = vst.msk [vmem:[#allocation2 + $0x8] sm:$0xff] %vm849, %v826
        %852 = vst.msk [vmem:[#allocation2 + $0x10] sm:$0xff] %vm849, %v831
        %853 = vst.msk [vmem:[#allocation2 + $0x18] sm:$0xff] %vm849, %v836
        %854 = vst.msk [vmem:[#allocation2 + $0x20] sm:$0xff] %vm849, %v841
        %855 = vst.msk [vmem:[#allocation2 + $0x28] sm:$0xff] %vm849, %v846
      $region92: #{tpu_custom_call.1} parent=87 // pred_fallthru
        _
      %v856 = vld [vmem:[#allocation2] sm:$0xff]
      %v857 = vld [vmem:[#allocation2 + $0x8] sm:$0xff]
      %v858 = vld [vmem:[#allocation2 + $0x10] sm:$0xff]
      %v859 = vld [vmem:[#allocation2 + $0x18] sm:$0xff]
      %v860 = vld [vmem:[#allocation2 + $0x20] sm:$0xff]
      %v861 = vld [vmem:[#allocation2 + $0x28] sm:$0xff]
      %v862 = vld [vmem:[%s666] sm:$0x1]
      %v863 = vld [vmem:[%s669] sm:$0x1]
      %vm864 = vcmask 261120
      %v865 = vsel %vm864, %v856, 0.0
      %866 = vadd.xlane.f32.xlu0 %v865
      %v867 = vpop.xlane.xlu0 %866
      %v868 = vsel %vm864, %v857, 0.0
      %869 = vadd.xlane.f32.xlu0 %v868
      %v870 = vpop.xlane.xlu0 %869
      %v871 = vsel %vm864, %v858, 0.0
      %872 = vadd.xlane.f32.xlu0 %v871
      %v873 = vpop.xlane.xlu0 %872
      %v874 = vsel %vm864, %v859, 0.0
      %875 = vadd.xlane.f32.xlu0 %v874
      %v876 = vpop.xlane.xlu0 %875
      %v877 = vsel %vm864, %v860, 0.0
      %878 = vadd.xlane.f32.xlu0 %v877
      %v879 = vpop.xlane.xlu0 %878
      %v880 = vsel %vm864, %v861, 0.0
      %881 = vadd.xlane.f32.xlu0 %v880
      %v882 = vpop.xlane.xlu0 %881
      %v883 = vrcp.pop 32.0
      %v884 = vmul.f32 %v867, %v883
      %v885 = vmul.f32 %v870, %v883
      %v886 = vmul.f32 %v873, %v883
      %v887 = vmul.f32 %v876, %v883
      %v888 = vmul.f32 %v879, %v883
      %v889 = vmul.f32 %v882, %v883
      %v890 = vsub.f32 %v856, %v884
      %v891 = vsub.f32 %v857, %v885
      %v892 = vsub.f32 %v858, %v886
      %v893 = vsub.f32 %v859, %v887
      %v894 = vsub.f32 %v860, %v888
      %v895 = vsub.f32 %v861, %v889
      %v896 = vmul.f32 %v890, %v890
      %v897 = vmul.f32 %v891, %v891
      %v898 = vmul.f32 %v892, %v892
      %v899 = vmul.f32 %v893, %v893
      %v900 = vmul.f32 %v894, %v894
      %v901 = vmul.f32 %v895, %v895
      %v902 = vsel %vm864, %v896, 0.0
      %903 = vadd.xlane.f32.xlu0 %v902
      %v904 = vpop.xlane.xlu0 %903
      %v905 = vsel %vm864, %v897, 0.0
      %906 = vadd.xlane.f32.xlu0 %v905
      %v907 = vpop.xlane.xlu0 %906
      %v908 = vsel %vm864, %v898, 0.0
      %909 = vadd.xlane.f32.xlu0 %v908
      %v910 = vpop.xlane.xlu0 %909
      %v911 = vsel %vm864, %v899, 0.0
      %912 = vadd.xlane.f32.xlu0 %v911
      %v913 = vpop.xlane.xlu0 %912
      %v914 = vsel %vm864, %v900, 0.0
      %915 = vadd.xlane.f32.xlu0 %v914
      %v916 = vpop.xlane.xlu0 %915
      %v917 = vsel %vm864, %v901, 0.0
      %918 = vadd.xlane.f32.xlu0 %v917
      %v919 = vpop.xlane.xlu0 %918
      %v920 = vmul.f32 %v904, %v883
      %v921 = vmul.f32 %v907, %v883
      %v922 = vmul.f32 %v910, %v883
      %v923 = vmul.f32 %v913, %v883
      %v924 = vmul.f32 %v916, %v883
      %v925 = vmul.f32 %v919, %v883
      %v926 = vadd.f32 %v920, 1e-05
      %v927 = vadd.f32 %v921, 1e-05
      %v928 = vadd.f32 %v922, 1e-05
      %v929 = vadd.f32 %v923, 1e-05
      %v930 = vadd.f32 %v924, 1e-05
      %v931 = vadd.f32 %v925, 1e-05
      %v932 = vrsqrt.pop %v926
      %v933 = vrsqrt.pop %v927
      %v934 = vrsqrt.pop %v928
      %v935 = vrsqrt.pop %v929
      %v936 = vrsqrt.pop %v930
      %v937 = vrsqrt.pop %v931
      %v938 = vmul.f32 %v890, %v932
      %v939 = vmul.f32 %v891, %v933
      %v940 = vmul.f32 %v892, %v934
      %v941 = vmul.f32 %v893, %v935
      %v942 = vmul.f32 %v894, %v936
      %v943 = vmul.f32 %v895, %v937
      %v945 = vlaneseq
      %v946 = vshrl.u32 %v945, 7
      %v947 = vsub.s32 0, %v946
      %v948 = vrot.slane %v862, %v947
      %v950 = vmul.f32 %v938, %v948
      %v951 = vmul.f32 %v939, %v948
      %v952 = vmul.f32 %v940, %v948
      %v953 = vmul.f32 %v941, %v948
      %v954 = vmul.f32 %v942, %v948
      %v955 = vmul.f32 %v943, %v948
      %v957 = vlaneseq
      %v958 = vshrl.u32 %v957, 7
      %v959 = vsub.s32 0, %v958
      %v960 = vrot.slane %v863, %v959
      %v962 = vadd.f32 %v950, %v960
      %v963 = vadd.f32 %v951, %v960
      %v964 = vadd.f32 %v952, %v960
      %v965 = vadd.f32 %v953, %v960
      %v966 = vadd.f32 %v954, %v960
      %v967 = vadd.f32 %v955, %v960
      %v968 = vld [vmem:[%s674] sm:$0xff]
      %v969 = vld [vmem:[%s674 + $0x8] sm:$0xff]
      %v970 = vld [vmem:[%s674 + $0x10] sm:$0xff]
      %v971 = vld [vmem:[%s674 + $0x18] sm:$0xff]
      %v972 = vld [vmem:[%s677] sm:$0x1]
      %v974 = vlaneseq
      %v975 = vshrl.u32 %v974, 7
      %v976 = vsub.s32 0, %v975
      %v977 = vrot.slane %v972, %v976
      %v980 = vsel %vm864, %v962, 0
      %v983 = vsel %vm864, %v963, 0
      %v986 = vsel %vm864, %v964, 0
      %v989 = vsel %vm864, %v965, 0
      %v992 = vsel %vm864, %v966, 0
      %v995 = vsel %vm864, %v967, 0
      %997 = vmatprep.subr.mxu0 0.0
      %998 = vmatpush1.msra.mxu0 0.0
      %999 = vmatprep.subr.mxu0 0.0
      %1000 = vmatpush1.msra.mxu0 0.0
      %1001 = vmatprep.subr.mxu0 0.0
      %1002 = vmatpush1.msra.mxu0 0.0
      %1003 = vmatprep.subr.mxu0 0.0
      %1004 = vmatpush1.msra.mxu0 0.0
      %1005 = vmatprep.subr.mxu0 0.0
      %1006 = vmatpush1.msra.mxu0 0.0
      %1007 = vmatprep.subr.mxu0 0.0
      %1008 = vmatpush1.msra.mxu0 0.0
      %1009 = vmatprep.subr.mxu0 0.0
      %1010 = vmatpush1.msra.mxu0 0.0
      %1011 = vmatprep.subr.mxu0 0.0
      %1012 = vmatpush1.msra.mxu0 0.0
      %1013 = vmatprep.subr.mxu0 0.0
      %1014 = vmatpush1.msra.mxu0 0.0
      %1015 = vmatprep.subr.mxu0 0.0
      %1016 = vmatpush1.msra.mxu0 0.0
      %1017 = vmatprep.subr.mxu0 0.0
      %1018 = vmatpush1.msra.mxu0 0.0
      %1019 = vmatprep.subr.mxu0 0.0
      %1020 = vmatpush1.msra.mxu0 0.0
      %1021 = vmatprep.subr.mxu0 0.0
      %1022 = vmatpush1.msra.mxu0 %v971
      %1023 = vmatprep.subr.mxu0 0.0
      %1024 = vmatpush1.msra.mxu0 %v970
      %1025 = vmatprep.subr.mxu0 0.0
      %1026 = vmatpush1.msra.mxu0 %v969
      %1027 = vmatprep.subr.mxu0 0.0
      %1028 = vmatpush1.msra.mxu0 %v968
      %1029 = vmatprep.subr.mxu0 0.0
      %1030 = vmatpush2.msra.mxu0 0.0
      %1031 = vmatprep.subr.mxu0 0.0
      %1032 = vmatpush2.msra.mxu0 0.0
      %1033 = vmatprep.subr.mxu0 0.0
      %1034 = vmatpush2.msra.mxu0 0.0
      %1035 = vmatprep.subr.mxu0 0.0
      %1036 = vmatpush2.msra.mxu0 0.0
      %1037 = vmatprep.subr.mxu0 0.0
      %1038 = vmatpush2.msra.mxu0 0.0
      %1039 = vmatprep.subr.mxu0 0.0
      %1040 = vmatpush2.msra.mxu0 0.0
      %1041 = vmatprep.subr.mxu0 0.0
      %1042 = vmatpush2.msra.mxu0 0.0
      %1043 = vmatprep.subr.mxu0 0.0
      %1044 = vmatpush2.msra.mxu0 0.0
      %1045 = vmatprep.subr.mxu0 0.0
      %1046 = vmatpush2.msra.mxu0 0.0
      %1047 = vmatprep.subr.mxu0 0.0
      %1048 = vmatpush2.msra.mxu0 0.0
      %1049 = vmatprep.subr.mxu0 0.0
      %1050 = vmatpush2.msra.mxu0 0.0
      %1051 = vmatprep.subr.mxu0 0.0
      %1052 = vmatpush2.msra.mxu0 0.0
      %1053 = vmatprep.subr.mxu0 0.0
      %1054 = vmatpush2.msra.mxu0 0.0
      %1055 = vmatprep.subr.mxu0 0.0
      %1056 = vmatpush2.msra.mxu0 0.0
      %1057 = vmatprep.subr.mxu0 0.0
      %1058 = vmatpush2.msra.mxu0 0.0
      %1059 = vmatprep.subr.mxu0 0.0
      %1060 = vmatpush2.msra.mxu0 0.0
      %1061 = vmatprep.mubr.f32.mxu0 0.0
      %1062 = vmatmul.mubr.f32.gmra.mxu0 %v980
      %v1063 = vpop.f32.mrf.mxu0
      %v1064 = vadd.f32 %v977, %v1063
      %v1065 = vpop.f32.mrf.mxu0
      %1066 = vmatprep.mubr.f32.mxu0 0.0
      %1067 = vmatmul.mubr.f32.gmra.mxu0 %v983
      %v1068 = vpop.f32.mrf.mxu0
      %v1069 = vadd.f32 %v977, %v1068
      %v1070 = vpop.f32.mrf.mxu0
      %1071 = vmatprep.mubr.f32.mxu0 0.0
      %1072 = vmatmul.mubr.f32.gmra.mxu0 %v986
      %v1073 = vpop.f32.mrf.mxu0
      %v1074 = vadd.f32 %v977, %v1073
      %v1075 = vpop.f32.mrf.mxu0
      %1076 = vmatprep.mubr.f32.mxu0 0.0
      %1077 = vmatmul.mubr.f32.gmra.mxu0 %v989
      %v1078 = vpop.f32.mrf.mxu0
      %v1079 = vadd.f32 %v977, %v1078
      %v1080 = vpop.f32.mrf.mxu0
      %1081 = vmatprep.mubr.f32.mxu0 0.0
      %1082 = vmatmul.mubr.f32.gmra.mxu0 %v992
      %v1083 = vpop.f32.mrf.mxu0
      %v1084 = vadd.f32 %v977, %v1083
      %v1085 = vpop.f32.mrf.mxu0
      %1086 = vmatprep.mubr.f32.mxu0 0.0
      %1087 = vmatmul.mubr.f32.gmra.mxu0 %v995
      %v1088 = vpop.f32.mrf.mxu0
      %v1089 = vadd.f32 %v977, %v1088
      %v1090 = vpop.f32.mrf.mxu0
      %1091 = vdwg.mxu0
      %v1092 = vlaneseq
      %v1093 = vand.u32 %v1092, 127
      %vm1094 = vcmp.lt.s32.totalorder %v1093, 17
      %1098 = vrot.lane.b32.xlu0 %v1064, 96
      %v1099 = vpop.permute.xlu0 %1098
      %1100 = vrot.lane.b32.xlu0 %v1069, 96
      %v1101 = vpop.permute.xlu0 %1100
      %1102 = vrot.lane.b32.xlu0 %v1074, 96
      %v1103 = vpop.permute.xlu0 %1102
      %vm1104 = vcmask 64512
      %v1105 = vsel %vm1104, %v1064, 0
      %v1107 = vsel %vm1104, %v1069, 0
      %v1109 = vsel %vm1104, %v1074, 0
      %v1111 = vsel %vm1104, %v1099, 0
      %v1113 = vsel %vm1104, %v1101, 0
      %v1115 = vsel %vm1104, %v1103, 0
      %1117 = vmatprep.subr.mxu0 0.0
      %1118 = vmatpush1.xpose.msra.mxu0 0.0
      %1119 = vmatprep.subr.mxu0 0.0
      %1120 = vmatpush1.xpose.msra.mxu0 0.0
      %1121 = vmatprep.subr.mxu0 0.0
      %1122 = vmatpush1.xpose.msra.mxu0 0.0
      %1123 = vmatprep.subr.mxu0 0.0
      %1124 = vmatpush1.xpose.msra.mxu0 0.0
      %1125 = vmatprep.subr.mxu0 0.0
      %1126 = vmatpush1.xpose.msra.mxu0 0.0
      %1127 = vmatprep.subr.mxu0 0.0
      %1128 = vmatpush1.xpose.msra.mxu0 0.0
      %1129 = vmatprep.subr.mxu0 0.0
      %1130 = vmatpush1.xpose.msra.mxu0 0.0
      %1131 = vmatprep.subr.mxu0 0.0
      %1132 = vmatpush1.xpose.msra.mxu0 0.0
      %1133 = vmatprep.subr.mxu0 0.0
      %1134 = vmatpush1.xpose.msra.mxu0 0.0
      %1135 = vmatprep.subr.mxu0 0.0
      %1136 = vmatpush1.xpose.msra.mxu0 0.0
      %1137 = vmatprep.subr.mxu0 0.0
      %1138 = vmatpush1.xpose.msra.mxu0 0.0
      %1139 = vmatprep.subr.mxu0 0.0
      %1140 = vmatpush1.xpose.msra.mxu0 0.0
      %1141 = vmatprep.subr.mxu0 0.0
      %1142 = vmatpush1.xpose.msra.mxu0 0.0
      %1143 = vmatprep.subr.mxu0 0.0
      %1144 = vmatpush1.xpose.msra.mxu0 %v1115
      %1145 = vmatprep.subr.mxu0 0.0
      %1146 = vmatpush1.xpose.msra.mxu0 %v1113
      %1147 = vmatprep.subr.mxu0 0.0
      %1148 = vmatpush1.xpose.msra.mxu0 %v1111
      %1149 = vmatprep.subr.mxu0 0.0
      %1150 = vmatpush2.xpose.msra.mxu0 0.0
      %1151 = vmatprep.subr.mxu0 0.0
      %1152 = vmatpush2.xpose.msra.mxu0 0.0
      %1153 = vmatprep.subr.mxu0 0.0
      %1154 = vmatpush2.xpose.msra.mxu0 0.0
      %1155 = vmatprep.subr.mxu0 0.0
      %1156 = vmatpush2.xpose.msra.mxu0 0.0
      %1157 = vmatprep.subr.mxu0 0.0
      %1158 = vmatpush2.xpose.msra.mxu0 0.0
      %1159 = vmatprep.subr.mxu0 0.0
      %1160 = vmatpush2.xpose.msra.mxu0 0.0
      %1161 = vmatprep.subr.mxu0 0.0
      %1162 = vmatpush2.xpose.msra.mxu0 0.0
      %1163 = vmatprep.subr.mxu0 0.0
      %1164 = vmatpush2.xpose.msra.mxu0 0.0
      %1165 = vmatprep.subr.mxu0 0.0
      %1166 = vmatpush2.xpose.msra.mxu0 0.0
      %1167 = vmatprep.subr.mxu0 0.0
      %1168 = vmatpush2.xpose.msra.mxu0 0.0
      %1169 = vmatprep.subr.mxu0 0.0
      %1170 = vmatpush2.xpose.msra.mxu0 0.0
      %1171 = vmatprep.subr.mxu0 0.0
      %1172 = vmatpush2.xpose.msra.mxu0 0.0
      %1173 = vmatprep.subr.mxu0 0.0
      %1174 = vmatpush2.xpose.msra.mxu0 0.0
      %1175 = vmatprep.subr.mxu0 0.0
      %1176 = vmatpush2.xpose.msra.mxu0 0.0
      %1177 = vmatprep.subr.mxu0 0.0
      %1178 = vmatpush2.xpose.msra.mxu0 0.0
      %1179 = vmatprep.subr.mxu0 0.0
      %1180 = vmatpush2.xpose.msra.mxu0 0.0
      %1181 = vmatprep.mubr.f32.mxu0 0.0
      %1182 = vmatmul.mubr.f32.gmra.mxu0 %v1105
      %v1183 = vpop.f32.mrf.mxu0
      %v1184 = vadd.f32 0.0, %v1183
      %v1185 = vpop.f32.mrf.mxu0
      %1186 = vmatprep.mubr.f32.mxu0 0.0
      %1187 = vmatmul.mubr.f32.gmra.mxu0 %v1107
      %v1188 = vpop.f32.mrf.mxu0
      %v1189 = vadd.f32 0.0, %v1188
      %v1190 = vpop.f32.mrf.mxu0
      %1191 = vmatprep.mubr.f32.mxu0 0.0
      %1192 = vmatmul.mubr.f32.gmra.mxu0 %v1109
      %v1193 = vpop.f32.mrf.mxu0
      %v1194 = vadd.f32 0.0, %v1193
      %v1195 = vpop.f32.mrf.mxu0
      %1196 = vdwg.mxu0
      %v1197 = vsel %vm1094, %v1184, -1e+30
      %v1198 = vsel %vm1094, %v1189, -1e+30
      %v1199 = vsel %vm1094, %v1194, -1e+30
      %vm1200 = vcmask 195584
      %v1201 = vsel %vm1200, %v1197, -inf
      %1202 = vmax.xlane.f32.xlu0 %v1201
      %v1203 = vpop.xlane.xlu0 %1202
      %v1204 = vsel %vm1200, %v1198, -inf
      %1205 = vmax.xlane.f32.xlu0 %v1204
      %v1206 = vpop.xlane.xlu0 %1205
      %v1207 = vsel %vm1200, %v1199, -inf
      %1208 = vmax.xlane.f32.xlu0 %v1207
      %v1209 = vpop.xlane.xlu0 %1208
      %v1210 = vsub.f32 %v1197, %v1203
      %v1211 = vsub.f32 %v1198, %v1206
      %v1212 = vsub.f32 %v1199, %v1209
      %v1213 = vmul.f32 %v1210, 1.442695
      %v1214 = vpow.pop %v1213
      %v1215 = vmul.f32 %v1211, 1.442695
      %v1216 = vpow.pop %v1215
      %v1217 = vmul.f32 %v1212, 1.442695
      %v1218 = vpow.pop %v1217
      %v1219 = vsel %vm1200, %v1214, 0.0
      %1220 = vadd.xlane.f32.xlu0 %v1219
      %v1221 = vpop.xlane.xlu0 %1220
      %v1222 = vsel %vm1200, %v1216, 0.0
      %1223 = vadd.xlane.f32.xlu0 %v1222
      %v1224 = vpop.xlane.xlu0 %1223
      %v1225 = vsel %vm1200, %v1218, 0.0
      %1226 = vadd.xlane.f32.xlu0 %v1225
      %v1227 = vpop.xlane.xlu0 %1226
      %v1228 = vrcp.pop %v1221
      %v1229 = vrcp.pop %v1224
      %v1230 = vrcp.pop %v1227
      %v1231 = vmul.f32 %v1214, %v1228
      %v1232 = vmul.f32 %v1216, %v1229
      %v1233 = vmul.f32 %v1218, %v1230
      %1234 = vrot.lane.b32.xlu0 %v1064, 64
      %v1235 = vpop.permute.xlu0 %1234
      %1236 = vrot.lane.b32.xlu0 %v1069, 64
      %v1237 = vpop.permute.xlu0 %1236
      %1238 = vrot.lane.b32.xlu0 %v1074, 64
      %v1239 = vpop.permute.xlu0 %1238
      %v1244 = vsel %vm1200, %v1231, 0
      %v1247 = vsel %vm1200, %v1232, 0
      %v1250 = vsel %vm1200, %v1233, 0
      %1252 = vmatprep.subr.mxu0 0.0
      %1253 = vmatpush1.msra.mxu0 0.0
      %1254 = vmatprep.subr.mxu0 0.0
      %1255 = vmatpush1.msra.mxu0 0.0
      %1256 = vmatprep.subr.mxu0 0.0
      %1257 = vmatpush1.msra.mxu0 0.0
      %1258 = vmatprep.subr.mxu0 0.0
      %1259 = vmatpush1.msra.mxu0 0.0
      %1260 = vmatprep.subr.mxu0 0.0
      %1261 = vmatpush1.msra.mxu0 0.0
      %1262 = vmatprep.subr.mxu0 0.0
      %1263 = vmatpush1.msra.mxu0 0.0
      %1264 = vmatprep.subr.mxu0 0.0
      %1265 = vmatpush1.msra.mxu0 0.0
      %1266 = vmatprep.subr.mxu0 0.0
      %1267 = vmatpush1.msra.mxu0 0.0
      %1268 = vmatprep.subr.mxu0 0.0
      %1269 = vmatpush1.msra.mxu0 0.0
      %1270 = vmatprep.subr.mxu0 0.0
      %1271 = vmatpush1.msra.mxu0 0.0
      %1272 = vmatprep.subr.mxu0 0.0
      %1273 = vmatpush1.msra.mxu0 0.0
      %1274 = vmatprep.subr.mxu0 0.0
      %1275 = vmatpush1.msra.mxu0 0.0
      %1276 = vmatprep.subr.mxu0 0.0
      %1277 = vmatpush1.msra.mxu0 0.0
      %1278 = vmatprep.subr.mxu0 0.0
      %1279 = vmatpush1.msra.mxu0 %v1239
      %1280 = vmatprep.subr.mxu0 0.0
      %1281 = vmatpush1.msra.mxu0 %v1237
      %1282 = vmatprep.subr.mxu0 0.0
      %1283 = vmatpush1.msra.mxu0 %v1235
      %1284 = vmatprep.subr.mxu0 0.0
      %1285 = vmatpush2.msra.mxu0 0.0
      %1286 = vmatprep.subr.mxu0 0.0
      %1287 = vmatpush2.msra.mxu0 0.0
      %1288 = vmatprep.subr.mxu0 0.0
      %1289 = vmatpush2.msra.mxu0 0.0
      %1290 = vmatprep.subr.mxu0 0.0
      %1291 = vmatpush2.msra.mxu0 0.0
      %1292 = vmatprep.subr.mxu0 0.0
      %1293 = vmatpush2.msra.mxu0 0.0
      %1294 = vmatprep.subr.mxu0 0.0
      %1295 = vmatpush2.msra.mxu0 0.0
      %1296 = vmatprep.subr.mxu0 0.0
      %1297 = vmatpush2.msra.mxu0 0.0
      %1298 = vmatprep.subr.mxu0 0.0
      %1299 = vmatpush2.msra.mxu0 0.0
      %1300 = vmatprep.subr.mxu0 0.0
      %1301 = vmatpush2.msra.mxu0 0.0
      %1302 = vmatprep.subr.mxu0 0.0
      %1303 = vmatpush2.msra.mxu0 0.0
      %1304 = vmatprep.subr.mxu0 0.0
      %1305 = vmatpush2.msra.mxu0 0.0
      %1306 = vmatprep.subr.mxu0 0.0
      %1307 = vmatpush2.msra.mxu0 0.0
      %1308 = vmatprep.subr.mxu0 0.0
      %1309 = vmatpush2.msra.mxu0 0.0
      %1310 = vmatprep.subr.mxu0 0.0
      %1311 = vmatpush2.msra.mxu0 0.0
      %1312 = vmatprep.subr.mxu0 0.0
      %1313 = vmatpush2.msra.mxu0 0.0
      %1314 = vmatprep.subr.mxu0 0.0
      %1315 = vmatpush2.msra.mxu0 0.0
      %1316 = vmatprep.mubr.f32.mxu0 0.0
      %1317 = vmatmul.mubr.f32.gmra.mxu0 %v1244
      %v1318 = vpop.f32.mrf.mxu0
      %v1319 = vadd.f32 0.0, %v1318
      %v1320 = vpop.f32.mrf.mxu0
      %1321 = vmatprep.mubr.f32.mxu0 0.0
      %1322 = vmatmul.mubr.f32.gmra.mxu0 %v1247
      %v1323 = vpop.f32.mrf.mxu0
      %v1324 = vadd.f32 0.0, %v1323
      %v1325 = vpop.f32.mrf.mxu0
      %1326 = vmatprep.mubr.f32.mxu0 0.0
      %1327 = vmatmul.mubr.f32.gmra.mxu0 %v1250
      %v1328 = vpop.f32.mrf.mxu0
      %v1329 = vadd.f32 0.0, %v1328
      %v1330 = vpop.f32.mrf.mxu0
      %1331 = vdwg.mxu0
      %1332 = vrot.lane.b32.xlu0 %v1064, 120
      %v1333 = vpop.permute.xlu0 %1332
      %1334 = vrot.lane.b32.xlu0 %v1069, 120
      %v1335 = vpop.permute.xlu0 %1334
      %1336 = vrot.lane.b32.xlu0 %v1074, 120
      %v1337 = vpop.permute.xlu0 %1336
      %1338 = vrot.lane.b32.xlu0 %v1064, 88
      %v1339 = vpop.permute.xlu0 %1338
      %1340 = vrot.lane.b32.xlu0 %v1069, 88
      %v1341 = vpop.permute.xlu0 %1340
      %1342 = vrot.lane.b32.xlu0 %v1074, 88
      %v1343 = vpop.permute.xlu0 %1342
      %v1344 = vsel %vm1104, %v1333, 0
      %v1346 = vsel %vm1104, %v1335, 0
      %v1348 = vsel %vm1104, %v1337, 0
      %v1350 = vsel %vm1104, %v1339, 0
      %v1352 = vsel %vm1104, %v1341, 0
      %v1354 = vsel %vm1104, %v1343, 0
      %1356 = vmatprep.subr.mxu0 0.0
      %1357 = vmatpush1.xpose.msra.mxu0 0.0
      %1358 = vmatprep.subr.mxu0 0.0
      %1359 = vmatpush1.xpose.msra.mxu0 0.0
      %1360 = vmatprep.subr.mxu0 0.0
      %1361 = vmatpush1.xpose.msra.mxu0 0.0
      %1362 = vmatprep.subr.mxu0 0.0
      %1363 = vmatpush1.xpose.msra.mxu0 0.0
      %1364 = vmatprep.subr.mxu0 0.0
      %1365 = vmatpush1.xpose.msra.mxu0 0.0
      %1366 = vmatprep.subr.mxu0 0.0
      %1367 = vmatpush1.xpose.msra.mxu0 0.0
      %1368 = vmatprep.subr.mxu0 0.0
      %1369 = vmatpush1.xpose.msra.mxu0 0.0
      %1370 = vmatprep.subr.mxu0 0.0
      %1371 = vmatpush1.xpose.msra.mxu0 0.0
      %1372 = vmatprep.subr.mxu0 0.0
      %1373 = vmatpush1.xpose.msra.mxu0 0.0
      %1374 = vmatprep.subr.mxu0 0.0
      %1375 = vmatpush1.xpose.msra.mxu0 0.0
      %1376 = vmatprep.subr.mxu0 0.0
      %1377 = vmatpush1.xpose.msra.mxu0 0.0
      %1378 = vmatprep.subr.mxu0 0.0
      %1379 = vmatpush1.xpose.msra.mxu0 0.0
      %1380 = vmatprep.subr.mxu0 0.0
      %1381 = vmatpush1.xpose.msra.mxu0 0.0
      %1382 = vmatprep.subr.mxu0 0.0
      %1383 = vmatpush1.xpose.msra.mxu0 %v1354
      %1384 = vmatprep.subr.mxu0 0.0
      %1385 = vmatpush1.xpose.msra.mxu0 %v1352
      %1386 = vmatprep.subr.mxu0 0.0
      %1387 = vmatpush1.xpose.msra.mxu0 %v1350
      %1388 = vmatprep.subr.mxu0 0.0
      %1389 = vmatpush2.xpose.msra.mxu0 0.0
      %1390 = vmatprep.subr.mxu0 0.0
      %1391 = vmatpush2.xpose.msra.mxu0 0.0
      %1392 = vmatprep.subr.mxu0 0.0
      %1393 = vmatpush2.xpose.msra.mxu0 0.0
      %1394 = vmatprep.subr.mxu0 0.0
      %1395 = vmatpush2.xpose.msra.mxu0 0.0
      %1396 = vmatprep.subr.mxu0 0.0
      %1397 = vmatpush2.xpose.msra.mxu0 0.0
      %1398 = vmatprep.subr.mxu0 0.0
      %1399 = vmatpush2.xpose.msra.mxu0 0.0
      %1400 = vmatprep.subr.mxu0 0.0
      %1401 = vmatpush2.xpose.msra.mxu0 0.0
      %1402 = vmatprep.subr.mxu0 0.0
      %1403 = vmatpush2.xpose.msra.mxu0 0.0
      %1404 = vmatprep.subr.mxu0 0.0
      %1405 = vmatpush2.xpose.msra.mxu0 0.0
      %1406 = vmatprep.subr.mxu0 0.0
      %1407 = vmatpush2.xpose.msra.mxu0 0.0
      %1408 = vmatprep.subr.mxu0 0.0
      %1409 = vmatpush2.xpose.msra.mxu0 0.0
      %1410 = vmatprep.subr.mxu0 0.0
      %1411 = vmatpush2.xpose.msra.mxu0 0.0
      %1412 = vmatprep.subr.mxu0 0.0
      %1413 = vmatpush2.xpose.msra.mxu0 0.0
      %1414 = vmatprep.subr.mxu0 0.0
      %1415 = vmatpush2.xpose.msra.mxu0 0.0
      %1416 = vmatprep.subr.mxu0 0.0
      %1417 = vmatpush2.xpose.msra.mxu0 0.0
      %1418 = vmatprep.subr.mxu0 0.0
      %1419 = vmatpush2.xpose.msra.mxu0 0.0
      %1420 = vmatprep.mubr.f32.mxu0 0.0
      %1421 = vmatmul.mubr.f32.gmra.mxu0 %v1344
      %v1422 = vpop.f32.mrf.mxu0
      %v1423 = vadd.f32 0.0, %v1422
      %v1424 = vpop.f32.mrf.mxu0
      %1425 = vmatprep.mubr.f32.mxu0 0.0
      %1426 = vmatmul.mubr.f32.gmra.mxu0 %v1346
      %v1427 = vpop.f32.mrf.mxu0
      %v1428 = vadd.f32 0.0, %v1427
      %v1429 = vpop.f32.mrf.mxu0
      %1430 = vmatprep.mubr.f32.mxu0 0.0
      %1431 = vmatmul.mubr.f32.gmra.mxu0 %v1348
      %v1432 = vpop.f32.mrf.mxu0
      %v1433 = vadd.f32 0.0, %v1432
      %v1434 = vpop.f32.mrf.mxu0
      %1435 = vdwg.mxu0
      %v1436 = vsel %vm1094, %v1423, -1e+30
      %v1437 = vsel %vm1094, %v1428, -1e+30
      %v1438 = vsel %vm1094, %v1433, -1e+30
      %v1439 = vsel %vm1200, %v1436, -inf
      %1440 = vmax.xlane.f32.xlu0 %v1439
      %v1441 = vpop.xlane.xlu0 %1440
      %v1442 = vsel %vm1200, %v1437, -inf
      %1443 = vmax.xlane.f32.xlu0 %v1442
      %v1444 = vpop.xlane.xlu0 %1443
      %v1445 = vsel %vm1200, %v1438, -inf
      %1446 = vmax.xlane.f32.xlu0 %v1445
      %v1447 = vpop.xlane.xlu0 %1446
      %v1448 = vsub.f32 %v1436, %v1441
      %v1449 = vsub.f32 %v1437, %v1444
      %v1450 = vsub.f32 %v1438, %v1447
      %v1451 = vmul.f32 %v1448, 1.442695
      %v1452 = vpow.pop %v1451
      %v1453 = vmul.f32 %v1449, 1.442695
      %v1454 = vpow.pop %v1453
      %v1455 = vmul.f32 %v1450, 1.442695
      %v1456 = vpow.pop %v1455
      %v1457 = vsel %vm1200, %v1452, 0.0
      %1458 = vadd.xlane.f32.xlu0 %v1457
      %v1459 = vpop.xlane.xlu0 %1458
      %v1460 = vsel %vm1200, %v1454, 0.0
      %1461 = vadd.xlane.f32.xlu0 %v1460
      %v1462 = vpop.xlane.xlu0 %1461
      %v1463 = vsel %vm1200, %v1456, 0.0
      %1464 = vadd.xlane.f32.xlu0 %v1463
      %v1465 = vpop.xlane.xlu0 %1464
      %v1466 = vrcp.pop %v1459
      %v1467 = vrcp.pop %v1462
      %v1468 = vrcp.pop %v1465
      %v1469 = vmul.f32 %v1452, %v1466
      %v1470 = vmul.f32 %v1454, %v1467
      %v1471 = vmul.f32 %v1456, %v1468
      %1472 = vrot.lane.b32.xlu0 %v1064, 56
      %v1473 = vpop.permute.xlu0 %1472
      %1474 = vrot.lane.b32.xlu0 %v1069, 56
      %v1475 = vpop.permute.xlu0 %1474
      %1476 = vrot.lane.b32.xlu0 %v1074, 56
      %v1477 = vpop.permute.xlu0 %1476
      %v1482 = vsel %vm1200, %v1469, 0
      %v1485 = vsel %vm1200, %v1470, 0
      %v1488 = vsel %vm1200, %v1471, 0
      %1490 = vmatprep.subr.mxu0 0.0
      %1491 = vmatpush1.msra.mxu0 0.0
      %1492 = vmatprep.subr.mxu0 0.0
      %1493 = vmatpush1.msra.mxu0 0.0
      %1494 = vmatprep.subr.mxu0 0.0
      %1495 = vmatpush1.msra.mxu0 0.0
      %1496 = vmatprep.subr.mxu0 0.0
      %1497 = vmatpush1.msra.mxu0 0.0
      %1498 = vmatprep.subr.mxu0 0.0
      %1499 = vmatpush1.msra.mxu0 0.0
      %1500 = vmatprep.subr.mxu0 0.0
      %1501 = vmatpush1.msra.mxu0 0.0
      %1502 = vmatprep.subr.mxu0 0.0
      %1503 = vmatpush1.msra.mxu0 0.0
      %1504 = vmatprep.subr.mxu0 0.0
      %1505 = vmatpush1.msra.mxu0 0.0
      %1506 = vmatprep.subr.mxu0 0.0
      %1507 = vmatpush1.msra.mxu0 0.0
      %1508 = vmatprep.subr.mxu0 0.0
      %1509 = vmatpush1.msra.mxu0 0.0
      %1510 = vmatprep.subr.mxu0 0.0
      %1511 = vmatpush1.msra.mxu0 0.0
      %1512 = vmatprep.subr.mxu0 0.0
      %1513 = vmatpush1.msra.mxu0 0.0
      %1514 = vmatprep.subr.mxu0 0.0
      %1515 = vmatpush1.msra.mxu0 0.0
      %1516 = vmatprep.subr.mxu0 0.0
      %1517 = vmatpush1.msra.mxu0 %v1477
      %1518 = vmatprep.subr.mxu0 0.0
      %1519 = vmatpush1.msra.mxu0 %v1475
      %1520 = vmatprep.subr.mxu0 0.0
      %1521 = vmatpush1.msra.mxu0 %v1473
      %1522 = vmatprep.subr.mxu0 0.0
      %1523 = vmatpush2.msra.mxu0 0.0
      %1524 = vmatprep.subr.mxu0 0.0
      %1525 = vmatpush2.msra.mxu0 0.0
      %1526 = vmatprep.subr.mxu0 0.0
      %1527 = vmatpush2.msra.mxu0 0.0
      %1528 = vmatprep.subr.mxu0 0.0
      %1529 = vmatpush2.msra.mxu0 0.0
      %1530 = vmatprep.subr.mxu0 0.0
      %1531 = vmatpush2.msra.mxu0 0.0
      %1532 = vmatprep.subr.mxu0 0.0
      %1533 = vmatpush2.msra.mxu0 0.0
      %1534 = vmatprep.subr.mxu0 0.0
      %1535 = vmatpush2.msra.mxu0 0.0
      %1536 = vmatprep.subr.mxu0 0.0
      %1537 = vmatpush2.msra.mxu0 0.0
      %1538 = vmatprep.subr.mxu0 0.0
      %1539 = vmatpush2.msra.mxu0 0.0
      %1540 = vmatprep.subr.mxu0 0.0
      %1541 = vmatpush2.msra.mxu0 0.0
      %1542 = vmatprep.subr.mxu0 0.0
      %1543 = vmatpush2.msra.mxu0 0.0
      %1544 = vmatprep.subr.mxu0 0.0
      %1545 = vmatpush2.msra.mxu0 0.0
      %1546 = vmatprep.subr.mxu0 0.0
      %1547 = vmatpush2.msra.mxu0 0.0
      %1548 = vmatprep.subr.mxu0 0.0
      %1549 = vmatpush2.msra.mxu0 0.0
      %1550 = vmatprep.subr.mxu0 0.0
      %1551 = vmatpush2.msra.mxu0 0.0
      %1552 = vmatprep.subr.mxu0 0.0
      %1553 = vmatpush2.msra.mxu0 0.0
      %1554 = vmatprep.mubr.f32.mxu0 0.0
      %1555 = vmatmul.mubr.f32.gmra.mxu0 %v1482
      %v1556 = vpop.f32.mrf.mxu0
      %v1557 = vadd.f32 0.0, %v1556
      %v1558 = vpop.f32.mrf.mxu0
      %1559 = vmatprep.mubr.f32.mxu0 0.0
      %1560 = vmatmul.mubr.f32.gmra.mxu0 %v1485
      %v1561 = vpop.f32.mrf.mxu0
      %v1562 = vadd.f32 0.0, %v1561
      %v1563 = vpop.f32.mrf.mxu0
      %1564 = vmatprep.mubr.f32.mxu0 0.0
      %1565 = vmatmul.mubr.f32.gmra.mxu0 %v1488
      %v1566 = vpop.f32.mrf.mxu0
      %v1567 = vadd.f32 0.0, %v1566
      %v1568 = vpop.f32.mrf.mxu0
      %1569 = vdwg.mxu0
      %1570 = vrot.lane.b32.xlu0 %v1064, 112
      %v1571 = vpop.permute.xlu0 %1570
      %1572 = vrot.lane.b32.xlu0 %v1069, 112
      %v1573 = vpop.permute.xlu0 %1572
      %1574 = vrot.lane.b32.xlu0 %v1074, 112
      %v1575 = vpop.permute.xlu0 %1574
      %1576 = vrot.lane.b32.xlu0 %v1064, 80
      %v1577 = vpop.permute.xlu0 %1576
      %1578 = vrot.lane.b32.xlu0 %v1069, 80
      %v1579 = vpop.permute.xlu0 %1578
      %1580 = vrot.lane.b32.xlu0 %v1074, 80
      %v1581 = vpop.permute.xlu0 %1580
      %v1582 = vsel %vm1104, %v1571, 0
      %v1584 = vsel %vm1104, %v1573, 0
      %v1586 = vsel %vm1104, %v1575, 0
      %v1588 = vsel %vm1104, %v1577, 0
      %v1590 = vsel %vm1104, %v1579, 0
      %v1592 = vsel %vm1104, %v1581, 0
      %1594 = vmatprep.subr.mxu0 0.0
      %1595 = vmatpush1.xpose.msra.mxu0 0.0
      %1596 = vmatprep.subr.mxu0 0.0
      %1597 = vmatpush1.xpose.msra.mxu0 0.0
      %1598 = vmatprep.subr.mxu0 0.0
      %1599 = vmatpush1.xpose.msra.mxu0 0.0
      %1600 = vmatprep.subr.mxu0 0.0
      %1601 = vmatpush1.xpose.msra.mxu0 0.0
      %1602 = vmatprep.subr.mxu0 0.0
      %1603 = vmatpush1.xpose.msra.mxu0 0.0
      %1604 = vmatprep.subr.mxu0 0.0
      %1605 = vmatpush1.xpose.msra.mxu0 0.0
      %1606 = vmatprep.subr.mxu0 0.0
      %1607 = vmatpush1.xpose.msra.mxu0 0.0
      %1608 = vmatprep.subr.mxu0 0.0
      %1609 = vmatpush1.xpose.msra.mxu0 0.0
      %1610 = vmatprep.subr.mxu0 0.0
      %1611 = vmatpush1.xpose.msra.mxu0 0.0
      %1612 = vmatprep.subr.mxu0 0.0
      %1613 = vmatpush1.xpose.msra.mxu0 0.0
      %1614 = vmatprep.subr.mxu0 0.0
      %1615 = vmatpush1.xpose.msra.mxu0 0.0
      %1616 = vmatprep.subr.mxu0 0.0
      %1617 = vmatpush1.xpose.msra.mxu0 0.0
      %1618 = vmatprep.subr.mxu0 0.0
      %1619 = vmatpush1.xpose.msra.mxu0 0.0
      %1620 = vmatprep.subr.mxu0 0.0
      %1621 = vmatpush1.xpose.msra.mxu0 %v1592
      %1622 = vmatprep.subr.mxu0 0.0
      %1623 = vmatpush1.xpose.msra.mxu0 %v1590
      %1624 = vmatprep.subr.mxu0 0.0
      %1625 = vmatpush1.xpose.msra.mxu0 %v1588
      %1626 = vmatprep.subr.mxu0 0.0
      %1627 = vmatpush2.xpose.msra.mxu0 0.0
      %1628 = vmatprep.subr.mxu0 0.0
      %1629 = vmatpush2.xpose.msra.mxu0 0.0
      %1630 = vmatprep.subr.mxu0 0.0
      %1631 = vmatpush2.xpose.msra.mxu0 0.0
      %1632 = vmatprep.subr.mxu0 0.0
      %1633 = vmatpush2.xpose.msra.mxu0 0.0
      %1634 = vmatprep.subr.mxu0 0.0
      %1635 = vmatpush2.xpose.msra.mxu0 0.0
      %1636 = vmatprep.subr.mxu0 0.0
      %1637 = vmatpush2.xpose.msra.mxu0 0.0
      %1638 = vmatprep.subr.mxu0 0.0
      %1639 = vmatpush2.xpose.msra.mxu0 0.0
      %1640 = vmatprep.subr.mxu0 0.0
      %1641 = vmatpush2.xpose.msra.mxu0 0.0
      %1642 = vmatprep.subr.mxu0 0.0
      %1643 = vmatpush2.xpose.msra.mxu0 0.0
      %1644 = vmatprep.subr.mxu0 0.0
      %1645 = vmatpush2.xpose.msra.mxu0 0.0
      %1646 = vmatprep.subr.mxu0 0.0
      %1647 = vmatpush2.xpose.msra.mxu0 0.0
      %1648 = vmatprep.subr.mxu0 0.0
      %1649 = vmatpush2.xpose.msra.mxu0 0.0
      %1650 = vmatprep.subr.mxu0 0.0
      %1651 = vmatpush2.xpose.msra.mxu0 0.0
      %1652 = vmatprep.subr.mxu0 0.0
      %1653 = vmatpush2.xpose.msra.mxu0 0.0
      %1654 = vmatprep.subr.mxu0 0.0
      %1655 = vmatpush2.xpose.msra.mxu0 0.0
      %1656 = vmatprep.subr.mxu0 0.0
      %1657 = vmatpush2.xpose.msra.mxu0 0.0
      %1658 = vmatprep.mubr.f32.mxu0 0.0
      %1659 = vmatmul.mubr.f32.gmra.mxu0 %v1582
      %v1660 = vpop.f32.mrf.mxu0
      %v1661 = vadd.f32 0.0, %v1660
      %v1662 = vpop.f32.mrf.mxu0
      %1663 = vmatprep.mubr.f32.mxu0 0.0
      %1664 = vmatmul.mubr.f32.gmra.mxu0 %v1584
      %v1665 = vpop.f32.mrf.mxu0
      %v1666 = vadd.f32 0.0, %v1665
      %v1667 = vpop.f32.mrf.mxu0
      %1668 = vmatprep.mubr.f32.mxu0 0.0
      %1669 = vmatmul.mubr.f32.gmra.mxu0 %v1586
      %v1670 = vpop.f32.mrf.mxu0
      %v1671 = vadd.f32 0.0, %v1670
      %v1672 = vpop.f32.mrf.mxu0
      %1673 = vdwg.mxu0
      %v1674 = vsel %vm1094, %v1661, -1e+30
      %v1675 = vsel %vm1094, %v1666, -1e+30
      %v1676 = vsel %vm1094, %v1671, -1e+30
      %v1677 = vsel %vm1200, %v1674, -inf
      %1678 = vmax.xlane.f32.xlu0 %v1677
      %v1679 = vpop.xlane.xlu0 %1678
      %v1680 = vsel %vm1200, %v1675, -inf
      %1681 = vmax.xlane.f32.xlu0 %v1680
      %v1682 = vpop.xlane.xlu0 %1681
      %v1683 = vsel %vm1200, %v1676, -inf
      %1684 = vmax.xlane.f32.xlu0 %v1683
      %v1685 = vpop.xlane.xlu0 %1684
      %v1686 = vsub.f32 %v1674, %v1679
      %v1687 = vsub.f32 %v1675, %v1682
      %v1688 = vsub.f32 %v1676, %v1685
      %v1689 = vmul.f32 %v1686, 1.442695
      %v1690 = vpow.pop %v1689
      %v1691 = vmul.f32 %v1687, 1.442695
      %v1692 = vpow.pop %v1691
      %v1693 = vmul.f32 %v1688, 1.442695
      %v1694 = vpow.pop %v1693
      %v1695 = vsel %vm1200, %v1690, 0.0
      %1696 = vadd.xlane.f32.xlu0 %v1695
      %v1697 = vpop.xlane.xlu0 %1696
      %v1698 = vsel %vm1200, %v1692, 0.0
      %1699 = vadd.xlane.f32.xlu0 %v1698
      %v1700 = vpop.xlane.xlu0 %1699
      %v1701 = vsel %vm1200, %v1694, 0.0
      %1702 = vadd.xlane.f32.xlu0 %v1701
      %v1703 = vpop.xlane.xlu0 %1702
      %v1704 = vrcp.pop %v1697
      %v1705 = vrcp.pop %v1700
      %v1706 = vrcp.pop %v1703
      %v1707 = vmul.f32 %v1690, %v1704
      %v1708 = vmul.f32 %v1692, %v1705
      %v1709 = vmul.f32 %v1694, %v1706
      %1710 = vrot.lane.b32.xlu0 %v1064, 48
      %v1711 = vpop.permute.xlu0 %1710
      %1712 = vrot.lane.b32.xlu0 %v1069, 48
      %v1713 = vpop.permute.xlu0 %1712
      %1714 = vrot.lane.b32.xlu0 %v1074, 48
      %v1715 = vpop.permute.xlu0 %1714
      %v1720 = vsel %vm1200, %v1707, 0
      %v1723 = vsel %vm1200, %v1708, 0
      %v1726 = vsel %vm1200, %v1709, 0
      %1728 = vmatprep.subr.mxu0 0.0
      %1729 = vmatpush1.msra.mxu0 0.0
      %1730 = vmatprep.subr.mxu0 0.0
      %1731 = vmatpush1.msra.mxu0 0.0
      %1732 = vmatprep.subr.mxu0 0.0
      %1733 = vmatpush1.msra.mxu0 0.0
      %1734 = vmatprep.subr.mxu0 0.0
      %1735 = vmatpush1.msra.mxu0 0.0
      %1736 = vmatprep.subr.mxu0 0.0
      %1737 = vmatpush1.msra.mxu0 0.0
      %1738 = vmatprep.subr.mxu0 0.0
      %1739 = vmatpush1.msra.mxu0 0.0
      %1740 = vmatprep.subr.mxu0 0.0
      %1741 = vmatpush1.msra.mxu0 0.0
      %1742 = vmatprep.subr.mxu0 0.0
      %1743 = vmatpush1.msra.mxu0 0.0
      %1744 = vmatprep.subr.mxu0 0.0
      %1745 = vmatpush1.msra.mxu0 0.0
      %1746 = vmatprep.subr.mxu0 0.0
      %1747 = vmatpush1.msra.mxu0 0.0
      %1748 = vmatprep.subr.mxu0 0.0
      %1749 = vmatpush1.msra.mxu0 0.0
      %1750 = vmatprep.subr.mxu0 0.0
      %1751 = vmatpush1.msra.mxu0 0.0
      %1752 = vmatprep.subr.mxu0 0.0
      %1753 = vmatpush1.msra.mxu0 0.0
      %1754 = vmatprep.subr.mxu0 0.0
      %1755 = vmatpush1.msra.mxu0 %v1715
      %1756 = vmatprep.subr.mxu0 0.0
      %1757 = vmatpush1.msra.mxu0 %v1713
      %1758 = vmatprep.subr.mxu0 0.0
      %1759 = vmatpush1.msra.mxu0 %v1711
      %1760 = vmatprep.subr.mxu0 0.0
      %1761 = vmatpush2.msra.mxu0 0.0
      %1762 = vmatprep.subr.mxu0 0.0
      %1763 = vmatpush2.msra.mxu0 0.0
      %1764 = vmatprep.subr.mxu0 0.0
      %1765 = vmatpush2.msra.mxu0 0.0
      %1766 = vmatprep.subr.mxu0 0.0
      %1767 = vmatpush2.msra.mxu0 0.0
      %1768 = vmatprep.subr.mxu0 0.0
      %1769 = vmatpush2.msra.mxu0 0.0
      %1770 = vmatprep.subr.mxu0 0.0
      %1771 = vmatpush2.msra.mxu0 0.0
      %1772 = vmatprep.subr.mxu0 0.0
      %1773 = vmatpush2.msra.mxu0 0.0
      %1774 = vmatprep.subr.mxu0 0.0
      %1775 = vmatpush2.msra.mxu0 0.0
      %1776 = vmatprep.subr.mxu0 0.0
      %1777 = vmatpush2.msra.mxu0 0.0
      %1778 = vmatprep.subr.mxu0 0.0
      %1779 = vmatpush2.msra.mxu0 0.0
      %1780 = vmatprep.subr.mxu0 0.0
      %1781 = vmatpush2.msra.mxu0 0.0
      %1782 = vmatprep.subr.mxu0 0.0
      %1783 = vmatpush2.msra.mxu0 0.0
      %1784 = vmatprep.subr.mxu0 0.0
      %1785 = vmatpush2.msra.mxu0 0.0
      %1786 = vmatprep.subr.mxu0 0.0
      %1787 = vmatpush2.msra.mxu0 0.0
      %1788 = vmatprep.subr.mxu0 0.0
      %1789 = vmatpush2.msra.mxu0 0.0
      %1790 = vmatprep.subr.mxu0 0.0
      %1791 = vmatpush2.msra.mxu0 0.0
      %1792 = vmatprep.mubr.f32.mxu0 0.0
      %1793 = vmatmul.mubr.f32.gmra.mxu0 %v1720
      %v1794 = vpop.f32.mrf.mxu0
      %v1795 = vadd.f32 0.0, %v1794
      %v1796 = vpop.f32.mrf.mxu0
      %1797 = vmatprep.mubr.f32.mxu0 0.0
      %1798 = vmatmul.mubr.f32.gmra.mxu0 %v1723
      %v1799 = vpop.f32.mrf.mxu0
      %v1800 = vadd.f32 0.0, %v1799
      %v1801 = vpop.f32.mrf.mxu0
      %1802 = vmatprep.mubr.f32.mxu0 0.0
      %1803 = vmatmul.mubr.f32.gmra.mxu0 %v1726
      %v1804 = vpop.f32.mrf.mxu0
      %v1805 = vadd.f32 0.0, %v1804
      %v1806 = vpop.f32.mrf.mxu0
      %1807 = vdwg.mxu0
      %1808 = vrot.lane.b32.xlu0 %v1064, 104
      %v1809 = vpop.permute.xlu0 %1808
      %1810 = vrot.lane.b32.xlu0 %v1069, 104
      %v1811 = vpop.permute.xlu0 %1810
      %1812 = vrot.lane.b32.xlu0 %v1074, 104
      %v1813 = vpop.permute.xlu0 %1812
      %1814 = vrot.lane.b32.xlu0 %v1064, 72
      %v1815 = vpop.permute.xlu0 %1814
      %1816 = vrot.lane.b32.xlu0 %v1069, 72
      %v1817 = vpop.permute.xlu0 %1816
      %1818 = vrot.lane.b32.xlu0 %v1074, 72
      %v1819 = vpop.permute.xlu0 %1818
      %v1820 = vsel %vm1104, %v1809, 0
      %v1822 = vsel %vm1104, %v1811, 0
      %v1824 = vsel %vm1104, %v1813, 0
      %v1826 = vsel %vm1104, %v1815, 0
      %v1828 = vsel %vm1104, %v1817, 0
      %v1830 = vsel %vm1104, %v1819, 0
      %1832 = vmatprep.subr.mxu0 0.0
      %1833 = vmatpush1.xpose.msra.mxu0 0.0
      %1834 = vmatprep.subr.mxu0 0.0
      %1835 = vmatpush1.xpose.msra.mxu0 0.0
      %1836 = vmatprep.subr.mxu0 0.0
      %1837 = vmatpush1.xpose.msra.mxu0 0.0
      %1838 = vmatprep.subr.mxu0 0.0
      %1839 = vmatpush1.xpose.msra.mxu0 0.0
      %1840 = vmatprep.subr.mxu0 0.0
      %1841 = vmatpush1.xpose.msra.mxu0 0.0
      %1842 = vmatprep.subr.mxu0 0.0
      %1843 = vmatpush1.xpose.msra.mxu0 0.0
      %1844 = vmatprep.subr.mxu0 0.0
      %1845 = vmatpush1.xpose.msra.mxu0 0.0
      %1846 = vmatprep.subr.mxu0 0.0
      %1847 = vmatpush1.xpose.msra.mxu0 0.0
      %1848 = vmatprep.subr.mxu0 0.0
      %1849 = vmatpush1.xpose.msra.mxu0 0.0
      %1850 = vmatprep.subr.mxu0 0.0
      %1851 = vmatpush1.xpose.msra.mxu0 0.0
      %1852 = vmatprep.subr.mxu0 0.0
      %1853 = vmatpush1.xpose.msra.mxu0 0.0
      %1854 = vmatprep.subr.mxu0 0.0
      %1855 = vmatpush1.xpose.msra.mxu0 0.0
      %1856 = vmatprep.subr.mxu0 0.0
      %1857 = vmatpush1.xpose.msra.mxu0 0.0
      %1858 = vmatprep.subr.mxu0 0.0
      %1859 = vmatpush1.xpose.msra.mxu0 %v1830
      %1860 = vmatprep.subr.mxu0 0.0
      %1861 = vmatpush1.xpose.msra.mxu0 %v1828
      %1862 = vmatprep.subr.mxu0 0.0
      %1863 = vmatpush1.xpose.msra.mxu0 %v1826
      %1864 = vmatprep.subr.mxu0 0.0
      %1865 = vmatpush2.xpose.msra.mxu0 0.0
      %1866 = vmatprep.subr.mxu0 0.0
      %1867 = vmatpush2.xpose.msra.mxu0 0.0
      %1868 = vmatprep.subr.mxu0 0.0
      %1869 = vmatpush2.xpose.msra.mxu0 0.0
      %1870 = vmatprep.subr.mxu0 0.0
      %1871 = vmatpush2.xpose.msra.mxu0 0.0
      %1872 = vmatprep.subr.mxu0 0.0
      %1873 = vmatpush2.xpose.msra.mxu0 0.0
      %1874 = vmatprep.subr.mxu0 0.0
      %1875 = vmatpush2.xpose.msra.mxu0 0.0
      %1876 = vmatprep.subr.mxu0 0.0
      %1877 = vmatpush2.xpose.msra.mxu0 0.0
      %1878 = vmatprep.subr.mxu0 0.0
      %1879 = vmatpush2.xpose.msra.mxu0 0.0
      %1880 = vmatprep.subr.mxu0 0.0
      %1881 = vmatpush2.xpose.msra.mxu0 0.0
      %1882 = vmatprep.subr.mxu0 0.0
      %1883 = vmatpush2.xpose.msra.mxu0 0.0
      %1884 = vmatprep.subr.mxu0 0.0
      %1885 = vmatpush2.xpose.msra.mxu0 0.0
      %1886 = vmatprep.subr.mxu0 0.0
      %1887 = vmatpush2.xpose.msra.mxu0 0.0
      %1888 = vmatprep.subr.mxu0 0.0
      %1889 = vmatpush2.xpose.msra.mxu0 0.0
      %1890 = vmatprep.subr.mxu0 0.0
      %1891 = vmatpush2.xpose.msra.mxu0 0.0
      %1892 = vmatprep.subr.mxu0 0.0
      %1893 = vmatpush2.xpose.msra.mxu0 0.0
      %1894 = vmatprep.subr.mxu0 0.0
      %1895 = vmatpush2.xpose.msra.mxu0 0.0
      %1896 = vmatprep.mubr.f32.mxu0 0.0
      %1897 = vmatmul.mubr.f32.gmra.mxu0 %v1820
      %v1898 = vpop.f32.mrf.mxu0
      %v1899 = vadd.f32 0.0, %v1898
      %v1900 = vpop.f32.mrf.mxu0
      %1901 = vmatprep.mubr.f32.mxu0 0.0
      %1902 = vmatmul.mubr.f32.gmra.mxu0 %v1822
      %v1903 = vpop.f32.mrf.mxu0
      %v1904 = vadd.f32 0.0, %v1903
      %v1905 = vpop.f32.mrf.mxu0
      %1906 = vmatprep.mubr.f32.mxu0 0.0
      %1907 = vmatmul.mubr.f32.gmra.mxu0 %v1824
      %v1908 = vpop.f32.mrf.mxu0
      %v1909 = vadd.f32 0.0, %v1908
      %v1910 = vpop.f32.mrf.mxu0
      %1911 = vdwg.mxu0
      %v1912 = vsel %vm1094, %v1899, -1e+30
      %v1913 = vsel %vm1094, %v1904, -1e+30
      %v1914 = vsel %vm1094, %v1909, -1e+30
      %v1915 = vsel %vm1200, %v1912, -inf
      %1916 = vmax.xlane.f32.xlu0 %v1915
      %v1917 = vpop.xlane.xlu0 %1916
      %v1918 = vsel %vm1200, %v1913, -inf
      %1919 = vmax.xlane.f32.xlu0 %v1918
      %v1920 = vpop.xlane.xlu0 %1919
      %v1921 = vsel %vm1200, %v1914, -inf
      %1922 = vmax.xlane.f32.xlu0 %v1921
      %v1923 = vpop.xlane.xlu0 %1922
      %v1924 = vsub.f32 %v1912, %v1917
      %v1925 = vsub.f32 %v1913, %v1920
      %v1926 = vsub.f32 %v1914, %v1923
      %v1927 = vmul.f32 %v1924, 1.442695
      %v1928 = vpow.pop %v1927
      %v1929 = vmul.f32 %v1925, 1.442695
      %v1930 = vpow.pop %v1929
      %v1931 = vmul.f32 %v1926, 1.442695
      %v1932 = vpow.pop %v1931
      %v1933 = vsel %vm1200, %v1928, 0.0
      %1934 = vadd.xlane.f32.xlu0 %v1933
      %v1935 = vpop.xlane.xlu0 %1934
      %v1936 = vsel %vm1200, %v1930, 0.0
      %1937 = vadd.xlane.f32.xlu0 %v1936
      %v1938 = vpop.xlane.xlu0 %1937
      %v1939 = vsel %vm1200, %v1932, 0.0
      %1940 = vadd.xlane.f32.xlu0 %v1939
      %v1941 = vpop.xlane.xlu0 %1940
      %v1942 = vrcp.pop %v1935
      %v1943 = vrcp.pop %v1938
      %v1944 = vrcp.pop %v1941
      %v1945 = vmul.f32 %v1928, %v1942
      %v1946 = vmul.f32 %v1930, %v1943
      %v1947 = vmul.f32 %v1932, %v1944
      %1948 = vrot.lane.b32.xlu0 %v1064, 40
      %v1949 = vpop.permute.xlu0 %1948
      %1950 = vrot.lane.b32.xlu0 %v1069, 40
      %v1951 = vpop.permute.xlu0 %1950
      %1952 = vrot.lane.b32.xlu0 %v1074, 40
      %v1953 = vpop.permute.xlu0 %1952
      %v1958 = vsel %vm1200, %v1945, 0
      %v1961 = vsel %vm1200, %v1946, 0
      %v1964 = vsel %vm1200, %v1947, 0
      %1966 = vmatprep.subr.mxu0 0.0
      %1967 = vmatpush1.msra.mxu0 0.0
      %1968 = vmatprep.subr.mxu0 0.0
      %1969 = vmatpush1.msra.mxu0 0.0
      %1970 = vmatprep.subr.mxu0 0.0
      %1971 = vmatpush1.msra.mxu0 0.0
      %1972 = vmatprep.subr.mxu0 0.0
      %1973 = vmatpush1.msra.mxu0 0.0
      %1974 = vmatprep.subr.mxu0 0.0
      %1975 = vmatpush1.msra.mxu0 0.0
      %1976 = vmatprep.subr.mxu0 0.0
      %1977 = vmatpush1.msra.mxu0 0.0
      %1978 = vmatprep.subr.mxu0 0.0
      %1979 = vmatpush1.msra.mxu0 0.0
      %1980 = vmatprep.subr.mxu0 0.0
      %1981 = vmatpush1.msra.mxu0 0.0
      %1982 = vmatprep.subr.mxu0 0.0
      %1983 = vmatpush1.msra.mxu0 0.0
      %1984 = vmatprep.subr.mxu0 0.0
      %1985 = vmatpush1.msra.mxu0 0.0
      %1986 = vmatprep.subr.mxu0 0.0
      %1987 = vmatpush1.msra.mxu0 0.0
      %1988 = vmatprep.subr.mxu0 0.0
      %1989 = vmatpush1.msra.mxu0 0.0
      %1990 = vmatprep.subr.mxu0 0.0
      %1991 = vmatpush1.msra.mxu0 0.0
      %1992 = vmatprep.subr.mxu0 0.0
      %1993 = vmatpush1.msra.mxu0 %v1953
      %1994 = vmatprep.subr.mxu0 0.0
      %1995 = vmatpush1.msra.mxu0 %v1951
      %1996 = vmatprep.subr.mxu0 0.0
      %1997 = vmatpush1.msra.mxu0 %v1949
      %1998 = vmatprep.subr.mxu0 0.0
      %1999 = vmatpush2.msra.mxu0 0.0
      %2000 = vmatprep.subr.mxu0 0.0
      %2001 = vmatpush2.msra.mxu0 0.0
      %2002 = vmatprep.subr.mxu0 0.0
      %2003 = vmatpush2.msra.mxu0 0.0
      %2004 = vmatprep.subr.mxu0 0.0
      %2005 = vmatpush2.msra.mxu0 0.0
      %2006 = vmatprep.subr.mxu0 0.0
      %2007 = vmatpush2.msra.mxu0 0.0
      %2008 = vmatprep.subr.mxu0 0.0
      %2009 = vmatpush2.msra.mxu0 0.0
      %2010 = vmatprep.subr.mxu0 0.0
      %2011 = vmatpush2.msra.mxu0 0.0
      %2012 = vmatprep.subr.mxu0 0.0
      %2013 = vmatpush2.msra.mxu0 0.0
      %2014 = vmatprep.subr.mxu0 0.0
      %2015 = vmatpush2.msra.mxu0 0.0
      %2016 = vmatprep.subr.mxu0 0.0
      %2017 = vmatpush2.msra.mxu0 0.0
      %2018 = vmatprep.subr.mxu0 0.0
      %2019 = vmatpush2.msra.mxu0 0.0
      %2020 = vmatprep.subr.mxu0 0.0
      %2021 = vmatpush2.msra.mxu0 0.0
      %2022 = vmatprep.subr.mxu0 0.0
      %2023 = vmatpush2.msra.mxu0 0.0
      %2024 = vmatprep.subr.mxu0 0.0
      %2025 = vmatpush2.msra.mxu0 0.0
      %2026 = vmatprep.subr.mxu0 0.0
      %2027 = vmatpush2.msra.mxu0 0.0
      %2028 = vmatprep.subr.mxu0 0.0
      %2029 = vmatpush2.msra.mxu0 0.0
      %2030 = vmatprep.mubr.f32.mxu0 0.0
      %2031 = vmatmul.mubr.f32.gmra.mxu0 %v1958
      %v2032 = vpop.f32.mrf.mxu0
      %v2033 = vadd.f32 0.0, %v2032
      %v2034 = vpop.f32.mrf.mxu0
      %2035 = vmatprep.mubr.f32.mxu0 0.0
      %2036 = vmatmul.mubr.f32.gmra.mxu0 %v1961
      %v2037 = vpop.f32.mrf.mxu0
      %v2038 = vadd.f32 0.0, %v2037
      %v2039 = vpop.f32.mrf.mxu0
      %2040 = vmatprep.mubr.f32.mxu0 0.0
      %2041 = vmatmul.mubr.f32.gmra.mxu0 %v1964
      %v2042 = vpop.f32.mrf.mxu0
      %v2043 = vadd.f32 0.0, %v2042
      %v2044 = vpop.f32.mrf.mxu0
      %2045 = vdwg.mxu0
      %2049 = vrot.lane.b32.xlu0 %v1557, 8
      %v2050 = vpop.permute.xlu0 %2049
      %2051 = vrot.lane.b32.xlu0 %v1562, 8
      %v2052 = vpop.permute.xlu0 %2051
      %2053 = vrot.lane.b32.xlu0 %v1567, 8
      %v2054 = vpop.permute.xlu0 %2053
      %2061 = vrot.lane.b32.xlu0 %v1795, 16
      %v2062 = vpop.permute.xlu0 %2061
      %2063 = vrot.lane.b32.xlu0 %v1800, 16
      %v2064 = vpop.permute.xlu0 %2063
      %2065 = vrot.lane.b32.xlu0 %v1805, 16
      %v2066 = vpop.permute.xlu0 %2065
      %2073 = vrot.lane.b32.xlu0 %v2033, 24
      %v2074 = vpop.permute.xlu0 %2073
      %2075 = vrot.lane.b32.xlu0 %v2038, 24
      %v2076 = vpop.permute.xlu0 %2075
      %2077 = vrot.lane.b32.xlu0 %v2043, 24
      %v2078 = vpop.permute.xlu0 %2077
      %v2082 = vsel %vm1104, %v1319, %v2050
      %v2083 = vsel %vm1104, %v1324, %v2052
      %v2084 = vsel %vm1104, %v1329, %v2054
      %vm2085 = vcmask 130048
      %v2086 = vsel %vm2085, %v2082, %v2062
      %v2087 = vsel %vm2085, %v2083, %v2064
      %v2088 = vsel %vm2085, %v2084, %v2066
      %v2089 = vsel %vm1200, %v2086, %v2074
      %v2090 = vsel %vm1200, %v2087, %v2076
      %v2091 = vsel %vm1200, %v2088, %v2078
      %2095 = vrot.lane.b32.xlu0 %v1079, 96
      %v2096 = vpop.permute.xlu0 %2095
      %2097 = vrot.lane.b32.xlu0 %v1084, 96
      %v2098 = vpop.permute.xlu0 %2097
      %2099 = vrot.lane.b32.xlu0 %v1089, 96
      %v2100 = vpop.permute.xlu0 %2099
      %v2101 = vsel %vm1104, %v1079, 0
      %v2103 = vsel %vm1104, %v1084, 0
      %v2105 = vsel %vm1104, %v1089, 0
      %v2107 = vsel %vm1104, %v2096, 0
      %v2109 = vsel %vm1104, %v2098, 0
      %v2111 = vsel %vm1104, %v2100, 0
      %2113 = vmatprep.subr.mxu0 0.0
      %2114 = vmatpush1.xpose.msra.mxu0 0.0
      %2115 = vmatprep.subr.mxu0 0.0
      %2116 = vmatpush1.xpose.msra.mxu0 0.0
      %2117 = vmatprep.subr.mxu0 0.0
      %2118 = vmatpush1.xpose.msra.mxu0 0.0
      %2119 = vmatprep.subr.mxu0 0.0
      %2120 = vmatpush1.xpose.msra.mxu0 0.0
      %2121 = vmatprep.subr.mxu0 0.0
      %2122 = vmatpush1.xpose.msra.mxu0 0.0
      %2123 = vmatprep.subr.mxu0 0.0
      %2124 = vmatpush1.xpose.msra.mxu0 0.0
      %2125 = vmatprep.subr.mxu0 0.0
      %2126 = vmatpush1.xpose.msra.mxu0 0.0
      %2127 = vmatprep.subr.mxu0 0.0
      %2128 = vmatpush1.xpose.msra.mxu0 0.0
      %2129 = vmatprep.subr.mxu0 0.0
      %2130 = vmatpush1.xpose.msra.mxu0 0.0
      %2131 = vmatprep.subr.mxu0 0.0
      %2132 = vmatpush1.xpose.msra.mxu0 0.0
      %2133 = vmatprep.subr.mxu0 0.0
      %2134 = vmatpush1.xpose.msra.mxu0 0.0
      %2135 = vmatprep.subr.mxu0 0.0
      %2136 = vmatpush1.xpose.msra.mxu0 0.0
      %2137 = vmatprep.subr.mxu0 0.0
      %2138 = vmatpush1.xpose.msra.mxu0 0.0
      %2139 = vmatprep.subr.mxu0 0.0
      %2140 = vmatpush1.xpose.msra.mxu0 %v2111
      %2141 = vmatprep.subr.mxu0 0.0
      %2142 = vmatpush1.xpose.msra.mxu0 %v2109
      %2143 = vmatprep.subr.mxu0 0.0
      %2144 = vmatpush1.xpose.msra.mxu0 %v2107
      %2145 = vmatprep.subr.mxu0 0.0
      %2146 = vmatpush2.xpose.msra.mxu0 0.0
      %2147 = vmatprep.subr.mxu0 0.0
      %2148 = vmatpush2.xpose.msra.mxu0 0.0
      %2149 = vmatprep.subr.mxu0 0.0
      %2150 = vmatpush2.xpose.msra.mxu0 0.0
      %2151 = vmatprep.subr.mxu0 0.0
      %2152 = vmatpush2.xpose.msra.mxu0 0.0
      %2153 = vmatprep.subr.mxu0 0.0
      %2154 = vmatpush2.xpose.msra.mxu0 0.0
      %2155 = vmatprep.subr.mxu0 0.0
      %2156 = vmatpush2.xpose.msra.mxu0 0.0
      %2157 = vmatprep.subr.mxu0 0.0
      %2158 = vmatpush2.xpose.msra.mxu0 0.0
      %2159 = vmatprep.subr.mxu0 0.0
      %2160 = vmatpush2.xpose.msra.mxu0 0.0
      %2161 = vmatprep.subr.mxu0 0.0
      %2162 = vmatpush2.xpose.msra.mxu0 0.0
      %2163 = vmatprep.subr.mxu0 0.0
      %2164 = vmatpush2.xpose.msra.mxu0 0.0
      %2165 = vmatprep.subr.mxu0 0.0
      %2166 = vmatpush2.xpose.msra.mxu0 0.0
      %2167 = vmatprep.subr.mxu0 0.0
      %2168 = vmatpush2.xpose.msra.mxu0 0.0
      %2169 = vmatprep.subr.mxu0 0.0
      %2170 = vmatpush2.xpose.msra.mxu0 0.0
      %2171 = vmatprep.subr.mxu0 0.0
      %2172 = vmatpush2.xpose.msra.mxu0 0.0
      %2173 = vmatprep.subr.mxu0 0.0
      %2174 = vmatpush2.xpose.msra.mxu0 0.0
      %2175 = vmatprep.subr.mxu0 0.0
      %2176 = vmatpush2.xpose.msra.mxu0 0.0
      %2177 = vmatprep.mubr.f32.mxu0 0.0
      %2178 = vmatmul.mubr.f32.gmra.mxu0 %v2101
      %v2179 = vpop.f32.mrf.mxu0
      %v2180 = vadd.f32 0.0, %v2179
      %v2181 = vpop.f32.mrf.mxu0
      %2182 = vmatprep.mubr.f32.mxu0 0.0
      %2183 = vmatmul.mubr.f32.gmra.mxu0 %v2103
      %v2184 = vpop.f32.mrf.mxu0
      %v2185 = vadd.f32 0.0, %v2184
      %v2186 = vpop.f32.mrf.mxu0
      %2187 = vmatprep.mubr.f32.mxu0 0.0
      %2188 = vmatmul.mubr.f32.gmra.mxu0 %v2105
      %v2189 = vpop.f32.mrf.mxu0
      %v2190 = vadd.f32 0.0, %v2189
      %v2191 = vpop.f32.mrf.mxu0
      %2192 = vdwg.mxu0
      %v2193 = vsel %vm1094, %v2180, -1e+30
      %v2194 = vsel %vm1094, %v2185, -1e+30
      %v2195 = vsel %vm1094, %v2190, -1e+30
      %v2196 = vsel %vm1200, %v2193, -inf
      %2197 = vmax.xlane.f32.xlu0 %v2196
      %v2198 = vpop.xlane.xlu0 %2197
      %v2199 = vsel %vm1200, %v2194, -inf
      %2200 = vmax.xlane.f32.xlu0 %v2199
      %v2201 = vpop.xlane.xlu0 %2200
      %v2202 = vsel %vm1200, %v2195, -inf
      %2203 = vmax.xlane.f32.xlu0 %v2202
      %v2204 = vpop.xlane.xlu0 %2203
      %v2205 = vsub.f32 %v2193, %v2198
      %v2206 = vsub.f32 %v2194, %v2201
      %v2207 = vsub.f32 %v2195, %v2204
      %v2208 = vmul.f32 %v2205, 1.442695
      %v2209 = vpow.pop %v2208
      %v2210 = vmul.f32 %v2206, 1.442695
      %v2211 = vpow.pop %v2210
      %v2212 = vmul.f32 %v2207, 1.442695
      %v2213 = vpow.pop %v2212
      %v2214 = vsel %vm1200, %v2209, 0.0
      %2215 = vadd.xlane.f32.xlu0 %v2214
      %v2216 = vpop.xlane.xlu0 %2215
      %v2217 = vsel %vm1200, %v2211, 0.0
      %2218 = vadd.xlane.f32.xlu0 %v2217
      %v2219 = vpop.xlane.xlu0 %2218
      %v2220 = vsel %vm1200, %v2213, 0.0
      %2221 = vadd.xlane.f32.xlu0 %v2220
      %v2222 = vpop.xlane.xlu0 %2221
      %v2223 = vrcp.pop %v2216
      %v2224 = vrcp.pop %v2219
      %v2225 = vrcp.pop %v2222
      %v2226 = vmul.f32 %v2209, %v2223
      %v2227 = vmul.f32 %v2211, %v2224
      %v2228 = vmul.f32 %v2213, %v2225
      %2229 = vrot.lane.b32.xlu0 %v1079, 64
      %v2230 = vpop.permute.xlu0 %2229
      %2231 = vrot.lane.b32.xlu0 %v1084, 64
      %v2232 = vpop.permute.xlu0 %2231
      %2233 = vrot.lane.b32.xlu0 %v1089, 64
      %v2234 = vpop.permute.xlu0 %2233
      %v2239 = vsel %vm1200, %v2226, 0
      %v2242 = vsel %vm1200, %v2227, 0
      %v2245 = vsel %vm1200, %v2228, 0
      %2247 = vmatprep.subr.mxu0 0.0
      %2248 = vmatpush1.msra.mxu0 0.0
      %2249 = vmatprep.subr.mxu0 0.0
      %2250 = vmatpush1.msra.mxu0 0.0
      %2251 = vmatprep.subr.mxu0 0.0
      %2252 = vmatpush1.msra.mxu0 0.0
      %2253 = vmatprep.subr.mxu0 0.0
      %2254 = vmatpush1.msra.mxu0 0.0
      %2255 = vmatprep.subr.mxu0 0.0
      %2256 = vmatpush1.msra.mxu0 0.0
      %2257 = vmatprep.subr.mxu0 0.0
      %2258 = vmatpush1.msra.mxu0 0.0
      %2259 = vmatprep.subr.mxu0 0.0
      %2260 = vmatpush1.msra.mxu0 0.0
      %2261 = vmatprep.subr.mxu0 0.0
      %2262 = vmatpush1.msra.mxu0 0.0
      %2263 = vmatprep.subr.mxu0 0.0
      %2264 = vmatpush1.msra.mxu0 0.0
      %2265 = vmatprep.subr.mxu0 0.0
      %2266 = vmatpush1.msra.mxu0 0.0
      %2267 = vmatprep.subr.mxu0 0.0
      %2268 = vmatpush1.msra.mxu0 0.0
      %2269 = vmatprep.subr.mxu0 0.0
      %2270 = vmatpush1.msra.mxu0 0.0
      %2271 = vmatprep.subr.mxu0 0.0
      %2272 = vmatpush1.msra.mxu0 0.0
      %2273 = vmatprep.subr.mxu0 0.0
      %2274 = vmatpush1.msra.mxu0 %v2234
      %2275 = vmatprep.subr.mxu0 0.0
      %2276 = vmatpush1.msra.mxu0 %v2232
      %2277 = vmatprep.subr.mxu0 0.0
      %2278 = vmatpush1.msra.mxu0 %v2230
      %2279 = vmatprep.subr.mxu0 0.0
      %2280 = vmatpush2.msra.mxu0 0.0
      %2281 = vmatprep.subr.mxu0 0.0
      %2282 = vmatpush2.msra.mxu0 0.0
      %2283 = vmatprep.subr.mxu0 0.0
      %2284 = vmatpush2.msra.mxu0 0.0
      %2285 = vmatprep.subr.mxu0 0.0
      %2286 = vmatpush2.msra.mxu0 0.0
      %2287 = vmatprep.subr.mxu0 0.0
      %2288 = vmatpush2.msra.mxu0 0.0
      %2289 = vmatprep.subr.mxu0 0.0
      %2290 = vmatpush2.msra.mxu0 0.0
      %2291 = vmatprep.subr.mxu0 0.0
      %2292 = vmatpush2.msra.mxu0 0.0
      %2293 = vmatprep.subr.mxu0 0.0
      %2294 = vmatpush2.msra.mxu0 0.0
      %2295 = vmatprep.subr.mxu0 0.0
      %2296 = vmatpush2.msra.mxu0 0.0
      %2297 = vmatprep.subr.mxu0 0.0
      %2298 = vmatpush2.msra.mxu0 0.0
      %2299 = vmatprep.subr.mxu0 0.0
      %2300 = vmatpush2.msra.mxu0 0.0
      %2301 = vmatprep.subr.mxu0 0.0
      %2302 = vmatpush2.msra.mxu0 0.0
      %2303 = vmatprep.subr.mxu0 0.0
      %2304 = vmatpush2.msra.mxu0 0.0
      %2305 = vmatprep.subr.mxu0 0.0
      %2306 = vmatpush2.msra.mxu0 0.0
      %2307 = vmatprep.subr.mxu0 0.0
      %2308 = vmatpush2.msra.mxu0 0.0
      %2309 = vmatprep.subr.mxu0 0.0
      %2310 = vmatpush2.msra.mxu0 0.0
      %2311 = vmatprep.mubr.f32.mxu0 0.0
      %2312 = vmatmul.mubr.f32.gmra.mxu0 %v2239
      %v2313 = vpop.f32.mrf.mxu0
      %v2314 = vadd.f32 0.0, %v2313
      %v2315 = vpop.f32.mrf.mxu0
      %2316 = vmatprep.mubr.f32.mxu0 0.0
      %2317 = vmatmul.mubr.f32.gmra.mxu0 %v2242
      %v2318 = vpop.f32.mrf.mxu0
      %v2319 = vadd.f32 0.0, %v2318
      %v2320 = vpop.f32.mrf.mxu0
      %2321 = vmatprep.mubr.f32.mxu0 0.0
      %2322 = vmatmul.mubr.f32.gmra.mxu0 %v2245
      %v2323 = vpop.f32.mrf.mxu0
      %v2324 = vadd.f32 0.0, %v2323
      %v2325 = vpop.f32.mrf.mxu0
      %2326 = vdwg.mxu0
      %2327 = vrot.lane.b32.xlu0 %v1079, 120
      %v2328 = vpop.permute.xlu0 %2327
      %2329 = vrot.lane.b32.xlu0 %v1084, 120
      %v2330 = vpop.permute.xlu0 %2329
      %2331 = vrot.lane.b32.xlu0 %v1089, 120
      %v2332 = vpop.permute.xlu0 %2331
      %2333 = vrot.lane.b32.xlu0 %v1079, 88
      %v2334 = vpop.permute.xlu0 %2333
      %2335 = vrot.lane.b32.xlu0 %v1084, 88
      %v2336 = vpop.permute.xlu0 %2335
      %2337 = vrot.lane.b32.xlu0 %v1089, 88
      %v2338 = vpop.permute.xlu0 %2337
      %v2339 = vsel %vm1104, %v2328, 0
      %v2341 = vsel %vm1104, %v2330, 0
      %v2343 = vsel %vm1104, %v2332, 0
      %v2345 = vsel %vm1104, %v2334, 0
      %v2347 = vsel %vm1104, %v2336, 0
      %v2349 = vsel %vm1104, %v2338, 0
      %2351 = vmatprep.subr.mxu0 0.0
      %2352 = vmatpush1.xpose.msra.mxu0 0.0
      %2353 = vmatprep.subr.mxu0 0.0
      %2354 = vmatpush1.xpose.msra.mxu0 0.0
      %2355 = vmatprep.subr.mxu0 0.0
      %2356 = vmatpush1.xpose.msra.mxu0 0.0
      %2357 = vmatprep.subr.mxu0 0.0
      %2358 = vmatpush1.xpose.msra.mxu0 0.0
      %2359 = vmatprep.subr.mxu0 0.0
      %2360 = vmatpush1.xpose.msra.mxu0 0.0
      %2361 = vmatprep.subr.mxu0 0.0
      %2362 = vmatpush1.xpose.msra.mxu0 0.0
      %2363 = vmatprep.subr.mxu0 0.0
      %2364 = vmatpush1.xpose.msra.mxu0 0.0
      %2365 = vmatprep.subr.mxu0 0.0
      %2366 = vmatpush1.xpose.msra.mxu0 0.0
      %2367 = vmatprep.subr.mxu0 0.0
      %2368 = vmatpush1.xpose.msra.mxu0 0.0
      %2369 = vmatprep.subr.mxu0 0.0
      %2370 = vmatpush1.xpose.msra.mxu0 0.0
      %2371 = vmatprep.subr.mxu0 0.0
      %2372 = vmatpush1.xpose.msra.mxu0 0.0
      %2373 = vmatprep.subr.mxu0 0.0
      %2374 = vmatpush1.xpose.msra.mxu0 0.0
      %2375 = vmatprep.subr.mxu0 0.0
      %2376 = vmatpush1.xpose.msra.mxu0 0.0
      %2377 = vmatprep.subr.mxu0 0.0
      %2378 = vmatpush1.xpose.msra.mxu0 %v2349
      %2379 = vmatprep.subr.mxu0 0.0
      %2380 = vmatpush1.xpose.msra.mxu0 %v2347
      %2381 = vmatprep.subr.mxu0 0.0
      %2382 = vmatpush1.xpose.msra.mxu0 %v2345
      %2383 = vmatprep.subr.mxu0 0.0
      %2384 = vmatpush2.xpose.msra.mxu0 0.0
      %2385 = vmatprep.subr.mxu0 0.0
      %2386 = vmatpush2.xpose.msra.mxu0 0.0
      %2387 = vmatprep.subr.mxu0 0.0
      %2388 = vmatpush2.xpose.msra.mxu0 0.0
      %2389 = vmatprep.subr.mxu0 0.0
      %2390 = vmatpush2.xpose.msra.mxu0 0.0
      %2391 = vmatprep.subr.mxu0 0.0
      %2392 = vmatpush2.xpose.msra.mxu0 0.0
      %2393 = vmatprep.subr.mxu0 0.0
      %2394 = vmatpush2.xpose.msra.mxu0 0.0
      %2395 = vmatprep.subr.mxu0 0.0
      %2396 = vmatpush2.xpose.msra.mxu0 0.0
      %2397 = vmatprep.subr.mxu0 0.0
      %2398 = vmatpush2.xpose.msra.mxu0 0.0
      %2399 = vmatprep.subr.mxu0 0.0
      %2400 = vmatpush2.xpose.msra.mxu0 0.0
      %2401 = vmatprep.subr.mxu0 0.0
      %2402 = vmatpush2.xpose.msra.mxu0 0.0
      %2403 = vmatprep.subr.mxu0 0.0
      %2404 = vmatpush2.xpose.msra.mxu0 0.0
      %2405 = vmatprep.subr.mxu0 0.0
      %2406 = vmatpush2.xpose.msra.mxu0 0.0
      %2407 = vmatprep.subr.mxu0 0.0
      %2408 = vmatpush2.xpose.msra.mxu0 0.0
      %2409 = vmatprep.subr.mxu0 0.0
      %2410 = vmatpush2.xpose.msra.mxu0 0.0
      %2411 = vmatprep.subr.mxu0 0.0
      %2412 = vmatpush2.xpose.msra.mxu0 0.0
      %2413 = vmatprep.subr.mxu0 0.0
      %2414 = vmatpush2.xpose.msra.mxu0 0.0
      %2415 = vmatprep.mubr.f32.mxu0 0.0
      %2416 = vmatmul.mubr.f32.gmra.mxu0 %v2339
      %v2417 = vpop.f32.mrf.mxu0
      %v2418 = vadd.f32 0.0, %v2417
      %v2419 = vpop.f32.mrf.mxu0
      %2420 = vmatprep.mubr.f32.mxu0 0.0
      %2421 = vmatmul.mubr.f32.gmra.mxu0 %v2341
      %v2422 = vpop.f32.mrf.mxu0
      %v2423 = vadd.f32 0.0, %v2422
      %v2424 = vpop.f32.mrf.mxu0
      %2425 = vmatprep.mubr.f32.mxu0 0.0
      %2426 = vmatmul.mubr.f32.gmra.mxu0 %v2343
      %v2427 = vpop.f32.mrf.mxu0
      %v2428 = vadd.f32 0.0, %v2427
      %v2429 = vpop.f32.mrf.mxu0
      %2430 = vdwg.mxu0
      %v2431 = vsel %vm1094, %v2418, -1e+30
      %v2432 = vsel %vm1094, %v2423, -1e+30
      %v2433 = vsel %vm1094, %v2428, -1e+30
      %v2434 = vsel %vm1200, %v2431, -inf
      %2435 = vmax.xlane.f32.xlu0 %v2434
      %v2436 = vpop.xlane.xlu0 %2435
      %v2437 = vsel %vm1200, %v2432, -inf
      %2438 = vmax.xlane.f32.xlu0 %v2437
      %v2439 = vpop.xlane.xlu0 %2438
      %v2440 = vsel %vm1200, %v2433, -inf
      %2441 = vmax.xlane.f32.xlu0 %v2440
      %v2442 = vpop.xlane.xlu0 %2441
      %v2443 = vsub.f32 %v2431, %v2436
      %v2444 = vsub.f32 %v2432, %v2439
      %v2445 = vsub.f32 %v2433, %v2442
      %v2446 = vmul.f32 %v2443, 1.442695
      %v2447 = vpow.pop %v2446
      %v2448 = vmul.f32 %v2444, 1.442695
      %v2449 = vpow.pop %v2448
      %v2450 = vmul.f32 %v2445, 1.442695
      %v2451 = vpow.pop %v2450
      %v2452 = vsel %vm1200, %v2447, 0.0
      %2453 = vadd.xlane.f32.xlu0 %v2452
      %v2454 = vpop.xlane.xlu0 %2453
      %v2455 = vsel %vm1200, %v2449, 0.0
      %2456 = vadd.xlane.f32.xlu0 %v2455
      %v2457 = vpop.xlane.xlu0 %2456
      %v2458 = vsel %vm1200, %v2451, 0.0
      %2459 = vadd.xlane.f32.xlu0 %v2458
      %v2460 = vpop.xlane.xlu0 %2459
      %v2461 = vrcp.pop %v2454
      %v2462 = vrcp.pop %v2457
      %v2463 = vrcp.pop %v2460
      %v2464 = vmul.f32 %v2447, %v2461
      %v2465 = vmul.f32 %v2449, %v2462
      %v2466 = vmul.f32 %v2451, %v2463
      %2467 = vrot.lane.b32.xlu0 %v1079, 56
      %v2468 = vpop.permute.xlu0 %2467
      %2469 = vrot.lane.b32.xlu0 %v1084, 56
      %v2470 = vpop.permute.xlu0 %2469
      %2471 = vrot.lane.b32.xlu0 %v1089, 56
      %v2472 = vpop.permute.xlu0 %2471
      %v2477 = vsel %vm1200, %v2464, 0
      %v2480 = vsel %vm1200, %v2465, 0
      %v2483 = vsel %vm1200, %v2466, 0
      %2485 = vmatprep.subr.mxu0 0.0
      %2486 = vmatpush1.msra.mxu0 0.0
      %2487 = vmatprep.subr.mxu0 0.0
      %2488 = vmatpush1.msra.mxu0 0.0
      %2489 = vmatprep.subr.mxu0 0.0
      %2490 = vmatpush1.msra.mxu0 0.0
      %2491 = vmatprep.subr.mxu0 0.0
      %2492 = vmatpush1.msra.mxu0 0.0
      %2493 = vmatprep.subr.mxu0 0.0
      %2494 = vmatpush1.msra.mxu0 0.0
      %2495 = vmatprep.subr.mxu0 0.0
      %2496 = vmatpush1.msra.mxu0 0.0
      %2497 = vmatprep.subr.mxu0 0.0
      %2498 = vmatpush1.msra.mxu0 0.0
      %2499 = vmatprep.subr.mxu0 0.0
      %2500 = vmatpush1.msra.mxu0 0.0
      %2501 = vmatprep.subr.mxu0 0.0
      %2502 = vmatpush1.msra.mxu0 0.0
      %2503 = vmatprep.subr.mxu0 0.0
      %2504 = vmatpush1.msra.mxu0 0.0
      %2505 = vmatprep.subr.mxu0 0.0
      %2506 = vmatpush1.msra.mxu0 0.0
      %2507 = vmatprep.subr.mxu0 0.0
      %2508 = vmatpush1.msra.mxu0 0.0
      %2509 = vmatprep.subr.mxu0 0.0
      %2510 = vmatpush1.msra.mxu0 0.0
      %2511 = vmatprep.subr.mxu0 0.0
      %2512 = vmatpush1.msra.mxu0 %v2472
      %2513 = vmatprep.subr.mxu0 0.0
      %2514 = vmatpush1.msra.mxu0 %v2470
      %2515 = vmatprep.subr.mxu0 0.0
      %2516 = vmatpush1.msra.mxu0 %v2468
      %2517 = vmatprep.subr.mxu0 0.0
      %2518 = vmatpush2.msra.mxu0 0.0
      %2519 = vmatprep.subr.mxu0 0.0
      %2520 = vmatpush2.msra.mxu0 0.0
      %2521 = vmatprep.subr.mxu0 0.0
      %2522 = vmatpush2.msra.mxu0 0.0
      %2523 = vmatprep.subr.mxu0 0.0
      %2524 = vmatpush2.msra.mxu0 0.0
      %2525 = vmatprep.subr.mxu0 0.0
      %2526 = vmatpush2.msra.mxu0 0.0
      %2527 = vmatprep.subr.mxu0 0.0
      %2528 = vmatpush2.msra.mxu0 0.0
      %2529 = vmatprep.subr.mxu0 0.0
      %2530 = vmatpush2.msra.mxu0 0.0
      %2531 = vmatprep.subr.mxu0 0.0
      %2532 = vmatpush2.msra.mxu0 0.0
      %2533 = vmatprep.subr.mxu0 0.0
      %2534 = vmatpush2.msra.mxu0 0.0
      %2535 = vmatprep.subr.mxu0 0.0
      %2536 = vmatpush2.msra.mxu0 0.0
      %2537 = vmatprep.subr.mxu0 0.0
      %2538 = vmatpush2.msra.mxu0 0.0
      %2539 = vmatprep.subr.mxu0 0.0
      %2540 = vmatpush2.msra.mxu0 0.0
      %2541 = vmatprep.subr.mxu0 0.0
      %2542 = vmatpush2.msra.mxu0 0.0
      %2543 = vmatprep.subr.mxu0 0.0
      %2544 = vmatpush2.msra.mxu0 0.0
      %2545 = vmatprep.subr.mxu0 0.0
      %2546 = vmatpush2.msra.mxu0 0.0
      %2547 = vmatprep.subr.mxu0 0.0
      %2548 = vmatpush2.msra.mxu0 0.0
      %2549 = vmatprep.mubr.f32.mxu0 0.0
      %2550 = vmatmul.mubr.f32.gmra.mxu0 %v2477
      %v2551 = vpop.f32.mrf.mxu0
      %v2552 = vadd.f32 0.0, %v2551
      %v2553 = vpop.f32.mrf.mxu0
      %2554 = vmatprep.mubr.f32.mxu0 0.0
      %2555 = vmatmul.mubr.f32.gmra.mxu0 %v2480
      %v2556 = vpop.f32.mrf.mxu0
      %v2557 = vadd.f32 0.0, %v2556
      %v2558 = vpop.f32.mrf.mxu0
      %2559 = vmatprep.mubr.f32.mxu0 0.0
      %2560 = vmatmul.mubr.f32.gmra.mxu0 %v2483
      %v2561 = vpop.f32.mrf.mxu0
      %v2562 = vadd.f32 0.0, %v2561
      %v2563 = vpop.f32.mrf.mxu0
      %2564 = vdwg.mxu0
      %2565 = vrot.lane.b32.xlu0 %v1079, 112
      %v2566 = vpop.permute.xlu0 %2565
      %2567 = vrot.lane.b32.xlu0 %v1084, 112
      %v2568 = vpop.permute.xlu0 %2567
      %2569 = vrot.lane.b32.xlu0 %v1089, 112
      %v2570 = vpop.permute.xlu0 %2569
      %2571 = vrot.lane.b32.xlu0 %v1079, 80
      %v2572 = vpop.permute.xlu0 %2571
      %2573 = vrot.lane.b32.xlu0 %v1084, 80
      %v2574 = vpop.permute.xlu0 %2573
      %2575 = vrot.lane.b32.xlu0 %v1089, 80
      %v2576 = vpop.permute.xlu0 %2575
      %v2577 = vsel %vm1104, %v2566, 0
      %v2579 = vsel %vm1104, %v2568, 0
      %v2581 = vsel %vm1104, %v2570, 0
      %v2583 = vsel %vm1104, %v2572, 0
      %v2585 = vsel %vm1104, %v2574, 0
      %v2587 = vsel %vm1104, %v2576, 0
      %2589 = vmatprep.subr.mxu0 0.0
      %2590 = vmatpush1.xpose.msra.mxu0 0.0
      %2591 = vmatprep.subr.mxu0 0.0
      %2592 = vmatpush1.xpose.msra.mxu0 0.0
      %2593 = vmatprep.subr.mxu0 0.0
      %2594 = vmatpush1.xpose.msra.mxu0 0.0
      %2595 = vmatprep.subr.mxu0 0.0
      %2596 = vmatpush1.xpose.msra.mxu0 0.0
      %2597 = vmatprep.subr.mxu0 0.0
      %2598 = vmatpush1.xpose.msra.mxu0 0.0
      %2599 = vmatprep.subr.mxu0 0.0
      %2600 = vmatpush1.xpose.msra.mxu0 0.0
      %2601 = vmatprep.subr.mxu0 0.0
      %2602 = vmatpush1.xpose.msra.mxu0 0.0
      %2603 = vmatprep.subr.mxu0 0.0
      %2604 = vmatpush1.xpose.msra.mxu0 0.0
      %2605 = vmatprep.subr.mxu0 0.0
      %2606 = vmatpush1.xpose.msra.mxu0 0.0
      %2607 = vmatprep.subr.mxu0 0.0
      %2608 = vmatpush1.xpose.msra.mxu0 0.0
      %2609 = vmatprep.subr.mxu0 0.0
      %2610 = vmatpush1.xpose.msra.mxu0 0.0
      %2611 = vmatprep.subr.mxu0 0.0
      %2612 = vmatpush1.xpose.msra.mxu0 0.0
      %2613 = vmatprep.subr.mxu0 0.0
      %2614 = vmatpush1.xpose.msra.mxu0 0.0
      %2615 = vmatprep.subr.mxu0 0.0
      %2616 = vmatpush1.xpose.msra.mxu0 %v2587
      %2617 = vmatprep.subr.mxu0 0.0
      %2618 = vmatpush1.xpose.msra.mxu0 %v2585
      %2619 = vmatprep.subr.mxu0 0.0
      %2620 = vmatpush1.xpose.msra.mxu0 %v2583
      %2621 = vmatprep.subr.mxu0 0.0
      %2622 = vmatpush2.xpose.msra.mxu0 0.0
      %2623 = vmatprep.subr.mxu0 0.0
      %2624 = vmatpush2.xpose.msra.mxu0 0.0
      %2625 = vmatprep.subr.mxu0 0.0
      %2626 = vmatpush2.xpose.msra.mxu0 0.0
      %2627 = vmatprep.subr.mxu0 0.0
      %2628 = vmatpush2.xpose.msra.mxu0 0.0
      %2629 = vmatprep.subr.mxu0 0.0
      %2630 = vmatpush2.xpose.msra.mxu0 0.0
      %2631 = vmatprep.subr.mxu0 0.0
      %2632 = vmatpush2.xpose.msra.mxu0 0.0
      %2633 = vmatprep.subr.mxu0 0.0
      %2634 = vmatpush2.xpose.msra.mxu0 0.0
      %2635 = vmatprep.subr.mxu0 0.0
      %2636 = vmatpush2.xpose.msra.mxu0 0.0
      %2637 = vmatprep.subr.mxu0 0.0
      %2638 = vmatpush2.xpose.msra.mxu0 0.0
      %2639 = vmatprep.subr.mxu0 0.0
      %2640 = vmatpush2.xpose.msra.mxu0 0.0
      %2641 = vmatprep.subr.mxu0 0.0
      %2642 = vmatpush2.xpose.msra.mxu0 0.0
      %2643 = vmatprep.subr.mxu0 0.0
      %2644 = vmatpush2.xpose.msra.mxu0 0.0
      %2645 = vmatprep.subr.mxu0 0.0
      %2646 = vmatpush2.xpose.msra.mxu0 0.0
      %2647 = vmatprep.subr.mxu0 0.0
      %2648 = vmatpush2.xpose.msra.mxu0 0.0
      %2649 = vmatprep.subr.mxu0 0.0
      %2650 = vmatpush2.xpose.msra.mxu0 0.0
      %2651 = vmatprep.subr.mxu0 0.0
      %2652 = vmatpush2.xpose.msra.mxu0 0.0
      %2653 = vmatprep.mubr.f32.mxu0 0.0
      %2654 = vmatmul.mubr.f32.gmra.mxu0 %v2577
      %v2655 = vpop.f32.mrf.mxu0
      %v2656 = vadd.f32 0.0, %v2655
      %v2657 = vpop.f32.mrf.mxu0
      %2658 = vmatprep.mubr.f32.mxu0 0.0
      %2659 = vmatmul.mubr.f32.gmra.mxu0 %v2579
      %v2660 = vpop.f32.mrf.mxu0
      %v2661 = vadd.f32 0.0, %v2660
      %v2662 = vpop.f32.mrf.mxu0
      %2663 = vmatprep.mubr.f32.mxu0 0.0
      %2664 = vmatmul.mubr.f32.gmra.mxu0 %v2581
      %v2665 = vpop.f32.mrf.mxu0
      %v2666 = vadd.f32 0.0, %v2665
      %v2667 = vpop.f32.mrf.mxu0
      %2668 = vdwg.mxu0
      %v2669 = vsel %vm1094, %v2656, -1e+30
      %v2670 = vsel %vm1094, %v2661, -1e+30
      %v2671 = vsel %vm1094, %v2666, -1e+30
      %v2672 = vsel %vm1200, %v2669, -inf
      %2673 = vmax.xlane.f32.xlu0 %v2672
      %v2674 = vpop.xlane.xlu0 %2673
      %v2675 = vsel %vm1200, %v2670, -inf
      %2676 = vmax.xlane.f32.xlu0 %v2675
      %v2677 = vpop.xlane.xlu0 %2676
      %v2678 = vsel %vm1200, %v2671, -inf
      %2679 = vmax.xlane.f32.xlu0 %v2678
      %v2680 = vpop.xlane.xlu0 %2679
      %v2681 = vsub.f32 %v2669, %v2674
      %v2682 = vsub.f32 %v2670, %v2677
      %v2683 = vsub.f32 %v2671, %v2680
      %v2684 = vmul.f32 %v2681, 1.442695
      %v2685 = vpow.pop %v2684
      %v2686 = vmul.f32 %v2682, 1.442695
      %v2687 = vpow.pop %v2686
      %v2688 = vmul.f32 %v2683, 1.442695
      %v2689 = vpow.pop %v2688
      %v2690 = vsel %vm1200, %v2685, 0.0
      %2691 = vadd.xlane.f32.xlu0 %v2690
      %v2692 = vpop.xlane.xlu0 %2691
      %v2693 = vsel %vm1200, %v2687, 0.0
      %2694 = vadd.xlane.f32.xlu0 %v2693
      %v2695 = vpop.xlane.xlu0 %2694
      %v2696 = vsel %vm1200, %v2689, 0.0
      %2697 = vadd.xlane.f32.xlu0 %v2696
      %v2698 = vpop.xlane.xlu0 %2697
      %v2699 = vrcp.pop %v2692
      %v2700 = vrcp.pop %v2695
      %v2701 = vrcp.pop %v2698
      %v2702 = vmul.f32 %v2685, %v2699
      %v2703 = vmul.f32 %v2687, %v2700
      %v2704 = vmul.f32 %v2689, %v2701
      %2705 = vrot.lane.b32.xlu0 %v1079, 48
      %v2706 = vpop.permute.xlu0 %2705
      %2707 = vrot.lane.b32.xlu0 %v1084, 48
      %v2708 = vpop.permute.xlu0 %2707
      %2709 = vrot.lane.b32.xlu0 %v1089, 48
      %v2710 = vpop.permute.xlu0 %2709
      %v2715 = vsel %vm1200, %v2702, 0
      %v2718 = vsel %vm1200, %v2703, 0
      %v2721 = vsel %vm1200, %v2704, 0
      %2723 = vmatprep.subr.mxu0 0.0
      %2724 = vmatpush1.msra.mxu0 0.0
      %2725 = vmatprep.subr.mxu0 0.0
      %2726 = vmatpush1.msra.mxu0 0.0
      %2727 = vmatprep.subr.mxu0 0.0
      %2728 = vmatpush1.msra.mxu0 0.0
      %2729 = vmatprep.subr.mxu0 0.0
      %2730 = vmatpush1.msra.mxu0 0.0
      %2731 = vmatprep.subr.mxu0 0.0
      %2732 = vmatpush1.msra.mxu0 0.0
      %2733 = vmatprep.subr.mxu0 0.0
      %2734 = vmatpush1.msra.mxu0 0.0
      %2735 = vmatprep.subr.mxu0 0.0
      %2736 = vmatpush1.msra.mxu0 0.0
      %2737 = vmatprep.subr.mxu0 0.0
      %2738 = vmatpush1.msra.mxu0 0.0
      %2739 = vmatprep.subr.mxu0 0.0
      %2740 = vmatpush1.msra.mxu0 0.0
      %2741 = vmatprep.subr.mxu0 0.0
      %2742 = vmatpush1.msra.mxu0 0.0
      %2743 = vmatprep.subr.mxu0 0.0
      %2744 = vmatpush1.msra.mxu0 0.0
      %2745 = vmatprep.subr.mxu0 0.0
      %2746 = vmatpush1.msra.mxu0 0.0
      %2747 = vmatprep.subr.mxu0 0.0
      %2748 = vmatpush1.msra.mxu0 0.0
      %2749 = vmatprep.subr.mxu0 0.0
      %2750 = vmatpush1.msra.mxu0 %v2710
      %2751 = vmatprep.subr.mxu0 0.0
      %2752 = vmatpush1.msra.mxu0 %v2708
      %2753 = vmatprep.subr.mxu0 0.0
      %2754 = vmatpush1.msra.mxu0 %v2706
      %2755 = vmatprep.subr.mxu0 0.0
      %2756 = vmatpush2.msra.mxu0 0.0
      %2757 = vmatprep.subr.mxu0 0.0
      %2758 = vmatpush2.msra.mxu0 0.0
      %2759 = vmatprep.subr.mxu0 0.0
      %2760 = vmatpush2.msra.mxu0 0.0
      %2761 = vmatprep.subr.mxu0 0.0
      %2762 = vmatpush2.msra.mxu0 0.0
      %2763 = vmatprep.subr.mxu0 0.0
      %2764 = vmatpush2.msra.mxu0 0.0
      %2765 = vmatprep.subr.mxu0 0.0
      %2766 = vmatpush2.msra.mxu0 0.0
      %2767 = vmatprep.subr.mxu0 0.0
      %2768 = vmatpush2.msra.mxu0 0.0
      %2769 = vmatprep.subr.mxu0 0.0
      %2770 = vmatpush2.msra.mxu0 0.0
      %2771 = vmatprep.subr.mxu0 0.0
      %2772 = vmatpush2.msra.mxu0 0.0
      %2773 = vmatprep.subr.mxu0 0.0
      %2774 = vmatpush2.msra.mxu0 0.0
      %2775 = vmatprep.subr.mxu0 0.0
      %2776 = vmatpush2.msra.mxu0 0.0
      %2777 = vmatprep.subr.mxu0 0.0
      %2778 = vmatpush2.msra.mxu0 0.0
      %2779 = vmatprep.subr.mxu0 0.0
      %2780 = vmatpush2.msra.mxu0 0.0
      %2781 = vmatprep.subr.mxu0 0.0
      %2782 = vmatpush2.msra.mxu0 0.0
      %2783 = vmatprep.subr.mxu0 0.0
      %2784 = vmatpush2.msra.mxu0 0.0
      %2785 = vmatprep.subr.mxu0 0.0
      %2786 = vmatpush2.msra.mxu0 0.0
      %2787 = vmatprep.mubr.f32.mxu0 0.0
      %2788 = vmatmul.mubr.f32.gmra.mxu0 %v2715
      %v2789 = vpop.f32.mrf.mxu0
      %v2790 = vadd.f32 0.0, %v2789
      %v2791 = vpop.f32.mrf.mxu0
      %2792 = vmatprep.mubr.f32.mxu0 0.0
      %2793 = vmatmul.mubr.f32.gmra.mxu0 %v2718
      %v2794 = vpop.f32.mrf.mxu0
      %v2795 = vadd.f32 0.0, %v2794
      %v2796 = vpop.f32.mrf.mxu0
      %2797 = vmatprep.mubr.f32.mxu0 0.0
      %2798 = vmatmul.mubr.f32.gmra.mxu0 %v2721
      %v2799 = vpop.f32.mrf.mxu0
      %v2800 = vadd.f32 0.0, %v2799
      %v2801 = vpop.f32.mrf.mxu0
      %2802 = vdwg.mxu0
      %2803 = vrot.lane.b32.xlu0 %v1079, 104
      %v2804 = vpop.permute.xlu0 %2803
      %2805 = vrot.lane.b32.xlu0 %v1084, 104
      %v2806 = vpop.permute.xlu0 %2805
      %2807 = vrot.lane.b32.xlu0 %v1089, 104
      %v2808 = vpop.permute.xlu0 %2807
      %2809 = vrot.lane.b32.xlu0 %v1079, 72
      %v2810 = vpop.permute.xlu0 %2809
      %2811 = vrot.lane.b32.xlu0 %v1084, 72
      %v2812 = vpop.permute.xlu0 %2811
      %2813 = vrot.lane.b32.xlu0 %v1089, 72
      %v2814 = vpop.permute.xlu0 %2813
      %v2815 = vsel %vm1104, %v2804, 0
      %v2817 = vsel %vm1104, %v2806, 0
      %v2819 = vsel %vm1104, %v2808, 0
      %v2821 = vsel %vm1104, %v2810, 0
      %v2823 = vsel %vm1104, %v2812, 0
      %v2825 = vsel %vm1104, %v2814, 0
      %2827 = vmatprep.subr.mxu0 0.0
      %2828 = vmatpush1.xpose.msra.mxu0 0.0
      %2829 = vmatprep.subr.mxu0 0.0
      %2830 = vmatpush1.xpose.msra.mxu0 0.0
      %2831 = vmatprep.subr.mxu0 0.0
      %2832 = vmatpush1.xpose.msra.mxu0 0.0
      %2833 = vmatprep.subr.mxu0 0.0
      %2834 = vmatpush1.xpose.msra.mxu0 0.0
      %2835 = vmatprep.subr.mxu0 0.0
      %2836 = vmatpush1.xpose.msra.mxu0 0.0
      %2837 = vmatprep.subr.mxu0 0.0
      %2838 = vmatpush1.xpose.msra.mxu0 0.0
      %2839 = vmatprep.subr.mxu0 0.0
      %2840 = vmatpush1.xpose.msra.mxu0 0.0
      %2841 = vmatprep.subr.mxu0 0.0
      %2842 = vmatpush1.xpose.msra.mxu0 0.0
      %2843 = vmatprep.subr.mxu0 0.0
      %2844 = vmatpush1.xpose.msra.mxu0 0.0
      %2845 = vmatprep.subr.mxu0 0.0
      %2846 = vmatpush1.xpose.msra.mxu0 0.0
      %2847 = vmatprep.subr.mxu0 0.0
      %2848 = vmatpush1.xpose.msra.mxu0 0.0
      %2849 = vmatprep.subr.mxu0 0.0
      %2850 = vmatpush1.xpose.msra.mxu0 0.0
      %2851 = vmatprep.subr.mxu0 0.0
      %2852 = vmatpush1.xpose.msra.mxu0 0.0
      %2853 = vmatprep.subr.mxu0 0.0
      %2854 = vmatpush1.xpose.msra.mxu0 %v2825
      %2855 = vmatprep.subr.mxu0 0.0
      %2856 = vmatpush1.xpose.msra.mxu0 %v2823
      %2857 = vmatprep.subr.mxu0 0.0
      %2858 = vmatpush1.xpose.msra.mxu0 %v2821
      %2859 = vmatprep.subr.mxu0 0.0
      %2860 = vmatpush2.xpose.msra.mxu0 0.0
      %2861 = vmatprep.subr.mxu0 0.0
      %2862 = vmatpush2.xpose.msra.mxu0 0.0
      %2863 = vmatprep.subr.mxu0 0.0
      %2864 = vmatpush2.xpose.msra.mxu0 0.0
      %2865 = vmatprep.subr.mxu0 0.0
      %2866 = vmatpush2.xpose.msra.mxu0 0.0
      %2867 = vmatprep.subr.mxu0 0.0
      %2868 = vmatpush2.xpose.msra.mxu0 0.0
      %2869 = vmatprep.subr.mxu0 0.0
      %2870 = vmatpush2.xpose.msra.mxu0 0.0
      %2871 = vmatprep.subr.mxu0 0.0
      %2872 = vmatpush2.xpose.msra.mxu0 0.0
      %2873 = vmatprep.subr.mxu0 0.0
      %2874 = vmatpush2.xpose.msra.mxu0 0.0
      %2875 = vmatprep.subr.mxu0 0.0
      %2876 = vmatpush2.xpose.msra.mxu0 0.0
      %2877 = vmatprep.subr.mxu0 0.0
      %2878 = vmatpush2.xpose.msra.mxu0 0.0
      %2879 = vmatprep.subr.mxu0 0.0
      %2880 = vmatpush2.xpose.msra.mxu0 0.0
      %2881 = vmatprep.subr.mxu0 0.0
      %2882 = vmatpush2.xpose.msra.mxu0 0.0
      %2883 = vmatprep.subr.mxu0 0.0
      %2884 = vmatpush2.xpose.msra.mxu0 0.0
      %2885 = vmatprep.subr.mxu0 0.0
      %2886 = vmatpush2.xpose.msra.mxu0 0.0
      %2887 = vmatprep.subr.mxu0 0.0
      %2888 = vmatpush2.xpose.msra.mxu0 0.0
      %2889 = vmatprep.subr.mxu0 0.0
      %2890 = vmatpush2.xpose.msra.mxu0 0.0
      %2891 = vmatprep.mubr.f32.mxu0 0.0
      %2892 = vmatmul.mubr.f32.gmra.mxu0 %v2815
      %v2893 = vpop.f32.mrf.mxu0
      %v2894 = vadd.f32 0.0, %v2893
      %v2895 = vpop.f32.mrf.mxu0
      %2896 = vmatprep.mubr.f32.mxu0 0.0
      %2897 = vmatmul.mubr.f32.gmra.mxu0 %v2817
      %v2898 = vpop.f32.mrf.mxu0
      %v2899 = vadd.f32 0.0, %v2898
      %v2900 = vpop.f32.mrf.mxu0
      %2901 = vmatprep.mubr.f32.mxu0 0.0
      %2902 = vmatmul.mubr.f32.gmra.mxu0 %v2819
      %v2903 = vpop.f32.mrf.mxu0
      %v2904 = vadd.f32 0.0, %v2903
      %v2905 = vpop.f32.mrf.mxu0
      %2906 = vdwg.mxu0
      %v2907 = vsel %vm1094, %v2894, -1e+30
      %v2908 = vsel %vm1094, %v2899, -1e+30
      %v2909 = vsel %vm1094, %v2904, -1e+30
      %v2910 = vsel %vm1200, %v2907, -inf
      %2911 = vmax.xlane.f32.xlu0 %v2910
      %v2912 = vpop.xlane.xlu0 %2911
      %v2913 = vsel %vm1200, %v2908, -inf
      %2914 = vmax.xlane.f32.xlu0 %v2913
      %v2915 = vpop.xlane.xlu0 %2914
      %v2916 = vsel %vm1200, %v2909, -inf
      %2917 = vmax.xlane.f32.xlu0 %v2916
      %v2918 = vpop.xlane.xlu0 %2917
      %v2919 = vsub.f32 %v2907, %v2912
      %v2920 = vsub.f32 %v2908, %v2915
      %v2921 = vsub.f32 %v2909, %v2918
      %v2922 = vmul.f32 %v2919, 1.442695
      %v2923 = vpow.pop %v2922
      %v2924 = vmul.f32 %v2920, 1.442695
      %v2925 = vpow.pop %v2924
      %v2926 = vmul.f32 %v2921, 1.442695
      %v2927 = vpow.pop %v2926
      %v2928 = vsel %vm1200, %v2923, 0.0
      %2929 = vadd.xlane.f32.xlu0 %v2928
      %v2930 = vpop.xlane.xlu0 %2929
      %v2931 = vsel %vm1200, %v2925, 0.0
      %2932 = vadd.xlane.f32.xlu0 %v2931
      %v2933 = vpop.xlane.xlu0 %2932
      %v2934 = vsel %vm1200, %v2927, 0.0
      %2935 = vadd.xlane.f32.xlu0 %v2934
      %v2936 = vpop.xlane.xlu0 %2935
      %v2937 = vrcp.pop %v2930
      %v2938 = vrcp.pop %v2933
      %v2939 = vrcp.pop %v2936
      %v2940 = vmul.f32 %v2923, %v2937
      %v2941 = vmul.f32 %v2925, %v2938
      %v2942 = vmul.f32 %v2927, %v2939
      %2943 = vrot.lane.b32.xlu0 %v1079, 40
      %v2944 = vpop.permute.xlu0 %2943
      %2945 = vrot.lane.b32.xlu0 %v1084, 40
      %v2946 = vpop.permute.xlu0 %2945
      %2947 = vrot.lane.b32.xlu0 %v1089, 40
      %v2948 = vpop.permute.xlu0 %2947
      %v2953 = vsel %vm1200, %v2940, 0
      %v2956 = vsel %vm1200, %v2941, 0
      %v2959 = vsel %vm1200, %v2942, 0
      %2961 = vmatprep.subr.mxu0 0.0
      %2962 = vmatpush1.msra.mxu0 0.0
      %2963 = vmatprep.subr.mxu0 0.0
      %2964 = vmatpush1.msra.mxu0 0.0
      %2965 = vmatprep.subr.mxu0 0.0
      %2966 = vmatpush1.msra.mxu0 0.0
      %2967 = vmatprep.subr.mxu0 0.0
      %2968 = vmatpush1.msra.mxu0 0.0
      %2969 = vmatprep.subr.mxu0 0.0
      %2970 = vmatpush1.msra.mxu0 0.0
      %2971 = vmatprep.subr.mxu0 0.0
      %2972 = vmatpush1.msra.mxu0 0.0
      %2973 = vmatprep.subr.mxu0 0.0
      %2974 = vmatpush1.msra.mxu0 0.0
      %2975 = vmatprep.subr.mxu0 0.0
      %2976 = vmatpush1.msra.mxu0 0.0
      %2977 = vmatprep.subr.mxu0 0.0
      %2978 = vmatpush1.msra.mxu0 0.0
      %2979 = vmatprep.subr.mxu0 0.0
      %2980 = vmatpush1.msra.mxu0 0.0
      %2981 = vmatprep.subr.mxu0 0.0
      %2982 = vmatpush1.msra.mxu0 0.0
      %2983 = vmatprep.subr.mxu0 0.0
      %2984 = vmatpush1.msra.mxu0 0.0
      %2985 = vmatprep.subr.mxu0 0.0
      %2986 = vmatpush1.msra.mxu0 0.0
      %2987 = vmatprep.subr.mxu0 0.0
      %2988 = vmatpush1.msra.mxu0 %v2948
      %2989 = vmatprep.subr.mxu0 0.0
      %2990 = vmatpush1.msra.mxu0 %v2946
      %2991 = vmatprep.subr.mxu0 0.0
      %2992 = vmatpush1.msra.mxu0 %v2944
      %2993 = vmatprep.subr.mxu0 0.0
      %2994 = vmatpush2.msra.mxu0 0.0
      %2995 = vmatprep.subr.mxu0 0.0
      %2996 = vmatpush2.msra.mxu0 0.0
      %2997 = vmatprep.subr.mxu0 0.0
      %2998 = vmatpush2.msra.mxu0 0.0
      %2999 = vmatprep.subr.mxu0 0.0
      %3000 = vmatpush2.msra.mxu0 0.0
      %3001 = vmatprep.subr.mxu0 0.0
      %3002 = vmatpush2.msra.mxu0 0.0
      %3003 = vmatprep.subr.mxu0 0.0
      %3004 = vmatpush2.msra.mxu0 0.0
      %3005 = vmatprep.subr.mxu0 0.0
      %3006 = vmatpush2.msra.mxu0 0.0
      %3007 = vmatprep.subr.mxu0 0.0
      %3008 = vmatpush2.msra.mxu0 0.0
      %3009 = vmatprep.subr.mxu0 0.0
      %3010 = vmatpush2.msra.mxu0 0.0
      %3011 = vmatprep.subr.mxu0 0.0
      %3012 = vmatpush2.msra.mxu0 0.0
      %3013 = vmatprep.subr.mxu0 0.0
      %3014 = vmatpush2.msra.mxu0 0.0
      %3015 = vmatprep.subr.mxu0 0.0
      %3016 = vmatpush2.msra.mxu0 0.0
      %3017 = vmatprep.subr.mxu0 0.0
      %3018 = vmatpush2.msra.mxu0 0.0
      %3019 = vmatprep.subr.mxu0 0.0
      %3020 = vmatpush2.msra.mxu0 0.0
      %3021 = vmatprep.subr.mxu0 0.0
      %3022 = vmatpush2.msra.mxu0 0.0
      %3023 = vmatprep.subr.mxu0 0.0
      %3024 = vmatpush2.msra.mxu0 0.0
      %3025 = vmatprep.mubr.f32.mxu0 0.0
      %3026 = vmatmul.mubr.f32.gmra.mxu0 %v2953
      %v3027 = vpop.f32.mrf.mxu0
      %v3028 = vadd.f32 0.0, %v3027
      %v3029 = vpop.f32.mrf.mxu0
      %3030 = vmatprep.mubr.f32.mxu0 0.0
      %3031 = vmatmul.mubr.f32.gmra.mxu0 %v2956
      %v3032 = vpop.f32.mrf.mxu0
      %v3033 = vadd.f32 0.0, %v3032
      %v3034 = vpop.f32.mrf.mxu0
      %3035 = vmatprep.mubr.f32.mxu0 0.0
      %3036 = vmatmul.mubr.f32.gmra.mxu0 %v2959
      %v3037 = vpop.f32.mrf.mxu0
      %v3038 = vadd.f32 0.0, %v3037
      %v3039 = vpop.f32.mrf.mxu0
      %3040 = vdwg.mxu0
      %3044 = vrot.lane.b32.xlu0 %v2552, 8
      %v3045 = vpop.permute.xlu0 %3044
      %3046 = vrot.lane.b32.xlu0 %v2557, 8
      %v3047 = vpop.permute.xlu0 %3046
      %3048 = vrot.lane.b32.xlu0 %v2562, 8
      %v3049 = vpop.permute.xlu0 %3048
      %3056 = vrot.lane.b32.xlu0 %v2790, 16
      %v3057 = vpop.permute.xlu0 %3056
      %3058 = vrot.lane.b32.xlu0 %v2795, 16
      %v3059 = vpop.permute.xlu0 %3058
      %3060 = vrot.lane.b32.xlu0 %v2800, 16
      %v3061 = vpop.permute.xlu0 %3060
      %3068 = vrot.lane.b32.xlu0 %v3028, 24
      %v3069 = vpop.permute.xlu0 %3068
      %3070 = vrot.lane.b32.xlu0 %v3033, 24
      %v3071 = vpop.permute.xlu0 %3070
      %3072 = vrot.lane.b32.xlu0 %v3038, 24
      %v3073 = vpop.permute.xlu0 %3072
      %v3077 = vsel %vm1104, %v2314, %v3045
      %v3078 = vsel %vm1104, %v2319, %v3047
      %v3079 = vsel %vm1104, %v2324, %v3049
      %v3080 = vsel %vm2085, %v3077, %v3057
      %v3081 = vsel %vm2085, %v3078, %v3059
      %v3082 = vsel %vm2085, %v3079, %v3061
      %v3083 = vsel %vm1200, %v3080, %v3069
      %v3084 = vsel %vm1200, %v3081, %v3071
      %v3085 = vsel %vm1200, %v3082, %v3073
      %v3086 = vld [vmem:[%s682] sm:$0xff]
      %v3087 = vld [vmem:[%s682 + $0x8] sm:$0xff]
      %v3088 = vld [vmem:[%s682 + $0x10] sm:$0xff]
      %v3089 = vld [vmem:[%s682 + $0x18] sm:$0xff]
      %v3091 = vsel %vm864, %v2089, 0
      %v3094 = vsel %vm864, %v2090, 0
      %v3097 = vsel %vm864, %v2091, 0
      %v3100 = vsel %vm864, %v3083, 0
      %v3103 = vsel %vm864, %v3084, 0
      %v3106 = vsel %vm864, %v3085, 0
      %3108 = vmatprep.subr.mxu0 0.0
      %3109 = vmatpush1.msra.mxu0 0.0
      %3110 = vmatprep.subr.mxu0 0.0
      %3111 = vmatpush1.msra.mxu0 0.0
      %3112 = vmatprep.subr.mxu0 0.0
      %3113 = vmatpush1.msra.mxu0 0.0
      %3114 = vmatprep.subr.mxu0 0.0
      %3115 = vmatpush1.msra.mxu0 0.0
      %3116 = vmatprep.subr.mxu0 0.0
      %3117 = vmatpush1.msra.mxu0 0.0
      %3118 = vmatprep.subr.mxu0 0.0
      %3119 = vmatpush1.msra.mxu0 0.0
      %3120 = vmatprep.subr.mxu0 0.0
      %3121 = vmatpush1.msra.mxu0 0.0
      %3122 = vmatprep.subr.mxu0 0.0
      %3123 = vmatpush1.msra.mxu0 0.0
      %3124 = vmatprep.subr.mxu0 0.0
      %3125 = vmatpush1.msra.mxu0 0.0
      %3126 = vmatprep.subr.mxu0 0.0
      %3127 = vmatpush1.msra.mxu0 0.0
      %3128 = vmatprep.subr.mxu0 0.0
      %3129 = vmatpush1.msra.mxu0 0.0
      %3130 = vmatprep.subr.mxu0 0.0
      %3131 = vmatpush1.msra.mxu0 0.0
      %3132 = vmatprep.subr.mxu0 0.0
      %3133 = vmatpush1.msra.mxu0 %v3089
      %3134 = vmatprep.subr.mxu0 0.0
      %3135 = vmatpush1.msra.mxu0 %v3088
      %3136 = vmatprep.subr.mxu0 0.0
      %3137 = vmatpush1.msra.mxu0 %v3087
      %3138 = vmatprep.subr.mxu0 0.0
      %3139 = vmatpush1.msra.mxu0 %v3086
      %3140 = vmatprep.subr.mxu0 0.0
      %3141 = vmatpush2.msra.mxu0 0.0
      %3142 = vmatprep.subr.mxu0 0.0
      %3143 = vmatpush2.msra.mxu0 0.0
      %3144 = vmatprep.subr.mxu0 0.0
      %3145 = vmatpush2.msra.mxu0 0.0
      %3146 = vmatprep.subr.mxu0 0.0
      %3147 = vmatpush2.msra.mxu0 0.0
      %3148 = vmatprep.subr.mxu0 0.0
      %3149 = vmatpush2.msra.mxu0 0.0
      %3150 = vmatprep.subr.mxu0 0.0
      %3151 = vmatpush2.msra.mxu0 0.0
      %3152 = vmatprep.subr.mxu0 0.0
      %3153 = vmatpush2.msra.mxu0 0.0
      %3154 = vmatprep.subr.mxu0 0.0
      %3155 = vmatpush2.msra.mxu0 0.0
      %3156 = vmatprep.subr.mxu0 0.0
      %3157 = vmatpush2.msra.mxu0 0.0
      %3158 = vmatprep.subr.mxu0 0.0
      %3159 = vmatpush2.msra.mxu0 0.0
      %3160 = vmatprep.subr.mxu0 0.0
      %3161 = vmatpush2.msra.mxu0 0.0
      %3162 = vmatprep.subr.mxu0 0.0
      %3163 = vmatpush2.msra.mxu0 0.0
      %3164 = vmatprep.subr.mxu0 0.0
      %3165 = vmatpush2.msra.mxu0 0.0
      %3166 = vmatprep.subr.mxu0 0.0
      %3167 = vmatpush2.msra.mxu0 0.0
      %3168 = vmatprep.subr.mxu0 0.0
      %3169 = vmatpush2.msra.mxu0 0.0
      %3170 = vmatprep.subr.mxu0 0.0
      %3171 = vmatpush2.msra.mxu0 0.0
      %3172 = vmatprep.mubr.f32.mxu0 0.0
      %3173 = vmatmul.mubr.f32.gmra.mxu0 %v3091
      %v3174 = vpop.f32.mrf.mxu0
      %v3175 = vadd.f32 0.0, %v3174
      %v3176 = vpop.f32.mrf.mxu0
      %3177 = vmatprep.mubr.f32.mxu0 0.0
      %3178 = vmatmul.mubr.f32.gmra.mxu0 %v3094
      %v3179 = vpop.f32.mrf.mxu0
      %v3180 = vadd.f32 0.0, %v3179
      %v3181 = vpop.f32.mrf.mxu0
      %3182 = vmatprep.mubr.f32.mxu0 0.0
      %3183 = vmatmul.mubr.f32.gmra.mxu0 %v3097
      %v3184 = vpop.f32.mrf.mxu0
      %v3185 = vadd.f32 0.0, %v3184
      %v3186 = vpop.f32.mrf.mxu0
      %3187 = vmatprep.mubr.f32.mxu0 0.0
      %3188 = vmatmul.mubr.f32.gmra.mxu0 %v3100
      %v3189 = vpop.f32.mrf.mxu0
      %v3190 = vadd.f32 0.0, %v3189
      %v3191 = vpop.f32.mrf.mxu0
      %3192 = vmatprep.mubr.f32.mxu0 0.0
      %3193 = vmatmul.mubr.f32.gmra.mxu0 %v3103
      %v3194 = vpop.f32.mrf.mxu0
      %v3195 = vadd.f32 0.0, %v3194
      %v3196 = vpop.f32.mrf.mxu0
      %3197 = vmatprep.mubr.f32.mxu0 0.0
      %3198 = vmatmul.mubr.f32.gmra.mxu0 %v3106
      %v3199 = vpop.f32.mrf.mxu0
      %v3200 = vadd.f32 0.0, %v3199
      %v3201 = vpop.f32.mrf.mxu0
      %3202 = vdwg.mxu0
      %v3203 = vadd.f32 %v856, %v3175
      %v3204 = vadd.f32 %v857, %v3180
      %v3205 = vadd.f32 %v858, %v3185
      %v3206 = vadd.f32 %v859, %v3190
      %v3207 = vadd.f32 %v860, %v3195
      %v3208 = vadd.f32 %v861, %v3200
      %v3209 = vld [vmem:[%s685] sm:$0x1]
      %v3211 = vlaneseq
      %v3212 = vshrl.u32 %v3211, 7
      %v3213 = vsub.s32 0, %v3212
      %v3214 = vrot.slane %v3209, %v3213
      %v3216 = vadd.f32 %v3203, %v3214
      %v3217 = vadd.f32 %v3204, %v3214
      %v3218 = vadd.f32 %v3205, %v3214
      %v3219 = vadd.f32 %v3206, %v3214
      %v3220 = vadd.f32 %v3207, %v3214
      %v3221 = vadd.f32 %v3208, %v3214
      %v3222 = vld [vmem:[%s688] sm:$0x1]
      %v3223 = vld [vmem:[%s691] sm:$0x1]
      %v3224 = vsel %vm864, %v3216, 0.0
      %3225 = vadd.xlane.f32.xlu0 %v3224
      %v3226 = vpop.xlane.xlu0 %3225
      %v3227 = vsel %vm864, %v3217, 0.0
      %3228 = vadd.xlane.f32.xlu0 %v3227
      %v3229 = vpop.xlane.xlu0 %3228
      %v3230 = vsel %vm864, %v3218, 0.0
      %3231 = vadd.xlane.f32.xlu0 %v3230
      %v3232 = vpop.xlane.xlu0 %3231
      %v3233 = vsel %vm864, %v3219, 0.0
      %3234 = vadd.xlane.f32.xlu0 %v3233
      %v3235 = vpop.xlane.xlu0 %3234
      %v3236 = vsel %vm864, %v3220, 0.0
      %3237 = vadd.xlane.f32.xlu0 %v3236
      %v3238 = vpop.xlane.xlu0 %3237
      %v3239 = vsel %vm864, %v3221, 0.0
      %3240 = vadd.xlane.f32.xlu0 %v3239
      %v3241 = vpop.xlane.xlu0 %3240
      %v3242 = vmul.f32 %v3226, %v883
      %v3243 = vmul.f32 %v3229, %v883
      %v3244 = vmul.f32 %v3232, %v883
      %v3245 = vmul.f32 %v3235, %v883
      %v3246 = vmul.f32 %v3238, %v883
      %v3247 = vmul.f32 %v3241, %v883
      %v3248 = vsub.f32 %v3216, %v3242
      %v3249 = vsub.f32 %v3217, %v3243
      %v3250 = vsub.f32 %v3218, %v3244
      %v3251 = vsub.f32 %v3219, %v3245
      %v3252 = vsub.f32 %v3220, %v3246
      %v3253 = vsub.f32 %v3221, %v3247
      %v3254 = vmul.f32 %v3248, %v3248
      %v3255 = vmul.f32 %v3249, %v3249
      %v3256 = vmul.f32 %v3250, %v3250
      %v3257 = vmul.f32 %v3251, %v3251
      %v3258 = vmul.f32 %v3252, %v3252
      %v3259 = vmul.f32 %v3253, %v3253
      %v3260 = vsel %vm864, %v3254, 0.0
      %3261 = vadd.xlane.f32.xlu0 %v3260
      %v3262 = vpop.xlane.xlu0 %3261
      %v3263 = vsel %vm864, %v3255, 0.0
      %3264 = vadd.xlane.f32.xlu0 %v3263
      %v3265 = vpop.xlane.xlu0 %3264
      %v3266 = vsel %vm864, %v3256, 0.0
      %3267 = vadd.xlane.f32.xlu0 %v3266
      %v3268 = vpop.xlane.xlu0 %3267
      %v3269 = vsel %vm864, %v3257, 0.0
      %3270 = vadd.xlane.f32.xlu0 %v3269
      %v3271 = vpop.xlane.xlu0 %3270
      %v3272 = vsel %vm864, %v3258, 0.0
      %3273 = vadd.xlane.f32.xlu0 %v3272
      %v3274 = vpop.xlane.xlu0 %3273
      %v3275 = vsel %vm864, %v3259, 0.0
      %3276 = vadd.xlane.f32.xlu0 %v3275
      %v3277 = vpop.xlane.xlu0 %3276
      %v3278 = vmul.f32 %v3262, %v883
      %v3279 = vmul.f32 %v3265, %v883
      %v3280 = vmul.f32 %v3268, %v883
      %v3281 = vmul.f32 %v3271, %v883
      %v3282 = vmul.f32 %v3274, %v883
      %v3283 = vmul.f32 %v3277, %v883
      %v3284 = vadd.f32 %v3278, 1e-05
      %v3285 = vadd.f32 %v3279, 1e-05
      %v3286 = vadd.f32 %v3280, 1e-05
      %v3287 = vadd.f32 %v3281, 1e-05
      %v3288 = vadd.f32 %v3282, 1e-05
      %v3289 = vadd.f32 %v3283, 1e-05
      %v3290 = vrsqrt.pop %v3284
      %v3291 = vrsqrt.pop %v3285
      %v3292 = vrsqrt.pop %v3286
      %v3293 = vrsqrt.pop %v3287
      %v3294 = vrsqrt.pop %v3288
      %v3295 = vrsqrt.pop %v3289
      %v3296 = vmul.f32 %v3248, %v3290
      %v3297 = vmul.f32 %v3249, %v3291
      %v3298 = vmul.f32 %v3250, %v3292
      %v3299 = vmul.f32 %v3251, %v3293
      %v3300 = vmul.f32 %v3252, %v3294
      %v3301 = vmul.f32 %v3253, %v3295
      %v3303 = vlaneseq
      %v3304 = vshrl.u32 %v3303, 7
      %v3305 = vsub.s32 0, %v3304
      %v3306 = vrot.slane %v3222, %v3305
      %v3308 = vmul.f32 %v3296, %v3306
      %v3309 = vmul.f32 %v3297, %v3306
      %v3310 = vmul.f32 %v3298, %v3306
      %v3311 = vmul.f32 %v3299, %v3306
      %v3312 = vmul.f32 %v3300, %v3306
      %v3313 = vmul.f32 %v3301, %v3306
      %v3315 = vlaneseq
      %v3316 = vshrl.u32 %v3315, 7
      %v3317 = vsub.s32 0, %v3316
      %v3318 = vrot.slane %v3223, %v3317
      %v3320 = vadd.f32 %v3308, %v3318
      %v3321 = vadd.f32 %v3309, %v3318
      %v3322 = vadd.f32 %v3310, %v3318
      %v3323 = vadd.f32 %v3311, %v3318
      %v3324 = vadd.f32 %v3312, %v3318
      %v3325 = vadd.f32 %v3313, %v3318
      %v3326 = vld [vmem:[%s696] sm:$0xff]
      %v3327 = vld [vmem:[%s696 + $0x8] sm:$0xff]
      %v3328 = vld [vmem:[%s696 + $0x10] sm:$0xff]
      %v3329 = vld [vmem:[%s696 + $0x18] sm:$0xff]
      %v3330 = vld [vmem:[%s699] sm:$0x1]
      %v3332 = vlaneseq
      %v3333 = vshrl.u32 %v3332, 7
      %v3334 = vsub.s32 0, %v3333
      %v3335 = vrot.slane %v3330, %v3334
      %v3338 = vsel %vm864, %v3320, 0
      %v3341 = vsel %vm864, %v3321, 0
      %v3344 = vsel %vm864, %v3322, 0
      %v3347 = vsel %vm864, %v3323, 0
      %v3350 = vsel %vm864, %v3324, 0
      %v3353 = vsel %vm864, %v3325, 0
      %3355 = vmatprep.subr.mxu0 0.0
      %3356 = vmatpush1.msra.mxu0 0.0
      %3357 = vmatprep.subr.mxu0 0.0
      %3358 = vmatpush1.msra.mxu0 0.0
      %3359 = vmatprep.subr.mxu0 0.0
      %3360 = vmatpush1.msra.mxu0 0.0
      %3361 = vmatprep.subr.mxu0 0.0
      %3362 = vmatpush1.msra.mxu0 0.0
      %3363 = vmatprep.subr.mxu0 0.0
      %3364 = vmatpush1.msra.mxu0 0.0
      %3365 = vmatprep.subr.mxu0 0.0
      %3366 = vmatpush1.msra.mxu0 0.0
      %3367 = vmatprep.subr.mxu0 0.0
      %3368 = vmatpush1.msra.mxu0 0.0
      %3369 = vmatprep.subr.mxu0 0.0
      %3370 = vmatpush1.msra.mxu0 0.0
      %3371 = vmatprep.subr.mxu0 0.0
      %3372 = vmatpush1.msra.mxu0 0.0
      %3373 = vmatprep.subr.mxu0 0.0
      %3374 = vmatpush1.msra.mxu0 0.0
      %3375 = vmatprep.subr.mxu0 0.0
      %3376 = vmatpush1.msra.mxu0 0.0
      %3377 = vmatprep.subr.mxu0 0.0
      %3378 = vmatpush1.msra.mxu0 0.0
      %3379 = vmatprep.subr.mxu0 0.0
      %3380 = vmatpush1.msra.mxu0 %v3329
      %3381 = vmatprep.subr.mxu0 0.0
      %3382 = vmatpush1.msra.mxu0 %v3328
      %3383 = vmatprep.subr.mxu0 0.0
      %3384 = vmatpush1.msra.mxu0 %v3327
      %3385 = vmatprep.subr.mxu0 0.0
      %3386 = vmatpush1.msra.mxu0 %v3326
      %3387 = vmatprep.subr.mxu0 0.0
      %3388 = vmatpush2.msra.mxu0 0.0
      %3389 = vmatprep.subr.mxu0 0.0
      %3390 = vmatpush2.msra.mxu0 0.0
      %3391 = vmatprep.subr.mxu0 0.0
      %3392 = vmatpush2.msra.mxu0 0.0
      %3393 = vmatprep.subr.mxu0 0.0
      %3394 = vmatpush2.msra.mxu0 0.0
      %3395 = vmatprep.subr.mxu0 0.0
      %3396 = vmatpush2.msra.mxu0 0.0
      %3397 = vmatprep.subr.mxu0 0.0
      %3398 = vmatpush2.msra.mxu0 0.0
      %3399 = vmatprep.subr.mxu0 0.0
      %3400 = vmatpush2.msra.mxu0 0.0
      %3401 = vmatprep.subr.mxu0 0.0
      %3402 = vmatpush2.msra.mxu0 0.0
      %3403 = vmatprep.subr.mxu0 0.0
      %3404 = vmatpush2.msra.mxu0 0.0
      %3405 = vmatprep.subr.mxu0 0.0
      %3406 = vmatpush2.msra.mxu0 0.0
      %3407 = vmatprep.subr.mxu0 0.0
      %3408 = vmatpush2.msra.mxu0 0.0
      %3409 = vmatprep.subr.mxu0 0.0
      %3410 = vmatpush2.msra.mxu0 0.0
      %3411 = vmatprep.subr.mxu0 0.0
      %3412 = vmatpush2.msra.mxu0 0.0
      %3413 = vmatprep.subr.mxu0 0.0
      %3414 = vmatpush2.msra.mxu0 0.0
      %3415 = vmatprep.subr.mxu0 0.0
      %3416 = vmatpush2.msra.mxu0 0.0
      %3417 = vmatprep.subr.mxu0 0.0
      %3418 = vmatpush2.msra.mxu0 0.0
      %3419 = vmatprep.mubr.f32.mxu0 0.0
      %3420 = vmatmul.mubr.f32.gmra.mxu0 %v3338
      %v3421 = vpop.f32.mrf.mxu0
      %v3422 = vadd.f32 %v3335, %v3421
      %v3423 = vpop.f32.mrf.mxu0
      %3424 = vmatprep.mubr.f32.mxu0 0.0
      %3425 = vmatmul.mubr.f32.gmra.mxu0 %v3341
      %v3426 = vpop.f32.mrf.mxu0
      %v3427 = vadd.f32 %v3335, %v3426
      %v3428 = vpop.f32.mrf.mxu0
      %3429 = vmatprep.mubr.f32.mxu0 0.0
      %3430 = vmatmul.mubr.f32.gmra.mxu0 %v3344
      %v3431 = vpop.f32.mrf.mxu0
      %v3432 = vadd.f32 %v3335, %v3431
      %v3433 = vpop.f32.mrf.mxu0
      %3434 = vmatprep.mubr.f32.mxu0 0.0
      %3435 = vmatmul.mubr.f32.gmra.mxu0 %v3347
      %v3436 = vpop.f32.mrf.mxu0
      %v3437 = vadd.f32 %v3335, %v3436
      %v3438 = vpop.f32.mrf.mxu0
      %3439 = vmatprep.mubr.f32.mxu0 0.0
      %3440 = vmatmul.mubr.f32.gmra.mxu0 %v3350
      %v3441 = vpop.f32.mrf.mxu0
      %v3442 = vadd.f32 %v3335, %v3441
      %v3443 = vpop.f32.mrf.mxu0
      %3444 = vmatprep.mubr.f32.mxu0 0.0
      %3445 = vmatmul.mubr.f32.gmra.mxu0 %v3353
      %v3446 = vpop.f32.mrf.mxu0
      %v3447 = vadd.f32 %v3335, %v3446
      %v3448 = vpop.f32.mrf.mxu0
      %3449 = vdwg.mxu0
      %v3450 = vmul.f32 %v3422, 0.5
      %v3451 = vmul.f32 %v3427, 0.5
      %v3452 = vmul.f32 %v3432, 0.5
      %v3453 = vmul.f32 %v3437, 0.5
      %v3454 = vmul.f32 %v3442, 0.5
      %v3455 = vmul.f32 %v3447, 0.5
      %v3456 = vmul.f32 %v3422, 0.70710677
      %v3457 = vmul.f32 %v3427, 0.70710677
      %v3458 = vmul.f32 %v3432, 0.70710677
      %v3459 = vmul.f32 %v3437, 0.70710677
      %v3460 = vmul.f32 %v3442, 0.70710677
      %v3461 = vmul.f32 %v3447, 0.70710677
      %v3462 = vand.u32 2147483647, %v3456
      %v3463 = vand.u32 2147483647, %v3457
      %v3464 = vand.u32 2147483647, %v3458
      %v3465 = vand.u32 2147483647, %v3459
      %v3466 = vand.u32 2147483647, %v3460
      %v3467 = vand.u32 2147483647, %v3461
      %v3468 = vmul.f32 %v3462, 0.3275911
      %v3469 = vmul.f32 %v3463, 0.3275911
      %v3470 = vmul.f32 %v3464, 0.3275911
      %v3471 = vmul.f32 %v3465, 0.3275911
      %v3472 = vmul.f32 %v3466, 0.3275911
      %v3473 = vmul.f32 %v3467, 0.3275911
      %v3474 = vadd.f32 %v3468, 1.0
      %v3475 = vadd.f32 %v3469, 1.0
      %v3476 = vadd.f32 %v3470, 1.0
      %v3477 = vadd.f32 %v3471, 1.0
      %v3478 = vadd.f32 %v3472, 1.0
      %v3479 = vadd.f32 %v3473, 1.0
      %v3480 = vrcp.pop %v3474
      %v3481 = vmul.f32 1.0, %v3480
      %v3482 = vrcp.pop %v3475
      %v3483 = vmul.f32 1.0, %v3482
      %v3484 = vrcp.pop %v3476
      %v3485 = vmul.f32 1.0, %v3484
      %v3486 = vrcp.pop %v3477
      %v3487 = vmul.f32 1.0, %v3486
      %v3488 = vrcp.pop %v3478
      %v3489 = vmul.f32 1.0, %v3488
      %v3490 = vrcp.pop %v3479
      %v3491 = vmul.f32 1.0, %v3490
      %v3492 = vmul.f32 %v3481, 1.0614054
      %v3493 = vmul.f32 %v3483, 1.0614054
      %v3494 = vmul.f32 %v3485, 1.0614054
      %v3495 = vmul.f32 %v3487, 1.0614054
      %v3496 = vmul.f32 %v3489, 1.0614054
      %v3497 = vmul.f32 %v3491, 1.0614054
      %v3498 = vadd.f32 %v3492, -1.4531521
      %v3499 = vadd.f32 %v3493, -1.4531521
      %v3500 = vadd.f32 %v3494, -1.4531521
      %v3501 = vadd.f32 %v3495, -1.4531521
      %v3502 = vadd.f32 %v3496, -1.4531521
      %v3503 = vadd.f32 %v3497, -1.4531521
      %v3504 = vmul.f32 %v3498, %v3481
      %v3505 = vmul.f32 %v3499, %v3483
      %v3506 = vmul.f32 %v3500, %v3485
      %v3507 = vmul.f32 %v3501, %v3487
      %v3508 = vmul.f32 %v3502, %v3489
      %v3509 = vmul.f32 %v3503, %v3491
      %v3510 = vadd.f32 %v3504, 1.4214138
      %v3511 = vadd.f32 %v3505, 1.4214138
      %v3512 = vadd.f32 %v3506, 1.4214138
      %v3513 = vadd.f32 %v3507, 1.4214138
      %v3514 = vadd.f32 %v3508, 1.4214138
      %v3515 = vadd.f32 %v3509, 1.4214138
      %v3516 = vmul.f32 %v3510, %v3481
      %v3517 = vmul.f32 %v3511, %v3483
      %v3518 = vmul.f32 %v3512, %v3485
      %v3519 = vmul.f32 %v3513, %v3487
      %v3520 = vmul.f32 %v3514, %v3489
      %v3521 = vmul.f32 %v3515, %v3491
      %v3522 = vadd.f32 %v3516, -0.28449672
      %v3523 = vadd.f32 %v3517, -0.28449672
      %v3524 = vadd.f32 %v3518, -0.28449672
      %v3525 = vadd.f32 %v3519, -0.28449672
      %v3526 = vadd.f32 %v3520, -0.28449672
      %v3527 = vadd.f32 %v3521, -0.28449672
      %v3528 = vmul.f32 %v3522, %v3481
      %v3529 = vmul.f32 %v3523, %v3483
      %v3530 = vmul.f32 %v3524, %v3485
      %v3531 = vmul.f32 %v3525, %v3487
      %v3532 = vmul.f32 %v3526, %v3489
      %v3533 = vmul.f32 %v3527, %v3491
      %v3534 = vadd.f32 %v3528, 0.2548296
      %v3535 = vadd.f32 %v3529, 0.2548296
      %v3536 = vadd.f32 %v3530, 0.2548296
      %v3537 = vadd.f32 %v3531, 0.2548296
      %v3538 = vadd.f32 %v3532, 0.2548296
      %v3539 = vadd.f32 %v3533, 0.2548296
      %v3540 = vmul.f32 %v3534, %v3481
      %v3541 = vmul.f32 %v3535, %v3483
      %v3542 = vmul.f32 %v3536, %v3485
      %v3543 = vmul.f32 %v3537, %v3487
      %v3544 = vmul.f32 %v3538, %v3489
      %v3545 = vmul.f32 %v3539, %v3491
      %v3546 = vsub.f32 0.0, %v3462
      %v3547 = vsub.f32 0.0, %v3463
      %v3548 = vsub.f32 0.0, %v3464
      %v3549 = vsub.f32 0.0, %v3465
      %v3550 = vsub.f32 0.0, %v3466
      %v3551 = vsub.f32 0.0, %v3467
      %v3552 = vmul.f32 %v3546, %v3462
      %v3553 = vmul.f32 %v3547, %v3463
      %v3554 = vmul.f32 %v3548, %v3464
      %v3555 = vmul.f32 %v3549, %v3465
      %v3556 = vmul.f32 %v3550, %v3466
      %v3557 = vmul.f32 %v3551, %v3467
      %v3558 = vmul.f32 %v3552, 1.442695
      %v3559 = vpow.pop %v3558
      %v3560 = vmul.f32 %v3553, 1.442695
      %v3561 = vpow.pop %v3560
      %v3562 = vmul.f32 %v3554, 1.442695
      %v3563 = vpow.pop %v3562
      %v3564 = vmul.f32 %v3555, 1.442695
      %v3565 = vpow.pop %v3564
      %v3566 = vmul.f32 %v3556, 1.442695
      %v3567 = vpow.pop %v3566
      %v3568 = vmul.f32 %v3557, 1.442695
      %v3569 = vpow.pop %v3568
      %v3570 = vmul.f32 %v3540, %v3559
      %v3571 = vmul.f32 %v3541, %v3561
      %v3572 = vmul.f32 %v3542, %v3563
      %v3573 = vmul.f32 %v3543, %v3565
      %v3574 = vmul.f32 %v3544, %v3567
      %v3575 = vmul.f32 %v3545, %v3569
      %v3576 = vsub.f32 1.0, %v3570
      %v3577 = vsub.f32 1.0, %v3571
      %v3578 = vsub.f32 1.0, %v3572
      %v3579 = vsub.f32 1.0, %v3573
      %v3580 = vsub.f32 1.0, %v3574
      %v3581 = vsub.f32 1.0, %v3575
      %vm3582 = vcmp.lt.f32.partialorder %v3456, 0.0
      %vm3583 = vcmp.lt.f32.partialorder %v3457, 0.0
      %vm3584 = vcmp.lt.f32.partialorder %v3458, 0.0
      %vm3585 = vcmp.lt.f32.partialorder %v3459, 0.0
      %vm3586 = vcmp.lt.f32.partialorder %v3460, 0.0
      %vm3587 = vcmp.lt.f32.partialorder %v3461, 0.0
      %v3588 = vsub.f32 0.0, %v3576
      %v3589 = vsub.f32 0.0, %v3577
      %v3590 = vsub.f32 0.0, %v3578
      %v3591 = vsub.f32 0.0, %v3579
      %v3592 = vsub.f32 0.0, %v3580
      %v3593 = vsub.f32 0.0, %v3581
      %v3594 = vsel %vm3582, %v3588, %v3576
      %v3595 = vsel %vm3583, %v3589, %v3577
      %v3596 = vsel %vm3584, %v3590, %v3578
      %v3597 = vsel %vm3585, %v3591, %v3579
      %v3598 = vsel %vm3586, %v3592, %v3580
      %v3599 = vsel %vm3587, %v3593, %v3581
      %v3600 = vadd.f32 %v3594, 1.0
      %v3601 = vadd.f32 %v3595, 1.0
      %v3602 = vadd.f32 %v3596, 1.0
      %v3603 = vadd.f32 %v3597, 1.0
      %v3604 = vadd.f32 %v3598, 1.0
      %v3605 = vadd.f32 %v3599, 1.0
      %v3606 = vmul.f32 %v3450, %v3600
      %v3607 = vmul.f32 %v3451, %v3601
      %v3608 = vmul.f32 %v3452, %v3602
      %v3609 = vmul.f32 %v3453, %v3603
      %v3610 = vmul.f32 %v3454, %v3604
      %v3611 = vmul.f32 %v3455, %v3605
      %v3612 = vld [vmem:[%s704] sm:$0xff]
      %v3613 = vld [vmem:[%s704 + $0x8] sm:$0xff]
      %v3614 = vld [vmem:[%s704 + $0x10] sm:$0xff]
      %v3615 = vld [vmem:[%s704 + $0x18] sm:$0xff]
      %v3616 = vld [vmem:[%s704 + $0x20] sm:$0xff]
      %v3617 = vld [vmem:[%s704 + $0x28] sm:$0xff]
      %v3618 = vld [vmem:[%s704 + $0x30] sm:$0xff]
      %v3619 = vld [vmem:[%s704 + $0x38] sm:$0xff]
      %v3620 = vld [vmem:[%s704 + $0x40] sm:$0xff]
      %v3621 = vld [vmem:[%s704 + $0x48] sm:$0xff]
      %v3622 = vld [vmem:[%s704 + $0x50] sm:$0xff]
      %v3623 = vld [vmem:[%s704 + $0x58] sm:$0xff]
      %v3624 = vld [vmem:[%s704 + $0x60] sm:$0xff]
      %v3625 = vld [vmem:[%s704 + $0x68] sm:$0xff]
      %v3626 = vld [vmem:[%s704 + $0x70] sm:$0xff]
      %v3627 = vld [vmem:[%s704 + $0x78] sm:$0xff]
      %v3628 = vld [vmem:[%s707] sm:$0x1]
      %v3630 = vlaneseq
      %v3631 = vshrl.u32 %v3630, 7
      %v3632 = vsub.s32 0, %v3631
      %v3633 = vrot.slane %v3628, %v3632
      %3635 = vmatprep.subr.mxu0 0.0
      %3636 = vmatpush1.msra.mxu0 %v3627
      %3637 = vmatprep.subr.mxu0 0.0
      %3638 = vmatpush1.msra.mxu0 %v3626
      %3639 = vmatprep.subr.mxu0 0.0
      %3640 = vmatpush1.msra.mxu0 %v3625
      %3641 = vmatprep.subr.mxu0 0.0
      %3642 = vmatpush1.msra.mxu0 %v3624
      %3643 = vmatprep.subr.mxu0 0.0
      %3644 = vmatpush1.msra.mxu0 %v3623
      %3645 = vmatprep.subr.mxu0 0.0
      %3646 = vmatpush1.msra.mxu0 %v3622
      %3647 = vmatprep.subr.mxu0 0.0
      %3648 = vmatpush1.msra.mxu0 %v3621
      %3649 = vmatprep.subr.mxu0 0.0
      %3650 = vmatpush1.msra.mxu0 %v3620
      %3651 = vmatprep.subr.mxu0 0.0
      %3652 = vmatpush1.msra.mxu0 %v3619
      %3653 = vmatprep.subr.mxu0 0.0
      %3654 = vmatpush1.msra.mxu0 %v3618
      %3655 = vmatprep.subr.mxu0 0.0
      %3656 = vmatpush1.msra.mxu0 %v3617
      %3657 = vmatprep.subr.mxu0 0.0
      %3658 = vmatpush1.msra.mxu0 %v3616
      %3659 = vmatprep.subr.mxu0 0.0
      %3660 = vmatpush1.msra.mxu0 %v3615
      %3661 = vmatprep.subr.mxu0 0.0
      %3662 = vmatpush1.msra.mxu0 %v3614
      %3663 = vmatprep.subr.mxu0 0.0
      %3664 = vmatpush1.msra.mxu0 %v3613
      %3665 = vmatprep.subr.mxu0 0.0
      %3666 = vmatpush1.msra.mxu0 %v3612
      %3667 = vmatprep.subr.mxu0 0.0
      %3668 = vmatpush2.msra.mxu0 0.0
      %3669 = vmatprep.subr.mxu0 0.0
      %3670 = vmatpush2.msra.mxu0 0.0
      %3671 = vmatprep.subr.mxu0 0.0
      %3672 = vmatpush2.msra.mxu0 0.0
      %3673 = vmatprep.subr.mxu0 0.0
      %3674 = vmatpush2.msra.mxu0 0.0
      %3675 = vmatprep.subr.mxu0 0.0
      %3676 = vmatpush2.msra.mxu0 0.0
      %3677 = vmatprep.subr.mxu0 0.0
      %3678 = vmatpush2.msra.mxu0 0.0
      %3679 = vmatprep.subr.mxu0 0.0
      %3680 = vmatpush2.msra.mxu0 0.0
      %3681 = vmatprep.subr.mxu0 0.0
      %3682 = vmatpush2.msra.mxu0 0.0
      %3683 = vmatprep.subr.mxu0 0.0
      %3684 = vmatpush2.msra.mxu0 0.0
      %3685 = vmatprep.subr.mxu0 0.0
      %3686 = vmatpush2.msra.mxu0 0.0
      %3687 = vmatprep.subr.mxu0 0.0
      %3688 = vmatpush2.msra.mxu0 0.0
      %3689 = vmatprep.subr.mxu0 0.0
      %3690 = vmatpush2.msra.mxu0 0.0
      %3691 = vmatprep.subr.mxu0 0.0
      %3692 = vmatpush2.msra.mxu0 0.0
      %3693 = vmatprep.subr.mxu0 0.0
      %3694 = vmatpush2.msra.mxu0 0.0
      %3695 = vmatprep.subr.mxu0 0.0
      %3696 = vmatpush2.msra.mxu0 0.0
      %3697 = vmatprep.subr.mxu0 0.0
      %3698 = vmatpush2.msra.mxu0 0.0
      %3699 = vmatprep.mubr.f32.mxu0 0.0
      %3700 = vmatmul.mubr.f32.gmra.mxu0 %v3606
      %v3701 = vpop.f32.mrf.mxu0
      %v3702 = vadd.f32 %v3633, %v3701
      %v3703 = vpop.f32.mrf.mxu0
      %3704 = vmatprep.mubr.f32.mxu0 0.0
      %3705 = vmatmul.mubr.f32.gmra.mxu0 %v3607
      %v3706 = vpop.f32.mrf.mxu0
      %v3707 = vadd.f32 %v3633, %v3706
      %v3708 = vpop.f32.mrf.mxu0
      %3709 = vmatprep.mubr.f32.mxu0 0.0
      %3710 = vmatmul.mubr.f32.gmra.mxu0 %v3608
      %v3711 = vpop.f32.mrf.mxu0
      %v3712 = vadd.f32 %v3633, %v3711
      %v3713 = vpop.f32.mrf.mxu0
      %3714 = vmatprep.mubr.f32.mxu0 0.0
      %3715 = vmatmul.mubr.f32.gmra.mxu0 %v3609
      %v3716 = vpop.f32.mrf.mxu0
      %v3717 = vadd.f32 %v3633, %v3716
      %v3718 = vpop.f32.mrf.mxu0
      %3719 = vmatprep.mubr.f32.mxu0 0.0
      %3720 = vmatmul.mubr.f32.gmra.mxu0 %v3610
      %v3721 = vpop.f32.mrf.mxu0
      %v3722 = vadd.f32 %v3633, %v3721
      %v3723 = vpop.f32.mrf.mxu0
      %3724 = vmatprep.mubr.f32.mxu0 0.0
      %3725 = vmatmul.mubr.f32.gmra.mxu0 %v3611
      %v3726 = vpop.f32.mrf.mxu0
      %v3727 = vadd.f32 %v3633, %v3726
      %v3728 = vpop.f32.mrf.mxu0
      %3729 = vdwg.mxu0
      %v3730 = vadd.f32 %v3216, %v3702
      %v3731 = vadd.f32 %v3217, %v3707
      %v3732 = vadd.f32 %v3218, %v3712
      %v3733 = vadd.f32 %v3219, %v3717
      %v3734 = vadd.f32 %v3220, %v3722
      %v3735 = vadd.f32 %v3221, %v3727
      %3736 = vst.msk [vmem:[#allocation2] sm:$0xff] %vm864, %v3730
      %3737 = vst.msk [vmem:[#allocation2 + $0x8] sm:$0xff] %vm864, %v3731
      %3738 = vst.msk [vmem:[#allocation2 + $0x10] sm:$0xff] %vm864, %v3732
      %3739 = vst.msk [vmem:[#allocation2 + $0x18] sm:$0xff] %vm864, %v3733
      %3740 = vst.msk [vmem:[#allocation2 + $0x20] sm:$0xff] %vm864, %v3734
      %3741 = vst.msk [vmem:[#allocation2 + $0x28] sm:$0xff] %vm864, %v3735
      %p3742 = scmp.eq.s32.totalorder %s30, 1
      // Predicated region
      $region93: #{tpu_custom_call.1} parent=87 // pred_check
        %p3743 = pneg %p3742
      $region94: #{tpu_custom_call.1} parent=87 // pred_check_branch
        %3745 = sbr.rel (%p3743) target = $region96
      $region95: #{tpu_custom_call.1} parent=87 // pred_region
        %v3747 = vrot.slane %v3733, 7
        %vm3749 = vcmask 1040384
        %v3750 = vsel %vm3749, %v3730, %v3747
        %v3751 = vld [vmem:[%s15] sm:$0xff]
        %v3752 = vld [vmem:[%s15 + $0x8] sm:$0xff]
        %v3753 = vld [vmem:[%s15 + $0x10] sm:$0xff]
        %v3754 = vld [vmem:[%s15 + $0x18] sm:$0xff]
        %v3755 = vld [vmem:[#allocation3] sm:$0x1]
        %v3757 = vlaneseq
        %v3758 = vshrl.u32 %v3757, 7
        %v3759 = vsub.s32 0, %v3758
        %v3760 = vrot.slane %v3755, %v3759
        %v3763 = vsel %vm864, %v3750, 0
        %3765 = vmatprep.subr.mxu0 0.0
        %3766 = vmatpush1.msra.mxu0 0.0
        %3767 = vmatprep.subr.mxu0 0.0
        %3768 = vmatpush1.msra.mxu0 0.0
        %3769 = vmatprep.subr.mxu0 0.0
        %3770 = vmatpush1.msra.mxu0 0.0
        %3771 = vmatprep.subr.mxu0 0.0
        %3772 = vmatpush1.msra.mxu0 0.0
        %3773 = vmatprep.subr.mxu0 0.0
        %3774 = vmatpush1.msra.mxu0 0.0
        %3775 = vmatprep.subr.mxu0 0.0
        %3776 = vmatpush1.msra.mxu0 0.0
        %3777 = vmatprep.subr.mxu0 0.0
        %3778 = vmatpush1.msra.mxu0 0.0
        %3779 = vmatprep.subr.mxu0 0.0
        %3780 = vmatpush1.msra.mxu0 0.0
        %3781 = vmatprep.subr.mxu0 0.0
        %3782 = vmatpush1.msra.mxu0 0.0
        %3783 = vmatprep.subr.mxu0 0.0
        %3784 = vmatpush1.msra.mxu0 0.0
        %3785 = vmatprep.subr.mxu0 0.0
        %3786 = vmatpush1.msra.mxu0 0.0
        %3787 = vmatprep.subr.mxu0 0.0
        %3788 = vmatpush1.msra.mxu0 0.0
        %3789 = vmatprep.subr.mxu0 0.0
        %3790 = vmatpush1.msra.mxu0 %v3754
        %3791 = vmatprep.subr.mxu0 0.0
        %3792 = vmatpush1.msra.mxu0 %v3753
        %3793 = vmatprep.subr.mxu0 0.0
        %3794 = vmatpush1.msra.mxu0 %v3752
        %3795 = vmatprep.subr.mxu0 0.0
        %3796 = vmatpush1.msra.mxu0 %v3751
        %3797 = vmatprep.subr.mxu0 0.0
        %3798 = vmatpush2.msra.mxu0 0.0
        %3799 = vmatprep.subr.mxu0 0.0
        %3800 = vmatpush2.msra.mxu0 0.0
        %3801 = vmatprep.subr.mxu0 0.0
        %3802 = vmatpush2.msra.mxu0 0.0
        %3803 = vmatprep.subr.mxu0 0.0
        %3804 = vmatpush2.msra.mxu0 0.0
        %3805 = vmatprep.subr.mxu0 0.0
        %3806 = vmatpush2.msra.mxu0 0.0
        %3807 = vmatprep.subr.mxu0 0.0
        %3808 = vmatpush2.msra.mxu0 0.0
        %3809 = vmatprep.subr.mxu0 0.0
        %3810 = vmatpush2.msra.mxu0 0.0
        %3811 = vmatprep.subr.mxu0 0.0
        %3812 = vmatpush2.msra.mxu0 0.0
        %3813 = vmatprep.subr.mxu0 0.0
        %3814 = vmatpush2.msra.mxu0 0.0
        %3815 = vmatprep.subr.mxu0 0.0
        %3816 = vmatpush2.msra.mxu0 0.0
        %3817 = vmatprep.subr.mxu0 0.0
        %3818 = vmatpush2.msra.mxu0 0.0
        %3819 = vmatprep.subr.mxu0 0.0
        %3820 = vmatpush2.msra.mxu0 0.0
        %3821 = vmatprep.subr.mxu0 0.0
        %3822 = vmatpush2.msra.mxu0 0.0
        %3823 = vmatprep.subr.mxu0 0.0
        %3824 = vmatpush2.msra.mxu0 0.0
        %3825 = vmatprep.subr.mxu0 0.0
        %3826 = vmatpush2.msra.mxu0 0.0
        %3827 = vmatprep.subr.mxu0 0.0
        %3828 = vmatpush2.msra.mxu0 0.0
        %3829 = vmatprep.mubr.f32.mxu0 0.0
        %3830 = vmatmul.mubr.f32.gmra.mxu0 %v3763
        %v3831 = vpop.f32.mrf.mxu0
        %v3832 = vadd.f32 %v3760, %v3831
        %v3833 = vpop.f32.mrf.mxu0
        %3834 = vdwg.mxu0
        %vm3835 = vcmask 1024
        %3836 = vst.msk [vmem:[%s17] sm:$0x3] %vm3835, %v3832
      $region96: #{tpu_custom_call.1} parent=87 // pred_fallthru
        _
      // Predicated region
      $region97: #{tpu_custom_call.1} parent=87 // pred_check
        %p3837 = pneg %p460
      $region98: #{tpu_custom_call.1} parent=87 // pred_check_branch
        %3839 = sbr.rel (%p3837) target = $region100
      $region99: #{tpu_custom_call.1} parent=87 // pred_region
        _
      $region100: #{tpu_custom_call.1} parent=87 // pred_fallthru
        _
      // Predicated region
      $region101: #{tpu_custom_call.1} parent=87 // pred_check
        %p3840 = pneg %p460
      $region102: #{tpu_custom_call.1} parent=87 // pred_check_branch
        %3842 = sbr.rel (%p3840) target = $region104
      $region103: #{tpu_custom_call.1} parent=87 // pred_region
        _
      $region104: #{tpu_custom_call.1} parent=87 // pred_fallthru
        _
    $region88: #{tpu_custom_call.1} parent=5 // pred_fallthru
      _
    %p3843 = scmp.le.s32.totalorder 2, %s25
    // Predicated region
    $region105: #{tpu_custom_call.1} parent=5 // pred_check
      %p3844 = pneg %p3843
    $region106: #{tpu_custom_call.1} parent=5 // pred_check_branch
      %3846 = sbr.rel (%p3844) target = $region108
    $region107: #{tpu_custom_call.1} parent=5 // pred_region
      %s3847 = ssub.s32 %s25, 2
    $region108: #{tpu_custom_call.1} parent=5 // pred_fallthru
      _
  $region6: #{tpu_custom_call.1} parent=0 // loop_footer
    %s29 = sadd.s32 1, %s25
  $region7: #{tpu_custom_call.1} parent=0 // loop_footer_branch
    %24 = sbr.rel target = $region3
  $region8: #{tpu_custom_call.1} parent=0 // loop_exit
    _

</llo_original>
